<compile_context>
chip_gen: v7x
topology: tpu7x:2x2x1
jax: 0.10.0
libtpu: 0.0.40
codegen_flags: <defaults>
</compile_context>

<pallas_src>
import math
import functools

import numpy as np
import jax
import jax.numpy as jnp
from jax.experimental import pallas as pl
from jax.experimental.pallas import tpu as pltpu

PI = math.pi
F32 = jnp.float32
BF16 = jnp.bfloat16


# ----------------------------------------------------------------------------
# Host-side glue: radius graph.
# NOTE: the reference's compute_radius_graph returns per-graph LOCAL indices;
# we offset them to GLOBAL node ids (the intended radius_graph(batch=...)
# semantics flagged in review) so edges never mix atoms across molecules.
# TODO(synk): data-dependent edge enumeration has no fixed-shape Pallas
# equivalent; it stays on host.
# ----------------------------------------------------------------------------
def compute_radius_graph_np(pos, batch, cutoff):
    edges = []
    for b in np.unique(batch):
        idx = np.nonzero(batch == b)[0]
        pos_b = pos[idx]
        dmat = np.linalg.norm(pos_b[:, None, :] - pos_b[None, :, :], axis=-1)
        src, dst = np.where((dmat <= cutoff) & (dmat > 0))
        edges.append(np.stack([idx[src], idx[dst]], axis=0))
    return np.concatenate(edges, axis=1)


def _ssp(x, shift):  # ShiftedSoftplus, numerically stable, f32
    return jnp.maximum(x, 0.0) + jnp.log1p(jnp.exp(-jnp.abs(x))) - shift


# ----------------------------------------------------------------------------
# Pallas kernel: the whole SchNet message-passing + readout hot path.
# Grid = (layer, edge_tile); node state / v@lin / aggregation live in VMEM
# scratch and persist across grid steps.
# ----------------------------------------------------------------------------
def _schnet_kernel(cutoff, coeff, shift,
                   dist_ref, offset_ref, gj_ref, si_ref, mean_ref, v0_ref,
                   linw_ref, w1_ref, b1_ref, w2_ref, b2_ref,
                   vl1w_ref, vl1b_ref, vl2w_ref, vl2b_ref,
                   ul1w_ref, ul1b_ref, ul2w_ref, ul2b_ref,
                   out_ref, v_sc, vlin_sc, agg_sc):
    l = pl.program_id(0)
    et = pl.program_id(1)
    last_l = pl.num_programs(0) - 1
    last_et = pl.num_programs(1) - 1
    ssp = functools.partial(_ssp, shift=shift)

    # ---- very first step: load node embeddings into the resident node state ----
    @pl.when(jnp.logical_and(l == 0, et == 0))
    def _init_v():
        v_sc[...] = v0_ref[...]

    # ---- first edge tile of every layer: refresh v @ lin, zero the aggregator ----
    @pl.when(et == 0)
    def _start_layer():
        vlin_sc[...] = jnp.dot(v_sc[...].astype(BF16), linw_ref[0],
                               preferred_element_type=F32).astype(BF16)
        agg_sc[...] = jnp.zeros_like(agg_sc)

    # ---- UpdateE on this edge tile (Gaussian expansion + filter MLP + cutoff) ----
    dist = dist_ref[...]                               # (TE, 1) f32
    diff = dist - offset_ref[...]                      # (TE, G_pad)
    demb = jnp.exp(coeff * diff * diff)                # Gaussian expansion (f32)
    C = 0.5 * (jnp.cos(dist * (PI / cutoff)) + 1.0)    # cosine cutoff (TE, 1)
    h1 = ssp(jnp.dot(demb.astype(BF16), w1_ref[0],
                     preferred_element_type=F32) + b1_ref[0])
    W = jnp.dot(h1.astype(BF16), w2_ref[0],
                preferred_element_type=F32) + b2_ref[0]
    W = W * C                                          # fold cutoff once per tile

    # gather v_lin[j]: one-hot rows of gj are zero for padded edges, so padded
    # edges contribute nothing (and the scatter one-hot zeroes them again).
    v_j = jnp.dot(gj_ref[...], vlin_sc[...], preferred_element_type=F32)
    e = (v_j * W).astype(BF16)                         # (TE, F)

    # scatter_add by target i into the resident aggregator
    agg_sc[...] += jnp.dot(si_ref[...], e, preferred_element_type=F32)

    # ---- last edge tile of the layer: UpdateV (residual node MLP) ----
    @pl.when(et == last_et)
    def _update_v():
        h = ssp(jnp.dot(agg_sc[...].astype(BF16), vl1w_ref[0],
                        preferred_element_type=F32) + vl1b_ref[0])
        dv = jnp.dot(h.astype(BF16), vl2w_ref[0],
                     preferred_element_type=F32) + vl2b_ref[0]
        v_sc[...] = v_sc[...] + dv

    # ---- final step: UpdateU readout + per-graph mean pooling ----
    @pl.when(jnp.logical_and(l == last_l, et == last_et))
    def _readout():
        u = ssp(jnp.dot(v_sc[...].astype(BF16), ul1w_ref[...],
                        preferred_element_type=F32) + ul1b_ref[...])
        u = jnp.dot(u.astype(BF16), ul2w_ref[...],
                    preferred_element_type=F32) + ul2b_ref[...]
        out_ref[...] = jnp.dot(mean_ref[...], u, preferred_element_type=F32)


def schnet_pallas(dist, offset_row, gj, si, mean_mat, v0, params, *,
                  num_layers, cutoff, coeff, edge_tile, num_graphs, out_channels):
    E_pad = dist.shape[0]
    assert E_pad % edge_tile == 0
    n_et = E_pad // edge_tile
    N_pad, H = v0.shape
    G_pad = offset_row.shape[1]
    F = params["linw"].shape[2]
    H2p = params["ul1w"].shape[1]
    Op = params["ul2w"].shape[1]
    B_pad = mean_mat.shape[0]
    TE = edge_tile

    kernel = functools.partial(_schnet_kernel, cutoff, coeff, math.log(2.0))

    lmap = lambda l, et: (l, 0, 0)        # per-layer weight slice (resident per layer)
    const2 = lambda l, et: (0, 0)         # fully resident small operands

    in_specs = [
        pl.BlockSpec((TE, 1), lambda l, et: (et, 0)),        # dist (streamed)
        pl.BlockSpec((1, G_pad), const2),                    # gaussian offsets
        pl.BlockSpec((TE, N_pad), lambda l, et: (et, 0)),    # gather one-hot (bf16)
        pl.BlockSpec((N_pad, TE), lambda l, et: (0, et)),    # scatter one-hot (bf16)
        pl.BlockSpec((B_pad, N_pad), const2),                # mean-pool matrix
        pl.BlockSpec((N_pad, H), const2),                    # v0 embeddings
        pl.BlockSpec((1, H, F), lmap),                       # linw
        pl.BlockSpec((1, G_pad, F), lmap),                   # w1
        pl.BlockSpec((1, 1, F), lmap),                       # b1
        pl.BlockSpec((1, F, F), lmap),                       # w2
        pl.BlockSpec((1, 1, F), lmap),                       # b2
        pl.BlockSpec((1, F, H), lmap),                       # vl1w
        pl.BlockSpec((1, 1, H), lmap),                       # vl1b
        pl.BlockSpec((1, H, H), lmap),                       # vl2w
        pl.BlockSpec((1, 1, H), lmap),                       # vl2b
        pl.BlockSpec((H, H2p), const2),                      # ul1w
        pl.BlockSpec((1, H2p), const2),                      # ul1b
        pl.BlockSpec((H2p, Op), const2),                     # ul2w
        pl.BlockSpec((1, Op), const2),                       # ul2b
    ]
    out_spec = pl.BlockSpec((B_pad, Op), const2)

    # Advisory cost estimate for XLA scheduling.
    mm = lambda m, k, n: 2 * m * k * n
    per_layer = (mm(E_pad, G_pad, F) + mm(E_pad, F, F) + mm(E_pad, N_pad, F)
                 + mm(N_pad, E_pad, F) + mm(N_pad, H, F) + mm(N_pad, F, H)
                 + mm(N_pad, H, H))
    flops = (num_layers * per_layer + mm(N_pad, H, H2p) + mm(N_pad, H2p, Op)
             + mm(B_pad, N_pad, Op))
    trans = num_layers * (E_pad * G_pad + 2 * E_pad * F + 2 * N_pad * H) + 2 * N_pad * H2p
    bytes_edges = num_layers * (E_pad * 4 + 2 * E_pad * N_pad * 2)   # streamed per layer
    bytes_weights = sum(int(np.prod(v.shape)) * (2 if v.dtype == BF16 else 4)
                        for v in params.values())
    bytes_rest = (N_pad * H + B_pad * N_pad + G_pad + B_pad * Op) * 4
    cost = pl.CostEstimate(flops=int(flops), transcendentals=int(trans),
                           bytes_accessed=int(bytes_edges + bytes_weights + bytes_rest))

    grid_spec = pltpu.PrefetchScalarGridSpec(
        num_scalar_prefetch=0,
        grid=(num_layers, n_et),
        in_specs=in_specs,
        out_specs=out_spec,
        scratch_shapes=[pltpu.VMEM((N_pad, H), F32),     # node state v
                        pltpu.VMEM((N_pad, F), BF16),    # v @ lin (bf16 for the gather)
                        pltpu.VMEM((N_pad, F), F32)],    # scatter-add accumulator
    )

    out = pl.pallas_call(
        kernel,
        out_shape=jax.ShapeDtypeStruct((B_pad, Op), F32),
        grid_spec=grid_spec,
        compiler_params=pltpu.CompilerParams(
            dimension_semantics=("arbitrary", "arbitrary"),
            vmem_limit_bytes=32 * 1024 * 1024,
        ),
        cost_estimate=cost,
    )(dist, offset_row, gj, si, mean_mat, v0,
      params["linw"], params["w1"], params["b1"], params["w2"], params["b2"],
      params["vl1w"], params["vl1b"], params["vl2w"], params["vl2b"],
      params["ul1w"], params["ul1b"], params["ul2w"], params["ul2b"])
    return out[:num_graphs, :out_channels]


# ----------------------------------------------------------------------------
# Plain-JAX f32 reference (index-based gather / scatter_add, structurally
# independent of the kernel) for a correctness check.
# ----------------------------------------------------------------------------
def schnet_ref(v0, dist, row, col, offset_row, mean_bn, params, *,
               num_layers, cutoff, coeff):
    shift = math.log(2.0)
    ssp = lambda x: jnp.maximum(x, 0.0) + jnp.log1p(jnp.exp(-jnp.abs(x))) - shift
    d = dist[:, None] - offset_row
    demb = jnp.exp(coeff * d * d)
    C = 0.5 * (jnp.cos(dist[:, None] * (PI / cutoff)) + 1.0)
    v = v0
    N = v.shape[0]
    p = params
    for l in range(num_layers):
        W = (ssp(demb @ p["w1"][l] + p["b1"][l]) @ p["w2"][l] + p["b2"][l]) * C
        e = (v @ p["linw"][l])[row] * W
        agg = jnp.zeros((N, W.shape[1]), F32).at[col].add(e)
        v = v + (ssp(agg @ p["vl1w"][l] + p["vl1b"][l]) @ p["vl2w"][l] + p["vl2b"][l])
    u = ssp(v @ p["ul1w"] + p["ul1b"]) @ p["ul2w"] + p["ul2b"]
    return mean_bn @ u


# ----------------------------------------------------------------------------
# Deterministic parameter init (xavier-uniform weights, zero biases), padded
# exactly (zero rows/cols) to lane-dense shapes.  Weights are rounded to the
# bf16 grid so kernel (bf16 operands) and f32 reference share identical values.
# ----------------------------------------------------------------------------
def _xavier_bf16(key, fan_in, fan_out, shape):
    bound = math.sqrt(6.0 / (fan_in + fan_out))
    w = jax.random.uniform(key, shape, F32, -bound, bound)
    return w.astype(BF16).astype(F32)


def make_params(key, num_layers, H, F, G, G_pad, H2, H2_pad, O, O_pad):
    ks = iter(jax.random.split(key, 8 * num_layers + 8))

    def layer_stack(make_one):
        return jnp.stack([make_one() for _ in range(num_layers)])

    linw = layer_stack(lambda: _xavier_bf16(next(ks), H, F, (H, F)))
    w1 = layer_stack(lambda: jnp.zeros((G_pad, F), F32).at[:G].set(
        _xavier_bf16(next(ks), G, F, (G, F))))
    w2 = layer_stack(lambda: _xavier_bf16(next(ks), F, F, (F, F)))
    vl1w = layer_stack(lambda: _xavier_bf16(next(ks), F, H, (F, H)))
    vl2w = layer_stack(lambda: _xavier_bf16(next(ks), H, H, (H, H)))
    ul1w = jnp.zeros((H, H2_pad), F32).at[:, :H2].set(_xavier_bf16(next(ks), H, H2, (H, H2)))
    ul2w = jnp.zeros((H2_pad, O_pad), F32).at[:H2, :O].set(_xavier_bf16(next(ks), H2, O, (H2, O)))
    return {
        "linw": linw, "w1": w1, "b1": jnp.zeros((num_layers, 1, F), F32),
        "w2": w2, "b2": jnp.zeros((num_layers, 1, F), F32),
        "vl1w": vl1w, "vl1b": jnp.zeros((num_layers, 1, H), F32),
        "vl2w": vl2w, "vl2b": jnp.zeros((num_layers, 1, H), F32),
        "ul1w": ul1w, "ul1b": jnp.zeros((1, H2_pad), F32),
        "ul2w": ul2w, "ul2b": jnp.zeros((1, O_pad), F32),
    }


# ----------------------------------------------------------------------------
# main
# ----------------------------------------------------------------------------
if __name__ == "__main__":
    # SchNet defaults (lane-dense channels), small molecule counts.
    cutoff = 5.0
    num_layers = 3
    hidden = 128          # hidden_channels (module default)
    filters = 128         # num_filters
    gauss = 50            # num_gaussians (padded to 128 lanes, exact)
    out_ch = 1            # out_channels (padded to 128 lanes, exact)

    G_pad = 128
    H2, H2_pad = hidden // 2, 128
    O_pad = 128
    TE = 128              # edge tile (lane-dense scatter one-hot block)

    key = jax.random.PRNGKey(0)
    k_emb, k_pos, k_z, k_par = jax.random.split(key, 4)

    # Two molecules of 12 and 10 atoms -> >128 edges so the demo exercises
    # two edge tiles (multi-tile aggregation path).
    n_nodes = np.array([12, 10])
    N = int(n_nodes.sum())
    num_graphs = len(n_nodes)
    batch_np = np.repeat(np.arange(num_graphs), n_nodes).astype(np.int32)
    pos_np = np.asarray(jax.random.normal(k_pos, (N, 3), F32))
    z_np = np.asarray(jax.random.randint(k_z, (N,), 0, 100, jnp.int32))

    edge_index = compute_radius_graph_np(pos_np, batch_np, cutoff)
    row, col = edge_index[0], edge_index[1]        # j (source), i (target)
    E = edge_index.shape[1]
    dist_np = np.linalg.norm(pos_np[row] - pos_np[col], axis=-1).astype(np.float32)

    N_pad = int(math.ceil(N / 8) * 8)
    E_pad = int(math.ceil(E / TE) * TE)
    B_pad = int(math.ceil(num_graphs / 8) * 8)

    dist_pad = np.zeros((E_pad, 1), np.float32)
    dist_pad[:E, 0] = dist_np

    # bf16 one-hot gather (E,N, source j) and scatter (N,E, target i) matrices;
    # padded edges have all-zero rows/columns so they contribute nothing even
    # though their dist=0 makes C=1 / dist_emb nonzero.
    gj = np.zeros((E_pad, N_pad), np.float32)
    gj[np.arange(E), row] = 1.0
    si = np.zeros((N_pad, E_pad), np.float32)
    si[col, np.arange(E)] = 1.0

    mean_mat = np.zeros((B_pad, N_pad), np.float32)
    for b in range(num_graphs):
        m = batch_np == b
        mean_mat[b, :N][m] = 1.0 / m.sum()

    offset_np = np.full((1, G_pad), cutoff, np.float32)
    offset_np[0, :gauss] = np.linspace(0.0, cutoff, gauss)
    coeff = -0.5 / float(offset_np[0, 1] - offset_np[0, 0]) ** 2

    # Embedding table + lookup (host glue); padded node rows are zero.
    emb_table = jax.random.normal(k_emb, (100, hidden), F32)
    v_init = jnp.take(emb_table, jnp.asarray(z_np), axis=0)
    v0 = jnp.zeros((N_pad, hidden), F32).at[:N].set(v_init)

    params = make_params(k_par, num_layers, hidden, filters, gauss, G_pad,
                         H2, H2_pad, out_ch, O_pad)
    weight_keys = ("linw", "w1", "w2", "vl1w", "vl2w", "ul1w", "ul2w")
    params_dev = {k: (v.astype(BF16) if k in weight_keys else v)
                  for k, v in params.items()}

    offset_row = jnp.asarray(offset_np)
    out = schnet_pallas(jnp.asarray(dist_pad), offset_row,
                        jnp.asarray(gj, BF16), jnp.asarray(si, BF16),
                        jnp.asarray(mean_mat), v0, params_dev,
                        num_layers=num_layers, cutoff=cutoff, coeff=coeff,
                        edge_tile=TE, num_graphs=num_graphs, out_channels=out_ch)
    out = jax.block_until_ready(out)

    mean_bn = jnp.asarray(mean_mat[:num_graphs, :N])
    ref = schnet_ref(v_init, jnp.asarray(dist_np), jnp.asarray(row), jnp.asarray(col),
                     offset_row, mean_bn, params,
                     num_layers=num_layers, cutoff=cutoff, coeff=coeff)[:, :out_ch]

    # Tolerance loosened vs the old f32 kernel: MXU operands are bf16 now.
    np.testing.assert_allclose(np.asarray(out), np.asarray(ref), rtol=5e-2, atol=5e-2)
    print("KERNEL_OK")
</pallas_src>

<mosaic_0001>
module attributes {stable_mosaic.version = 11 : i64} {
  func.func @_schnet_kernel(%arg0: i32, %arg1: i32, %arg2: memref<128x1xf32, #tpu.memory_space<vmem>>, %arg3: memref<1x128xf32, #tpu.memory_space<vmem>>, %arg4: memref<128x24xbf16, #tpu.memory_space<vmem>>, %arg5: memref<24x128xbf16, #tpu.memory_space<vmem>>, %arg6: memref<8x24xf32, #tpu.memory_space<vmem>>, %arg7: memref<24x128xf32, #tpu.memory_space<vmem>>, %arg8: memref<1x128x128xbf16, #tpu.memory_space<vmem>>, %arg9: memref<1x128x128xbf16, #tpu.memory_space<vmem>>, %arg10: memref<1x1x128xf32, #tpu.memory_space<vmem>>, %arg11: memref<1x128x128xbf16, #tpu.memory_space<vmem>>, %arg12: memref<1x1x128xf32, #tpu.memory_space<vmem>>, %arg13: memref<1x128x128xbf16, #tpu.memory_space<vmem>>, %arg14: memref<1x1x128xf32, #tpu.memory_space<vmem>>, %arg15: memref<1x128x128xbf16, #tpu.memory_space<vmem>>, %arg16: memref<1x1x128xf32, #tpu.memory_space<vmem>>, %arg17: memref<128x128xbf16, #tpu.memory_space<vmem>>, %arg18: memref<1x128xf32, #tpu.memory_space<vmem>>, %arg19: memref<128x128xbf16, #tpu.memory_space<vmem>>, %arg20: memref<1x128xf32, #tpu.memory_space<vmem>>, %arg21: memref<8x128xf32, #tpu.memory_space<vmem>>, %arg22: memref<24x128xf32, #tpu.memory_space<vmem>>, %arg23: memref<24x128xbf16, #tpu.memory_space<vmem>>, %arg24: memref<24x128xf32, #tpu.memory_space<vmem>>) attributes {dimension_semantics = [#tpu.dimension_semantics<arbitrary>, #tpu.dimension_semantics<arbitrary>], iteration_bounds = array<i64: 3, 2>, scalar_prefetch = 0 : i64, scratch_operands = 3 : i64, tpu.core_type = #tpu.core_type<tc>, window_params = [{transform_indices = @transform_0, window_bounds = array<i64: 128, 1>}, {pipeline_mode = #tpu.pipeline_mode<synchronous>, transform_indices = @transform_1, window_bounds = array<i64: 1, 128>}, {transform_indices = @transform_2, window_bounds = array<i64: 128, 24>}, {transform_indices = @transform_3, window_bounds = array<i64: 24, 128>}, {pipeline_mode = #tpu.pipeline_mode<synchronous>, transform_indices = @transform_4, window_bounds = array<i64: 8, 24>}, {pipeline_mode = #tpu.pipeline_mode<synchronous>, transform_indices = @transform_5, window_bounds = array<i64: 24, 128>}, {transform_indices = @transform_6, window_bounds = array<i64: 1, 128, 128>}, {transform_indices = @transform_7, window_bounds = array<i64: 1, 128, 128>}, {transform_indices = @transform_8, window_bounds = array<i64: 1, 1, 128>}, {transform_indices = @transform_9, window_bounds = array<i64: 1, 128, 128>}, {transform_indices = @transform_10, window_bounds = array<i64: 1, 1, 128>}, {transform_indices = @transform_11, window_bounds = array<i64: 1, 128, 128>}, {transform_indices = @transform_12, window_bounds = array<i64: 1, 1, 128>}, {transform_indices = @transform_13, window_bounds = array<i64: 1, 128, 128>}, {transform_indices = @transform_14, window_bounds = array<i64: 1, 1, 128>}, {pipeline_mode = #tpu.pipeline_mode<synchronous>, transform_indices = @transform_15, window_bounds = array<i64: 128, 128>}, {pipeline_mode = #tpu.pipeline_mode<synchronous>, transform_indices = @transform_16, window_bounds = array<i64: 1, 128>}, {pipeline_mode = #tpu.pipeline_mode<synchronous>, transform_indices = @transform_17, window_bounds = array<i64: 128, 128>}, {pipeline_mode = #tpu.pipeline_mode<synchronous>, transform_indices = @transform_18, window_bounds = array<i64: 1, 128>}, {pipeline_mode = #tpu.pipeline_mode<synchronous>, transform_indices = @transform_19, window_bounds = array<i64: 8, 128>}]} {
    %c0_i32 = arith.constant 0 : i32
    %0 = arith.cmpi eq, %arg0, %c0_i32 : i32
    %c0_i32_0 = arith.constant 0 : i32
    %1 = arith.cmpi eq, %arg1, %c0_i32_0 : i32
    %2 = arith.andi %0, %1 : i1
    %3 = arith.extui %2 : i1 to i32
    %c0_i32_1 = arith.constant 0 : i32
    %4 = arith.cmpi ne, %3, %c0_i32_1 : i32
    scf.if %4 {
      %c0_42 = arith.constant 0 : index
      %c0_43 = arith.constant 0 : index
      %70 = vector.load %arg7[%c0_42, %c0_43] : memref<24x128xf32, #tpu.memory_space<vmem>>, vector<24x128xf32>
      %c0_44 = arith.constant 0 : index
      %c0_45 = arith.constant 0 : index
      %71 = vector.load %arg22[%c0_44, %c0_45] : memref<24x128xf32, #tpu.memory_space<vmem>>, vector<24x128xf32>
      tpu.vector_store %arg22[%c0_44, %c0_45], %70 {strides = array<i32>} : memref<24x128xf32, #tpu.memory_space<vmem>>, vector<24x128xf32>,
    } else {
    }
    %c0_i32_2 = arith.constant 0 : i32
    %5 = arith.cmpi eq, %arg1, %c0_i32_2 : i32
    %6 = arith.extui %5 : i1 to i32
    %c0_i32_3 = arith.constant 0 : i32
    %7 = arith.cmpi ne, %6, %c0_i32_3 : i32
    scf.if %7 {
      %c0_42 = arith.constant 0 : index
      %c0_43 = arith.constant 0 : index
      %70 = vector.load %arg22[%c0_42, %c0_43] : memref<24x128xf32, #tpu.memory_space<vmem>>, vector<24x128xf32>
      %71 = arith.truncf %70 : vector<24x128xf32> to vector<24x128xbf16>
      %c0_44 = arith.constant 0 : index
      %c0_45 = arith.constant 0 : index
      %c0_46 = arith.constant 0 : index
      %72 = vector.load %arg8[%c0_44, %c0_45, %c0_46] : memref<1x128x128xbf16, #tpu.memory_space<vmem>>, vector<1x128x128xbf16>
      %73 = vector.shape_cast %72 : vector<1x128x128xbf16> to vector<128x128xbf16>
      %cst_47 = arith.constant dense<0.000000e+00> : vector<24x128xf32>
      %74 = tpu.matmul %71, %73, %cst_47 {dimension_numbers = #tpu.dot_dimension_numbers<[1], [0], [0], [1], [0, 0, 1, 1], [], []>} : vector<24x128xbf16>, vector<128x128xbf16>, vector<24x128xf32> -> vector<24x128xf32>
      %75 = arith.truncf %74 : vector<24x128xf32> to vector<24x128xbf16>
      %c0_48 = arith.constant 0 : index
      %c0_49 = arith.constant 0 : index
      %76 = vector.load %arg23[%c0_48, %c0_49] : memref<24x128xbf16, #tpu.memory_space<vmem>>, vector<24x128xbf16>
      tpu.vector_store %arg23[%c0_48, %c0_49], %75 {strides = array<i32>} : memref<24x128xbf16, #tpu.memory_space<vmem>>, vector<24x128xbf16>,
      %cst_50 = arith.constant 0.000000e+00 : f32
      %77 = vector.broadcast %cst_50 : f32 to vector<24x128xf32>
      %c0_51 = arith.constant 0 : index
      %c0_52 = arith.constant 0 : index
      %78 = vector.load %arg24[%c0_51, %c0_52] : memref<24x128xf32, #tpu.memory_space<vmem>>, vector<24x128xf32>
      tpu.vector_store %arg24[%c0_51, %c0_52], %77 {strides = array<i32>} : memref<24x128xf32, #tpu.memory_space<vmem>>, vector<24x128xf32>,
    } else {
    }
    %c0 = arith.constant 0 : index
    %c0_4 = arith.constant 0 : index
    %8 = vector.load %arg2[%c0, %c0_4] : memref<128x1xf32, #tpu.memory_space<vmem>>, vector<128x1xf32>
    %c0_5 = arith.constant 0 : index
    %c0_6 = arith.constant 0 : index
    %9 = vector.load %arg3[%c0_5, %c0_6] : memref<1x128xf32, #tpu.memory_space<vmem>>, vector<1x128xf32>
    %10 = vector.broadcast %8 : vector<128x1xf32> to vector<128x128xf32>
    %11 = vector.broadcast %9 : vector<1x128xf32> to vector<128x128xf32>
    %12 = arith.subf %10, %11 : vector<128x128xf32>
    %cst = arith.constant -48.0199966 : f32
    %13 = vector.broadcast %cst : f32 to vector<128x128xf32>
    %14 = arith.mulf %13, %12 : vector<128x128xf32>
    %15 = arith.mulf %14, %12 : vector<128x128xf32>
    %16 = math.exp %15 : vector<128x128xf32>
    %cst_7 = arith.constant 0.628318548 : f32
    %17 = vector.broadcast %cst_7 : f32 to vector<128x1xf32>
    %18 = arith.mulf %8, %17 : vector<128x1xf32>
    %19 = math.cos %18 : vector<128x1xf32>
    %cst_8 = arith.constant 1.000000e+00 : f32
    %20 = vector.broadcast %cst_8 : f32 to vector<128x1xf32>
    %21 = arith.addf %19, %20 : vector<128x1xf32>
    %cst_9 = arith.constant 5.000000e-01 : f32
    %22 = vector.broadcast %cst_9 : f32 to vector<128x1xf32>
    %23 = arith.mulf %22, %21 : vector<128x1xf32>
    %24 = arith.truncf %16 : vector<128x128xf32> to vector<128x128xbf16>
    %c0_10 = arith.constant 0 : index
    %c0_11 = arith.constant 0 : index
    %c0_12 = arith.constant 0 : index
    %25 = vector.load %arg9[%c0_10, %c0_11, %c0_12] : memref<1x128x128xbf16, #tpu.memory_space<vmem>>, vector<1x128x128xbf16>
    %26 = vector.shape_cast %25 : vector<1x128x128xbf16> to vector<128x128xbf16>
    %cst_13 = arith.constant dense<0.000000e+00> : vector<128x128xf32>
    %27 = tpu.matmul %24, %26, %cst_13 {dimension_numbers = #tpu.dot_dimension_numbers<[1], [0], [0], [1], [0, 0, 1, 1], [], []>} : vector<128x128xbf16>, vector<128x128xbf16>, vector<128x128xf32> -> vector<128x128xf32>
    %c0_14 = arith.constant 0 : index
    %c0_15 = arith.constant 0 : index
    %c0_16 = arith.constant 0 : index
    %28 = vector.load %arg10[%c0_14, %c0_15, %c0_16] : memref<1x1x128xf32, #tpu.memory_space<vmem>>, vector<1x1x128xf32>
    %29 = vector.shape_cast %28 : vector<1x1x128xf32> to vector<1x128xf32>
    %30 = vector.broadcast %29 : vector<1x128xf32> to vector<128x128xf32>
    %31 = arith.addf %27, %30 : vector<128x128xf32>
    %cst_17 = arith.constant 0.000000e+00 : f32
    %32 = vector.broadcast %cst_17 : f32 to vector<128x128xf32>
    %33 = arith.maximumf %31, %32 : vector<128x128xf32>
    %34 = math.absf %31 : vector<128x128xf32>
    %cst_18 = arith.constant 0.000000e+00 : f32
    %35 = vector.broadcast %cst_18 : f32 to vector<128x128xf32>
    %36 = arith.subf %35, %34 : vector<128x128xf32>
    %37 = math.exp %36 : vector<128x128xf32>
    %38 = math.log1p %37 : vector<128x128xf32>
    %39 = arith.addf %33, %38 : vector<128x128xf32>
    %cst_19 = arith.constant 0.693147182 : f32
    %40 = vector.broadcast %cst_19 : f32 to vector<128x128xf32>
    %41 = arith.subf %39, %40 : vector<128x128xf32>
    %42 = arith.truncf %41 : vector<128x128xf32> to vector<128x128xbf16>
    %c0_20 = arith.constant 0 : index
    %c0_21 = arith.constant 0 : index
    %c0_22 = arith.constant 0 : index
    %43 = vector.load %arg11[%c0_20, %c0_21, %c0_22] : memref<1x128x128xbf16, #tpu.memory_space<vmem>>, vector<1x128x128xbf16>
    %44 = vector.shape_cast %43 : vector<1x128x128xbf16> to vector<128x128xbf16>
    %cst_23 = arith.constant dense<0.000000e+00> : vector<128x128xf32>
    %45 = tpu.matmul %42, %44, %cst_23 {dimension_numbers = #tpu.dot_dimension_numbers<[1], [0], [0], [1], [0, 0, 1, 1], [], []>} : vector<128x128xbf16>, vector<128x128xbf16>, vector<128x128xf32> -> vector<128x128xf32>
    %c0_24 = arith.constant 0 : index
    %c0_25 = arith.constant 0 : index
    %c0_26 = arith.constant 0 : index
    %46 = vector.load %arg12[%c0_24, %c0_25, %c0_26] : memref<1x1x128xf32, #tpu.memory_space<vmem>>, vector<1x1x128xf32>
    %47 = vector.shape_cast %46 : vector<1x1x128xf32> to vector<1x128xf32>
    %48 = vector.broadcast %47 : vector<1x128xf32> to vector<128x128xf32>
    %49 = arith.addf %45, %48 : vector<128x128xf32>
    %50 = vector.broadcast %23 : vector<128x1xf32> to vector<128x128xf32>
    %51 = arith.mulf %49, %50 : vector<128x128xf32>
    %c0_27 = arith.constant 0 : index
    %c0_28 = arith.constant 0 : index
    %52 = vector.load %arg4[%c0_27, %c0_28] : memref<128x24xbf16, #tpu.memory_space<vmem>>, vector<128x24xbf16>
    %c0_29 = arith.constant 0 : index
    %c0_30 = arith.constant 0 : index
    %53 = vector.load %arg23[%c0_29, %c0_30] : memref<24x128xbf16, #tpu.memory_space<vmem>>, vector<24x128xbf16>
    %cst_31 = arith.constant dense<0.000000e+00> : vector<128x128xf32>
    %54 = tpu.matmul %52, %53, %cst_31 {dimension_numbers = #tpu.dot_dimension_numbers<[1], [0], [0], [1], [0, 0, 1, 1], [], []>} : vector<128x24xbf16>, vector<24x128xbf16>, vector<128x128xf32> -> vector<128x128xf32>
    %55 = arith.mulf %54, %51 : vector<128x128xf32>
    %56 = arith.truncf %55 : vector<128x128xf32> to vector<128x128xbf16>
    %c0_32 = arith.constant 0 : index
    %c0_33 = arith.constant 0 : index
    %57 = vector.load %arg24[%c0_32, %c0_33] : memref<24x128xf32, #tpu.memory_space<vmem>>, vector<24x128xf32>
    %c0_34 = arith.constant 0 : index
    %c0_35 = arith.constant 0 : index
    %58 = vector.load %arg5[%c0_34, %c0_35] : memref<24x128xbf16, #tpu.memory_space<vmem>>, vector<24x128xbf16>
    %cst_36 = arith.constant dense<0.000000e+00> : vector<24x128xf32>
    %59 = tpu.matmul %58, %56, %cst_36 {dimension_numbers = #tpu.dot_dimension_numbers<[1], [0], [0], [1], [0, 0, 1, 1], [], []>} : vector<24x128xbf16>, vector<128x128xbf16>, vector<24x128xf32> -> vector<24x128xf32>
    %60 = arith.addf %57, %59 : vector<24x128xf32>
    %c0_37 = arith.constant 0 : index
    %c0_38 = arith.constant 0 : index
    %61 = vector.load %arg24[%c0_37, %c0_38] : memref<24x128xf32, #tpu.memory_space<vmem>>, vector<24x128xf32>
    tpu.vector_store %arg24[%c0_37, %c0_38], %60 {strides = array<i32>} : memref<24x128xf32, #tpu.memory_space<vmem>>, vector<24x128xf32>,
    %c1_i32 = arith.constant 1 : i32
    %62 = arith.cmpi eq, %arg1, %c1_i32 : i32
    %63 = arith.extui %62 : i1 to i32
    %c0_i32_39 = arith.constant 0 : i32
    %64 = arith.cmpi ne, %63, %c0_i32_39 : i32
    scf.if %64 {
      %c0_42 = arith.constant 0 : index
      %c0_43 = arith.constant 0 : index
      %70 = vector.load %arg24[%c0_42, %c0_43] : memref<24x128xf32, #tpu.memory_space<vmem>>, vector<24x128xf32>
      %71 = arith.truncf %70 : vector<24x128xf32> to vector<24x128xbf16>
      %c0_44 = arith.constant 0 : index
      %c0_45 = arith.constant 0 : index
      %c0_46 = arith.constant 0 : index
      %72 = vector.load %arg13[%c0_44, %c0_45, %c0_46] : memref<1x128x128xbf16, #tpu.memory_space<vmem>>, vector<1x128x128xbf16>
      %73 = vector.shape_cast %72 : vector<1x128x128xbf16> to vector<128x128xbf16>
      %cst_47 = arith.constant dense<0.000000e+00> : vector<24x128xf32>
      %74 = tpu.matmul %71, %73, %cst_47 {dimension_numbers = #tpu.dot_dimension_numbers<[1], [0], [0], [1], [0, 0, 1, 1], [], []>} : vector<24x128xbf16>, vector<128x128xbf16>, vector<24x128xf32> -> vector<24x128xf32>
      %c0_48 = arith.constant 0 : index
      %c0_49 = arith.constant 0 : index
      %c0_50 = arith.constant 0 : index
      %75 = vector.load %arg14[%c0_48, %c0_49, %c0_50] : memref<1x1x128xf32, #tpu.memory_space<vmem>>, vector<1x1x128xf32>
      %76 = vector.shape_cast %75 : vector<1x1x128xf32> to vector<1x128xf32>
      %77 = vector.broadcast %76 : vector<1x128xf32> to vector<24x128xf32>
      %78 = arith.addf %74, %77 : vector<24x128xf32>
      %cst_51 = arith.constant 0.000000e+00 : f32
      %79 = vector.broadcast %cst_51 : f32 to vector<24x128xf32>
      %80 = arith.maximumf %78, %79 : vector<24x128xf32>
      %81 = math.absf %78 : vector<24x128xf32>
      %cst_52 = arith.constant 0.000000e+00 : f32
      %82 = vector.broadcast %cst_52 : f32 to vector<24x128xf32>
      %83 = arith.subf %82, %81 : vector<24x128xf32>
      %84 = math.exp %83 : vector<24x128xf32>
      %85 = math.log1p %84 : vector<24x128xf32>
      %86 = arith.addf %80, %85 : vector<24x128xf32>
      %cst_53 = arith.constant 0.693147182 : f32
      %87 = vector.broadcast %cst_53 : f32 to vector<24x128xf32>
      %88 = arith.subf %86, %87 : vector<24x128xf32>
      %89 = arith.truncf %88 : vector<24x128xf32> to vector<24x128xbf16>
      %c0_54 = arith.constant 0 : index
      %c0_55 = arith.constant 0 : index
      %c0_56 = arith.constant 0 : index
      %90 = vector.load %arg15[%c0_54, %c0_55, %c0_56] : memref<1x128x128xbf16, #tpu.memory_space<vmem>>, vector<1x128x128xbf16>
      %91 = vector.shape_cast %90 : vector<1x128x128xbf16> to vector<128x128xbf16>
      %cst_57 = arith.constant dense<0.000000e+00> : vector<24x128xf32>
      %92 = tpu.matmul %89, %91, %cst_57 {dimension_numbers = #tpu.dot_dimension_numbers<[1], [0], [0], [1], [0, 0, 1, 1], [], []>} : vector<24x128xbf16>, vector<128x128xbf16>, vector<24x128xf32> -> vector<24x128xf32>
      %c0_58 = arith.constant 0 : index
      %c0_59 = arith.constant 0 : index
      %c0_60 = arith.constant 0 : index
      %93 = vector.load %arg16[%c0_58, %c0_59, %c0_60] : memref<1x1x128xf32, #tpu.memory_space<vmem>>, vector<1x1x128xf32>
      %94 = vector.shape_cast %93 : vector<1x1x128xf32> to vector<1x128xf32>
      %95 = vector.broadcast %94 : vector<1x128xf32> to vector<24x128xf32>
      %96 = arith.addf %92, %95 : vector<24x128xf32>
      %c0_61 = arith.constant 0 : index
      %c0_62 = arith.constant 0 : index
      %97 = vector.load %arg22[%c0_61, %c0_62] : memref<24x128xf32, #tpu.memory_space<vmem>>, vector<24x128xf32>
      %98 = arith.addf %97, %96 : vector<24x128xf32>
      %c0_63 = arith.constant 0 : index
      %c0_64 = arith.constant 0 : index
      %99 = vector.load %arg22[%c0_63, %c0_64] : memref<24x128xf32, #tpu.memory_space<vmem>>, vector<24x128xf32>
      tpu.vector_store %arg22[%c0_63, %c0_64], %98 {strides = array<i32>} : memref<24x128xf32, #tpu.memory_space<vmem>>, vector<24x128xf32>,
    } else {
    }
    %c2_i32 = arith.constant 2 : i32
    %65 = arith.cmpi eq, %arg0, %c2_i32 : i32
    %c1_i32_40 = arith.constant 1 : i32
    %66 = arith.cmpi eq, %arg1, %c1_i32_40 : i32
    %67 = arith.andi %65, %66 : i1
    %68 = arith.extui %67 : i1 to i32
    %c0_i32_41 = arith.constant 0 : i32
    %69 = arith.cmpi ne, %68, %c0_i32_41 : i32
    scf.if %69 {
      %c0_42 = arith.constant 0 : index
      %c0_43 = arith.constant 0 : index
      %70 = vector.load %arg22[%c0_42, %c0_43] : memref<24x128xf32, #tpu.memory_space<vmem>>, vector<24x128xf32>
      %71 = arith.truncf %70 : vector<24x128xf32> to vector<24x128xbf16>
      %c0_44 = arith.constant 0 : index
      %c0_45 = arith.constant 0 : index
      %72 = vector.load %arg17[%c0_44, %c0_45] : memref<128x128xbf16, #tpu.memory_space<vmem>>, vector<128x128xbf16>
      %cst_46 = arith.constant dense<0.000000e+00> : vector<24x128xf32>
      %73 = tpu.matmul %71, %72, %cst_46 {dimension_numbers = #tpu.dot_dimension_numbers<[1], [0], [0], [1], [0, 0, 1, 1], [], []>} : vector<24x128xbf16>, vector<128x128xbf16>, vector<24x128xf32> -> vector<24x128xf32>
      %c0_47 = arith.constant 0 : index
      %c0_48 = arith.constant 0 : index
      %74 = vector.load %arg18[%c0_47, %c0_48] : memref<1x128xf32, #tpu.memory_space<vmem>>, vector<1x128xf32>
      %75 = vector.broadcast %74 : vector<1x128xf32> to vector<24x128xf32>
      %76 = arith.addf %73, %75 : vector<24x128xf32>
      %cst_49 = arith.constant 0.000000e+00 : f32
      %77 = vector.broadcast %cst_49 : f32 to vector<24x128xf32>
      %78 = arith.maximumf %76, %77 : vector<24x128xf32>
      %79 = math.absf %76 : vector<24x128xf32>
      %cst_50 = arith.constant 0.000000e+00 : f32
      %80 = vector.broadcast %cst_50 : f32 to vector<24x128xf32>
      %81 = arith.subf %80, %79 : vector<24x128xf32>
      %82 = math.exp %81 : vector<24x128xf32>
      %83 = math.log1p %82 : vector<24x128xf32>
      %84 = arith.addf %78, %83 : vector<24x128xf32>
      %cst_51 = arith.constant 0.693147182 : f32
      %85 = vector.broadcast %cst_51 : f32 to vector<24x128xf32>
      %86 = arith.subf %84, %85 : vector<24x128xf32>
      %87 = arith.truncf %86 : vector<24x128xf32> to vector<24x128xbf16>
      %c0_52 = arith.constant 0 : index
      %c0_53 = arith.constant 0 : index
      %88 = vector.load %arg19[%c0_52, %c0_53] : memref<128x128xbf16, #tpu.memory_space<vmem>>, vector<128x128xbf16>
      %cst_54 = arith.constant dense<0.000000e+00> : vector<24x128xf32>
      %89 = tpu.matmul %87, %88, %cst_54 {dimension_numbers = #tpu.dot_dimension_numbers<[1], [0], [0], [1], [0, 0, 1, 1], [], []>} : vector<24x128xbf16>, vector<128x128xbf16>, vector<24x128xf32> -> vector<24x128xf32>
      %c0_55 = arith.constant 0 : index
      %c0_56 = arith.constant 0 : index
      %90 = vector.load %arg20[%c0_55, %c0_56] : memref<1x128xf32, #tpu.memory_space<vmem>>, vector<1x128xf32>
      %91 = vector.broadcast %90 : vector<1x128xf32> to vector<24x128xf32>
      %92 = arith.addf %89, %91 : vector<24x128xf32>
      %c0_57 = arith.constant 0 : index
      %c0_58 = arith.constant 0 : index
      %93 = vector.load %arg6[%c0_57, %c0_58] : memref<8x24xf32, #tpu.memory_space<vmem>>, vector<8x24xf32>
      %cst_59 = arith.constant dense<0.000000e+00> : vector<8x128xf32>
      %94 = tpu.matmul %93, %92, %cst_59 {dimension_numbers = #tpu.dot_dimension_numbers<[1], [0], [0], [1], [0, 0, 1, 1], [], []>} : vector<8x24xf32>, vector<24x128xf32>, vector<8x128xf32> -> vector<8x128xf32>
      %c0_60 = arith.constant 0 : index
      %c0_61 = arith.constant 0 : index
      %95 = vector.load %arg21[%c0_60, %c0_61] : memref<8x128xf32, #tpu.memory_space<vmem>>, vector<8x128xf32>
      tpu.vector_store %arg21[%c0_60, %c0_61], %94 {strides = array<i32>} : memref<8x128xf32, #tpu.memory_space<vmem>>, vector<8x128xf32>,
    } else {
    }
    return
  }
  func.func @transform_0(%arg0: i32, %arg1: i32) -> (i32, i32) {
    %c0_i32 = arith.constant 0 : i32
    %c0_i32_0 = arith.constant 0 : i32
    return %arg1, %c0_i32 : i32, i32
  }
  func.func @transform_1(%arg0: i32, %arg1: i32) -> (i32, i32) {
    %c0_i32 = arith.constant 0 : i32
    %c0_i32_0 = arith.constant 0 : i32
    %c0_i32_1 = arith.constant 0 : i32
    return %c0_i32, %c0_i32_0 : i32, i32
  }
  func.func @transform_2(%arg0: i32, %arg1: i32) -> (i32, i32) {
    %c0_i32 = arith.constant 0 : i32
    %c0_i32_0 = arith.constant 0 : i32
    return %arg1, %c0_i32 : i32, i32
  }
  func.func @transform_3(%arg0: i32, %arg1: i32) -> (i32, i32) {
    %c0_i32 = arith.constant 0 : i32
    %c0_i32_0 = arith.constant 0 : i32
    return %c0_i32, %arg1 : i32, i32
  }
  func.func @transform_4(%arg0: i32, %arg1: i32) -> (i32, i32) {
    %c0_i32 = arith.constant 0 : i32
    %c0_i32_0 = arith.constant 0 : i32
    %c0_i32_1 = arith.constant 0 : i32
    return %c0_i32, %c0_i32_0 : i32, i32
  }
  func.func @transform_5(%arg0: i32, %arg1: i32) -> (i32, i32) {
    %c0_i32 = arith.constant 0 : i32
    %c0_i32_0 = arith.constant 0 : i32
    %c0_i32_1 = arith.constant 0 : i32
    return %c0_i32, %c0_i32_0 : i32, i32
  }
  func.func @transform_6(%arg0: i32, %arg1: i32) -> (i32, i32, i32) {
    %c0_i32 = arith.constant 0 : i32
    %c0_i32_0 = arith.constant 0 : i32
    %c0_i32_1 = arith.constant 0 : i32
    return %arg0, %c0_i32, %c0_i32_0 : i32, i32, i32
  }
  func.func @transform_7(%arg0: i32, %arg1: i32) -> (i32, i32, i32) {
    %c0_i32 = arith.constant 0 : i32
    %c0_i32_0 = arith.constant 0 : i32
    %c0_i32_1 = arith.constant 0 : i32
    return %arg0, %c0_i32, %c0_i32_0 : i32, i32, i32
  }
  func.func @transform_8(%arg0: i32, %arg1: i32) -> (i32, i32, i32) {
    %c0_i32 = arith.constant 0 : i32
    %c0_i32_0 = arith.constant 0 : i32
    %c0_i32_1 = arith.constant 0 : i32
    return %arg0, %c0_i32, %c0_i32_0 : i32, i32, i32
  }
  func.func @transform_9(%arg0: i32, %arg1: i32) -> (i32, i32, i32) {
    %c0_i32 = arith.constant 0 : i32
    %c0_i32_0 = arith.constant 0 : i32
    %c0_i32_1 = arith.constant 0 : i32
    return %arg0, %c0_i32, %c0_i32_0 : i32, i32, i32
  }
  func.func @transform_10(%arg0: i32, %arg1: i32) -> (i32, i32, i32) {
    %c0_i32 = arith.constant 0 : i32
    %c0_i32_0 = arith.constant 0 : i32
    %c0_i32_1 = arith.constant 0 : i32
    return %arg0, %c0_i32, %c0_i32_0 : i32, i32, i32
  }
  func.func @transform_11(%arg0: i32, %arg1: i32) -> (i32, i32, i32) {
    %c0_i32 = arith.constant 0 : i32
    %c0_i32_0 = arith.constant 0 : i32
    %c0_i32_1 = arith.constant 0 : i32
    return %arg0, %c0_i32, %c0_i32_0 : i32, i32, i32
  }
  func.func @transform_12(%arg0: i32, %arg1: i32) -> (i32, i32, i32) {
    %c0_i32 = arith.constant 0 : i32
    %c0_i32_0 = arith.constant 0 : i32
    %c0_i32_1 = arith.constant 0 : i32
    return %arg0, %c0_i32, %c0_i32_0 : i32, i32, i32
  }
  func.func @transform_13(%arg0: i32, %arg1: i32) -> (i32, i32, i32) {
    %c0_i32 = arith.constant 0 : i32
    %c0_i32_0 = arith.constant 0 : i32
    %c0_i32_1 = arith.constant 0 : i32
    return %arg0, %c0_i32, %c0_i32_0 : i32, i32, i32
  }
  func.func @transform_14(%arg0: i32, %arg1: i32) -> (i32, i32, i32) {
    %c0_i32 = arith.constant 0 : i32
    %c0_i32_0 = arith.constant 0 : i32
    %c0_i32_1 = arith.constant 0 : i32
    return %arg0, %c0_i32, %c0_i32_0 : i32, i32, i32
  }
  func.func @transform_15(%arg0: i32, %arg1: i32) -> (i32, i32) {
    %c0_i32 = arith.constant 0 : i32
    %c0_i32_0 = arith.constant 0 : i32
    %c0_i32_1 = arith.constant 0 : i32
    return %c0_i32, %c0_i32_0 : i32, i32
  }
  func.func @transform_16(%arg0: i32, %arg1: i32) -> (i32, i32) {
    %c0_i32 = arith.constant 0 : i32
    %c0_i32_0 = arith.constant 0 : i32
    %c0_i32_1 = arith.constant 0 : i32
    return %c0_i32, %c0_i32_0 : i32, i32
  }
  func.func @transform_17(%arg0: i32, %arg1: i32) -> (i32, i32) {
    %c0_i32 = arith.constant 0 : i32
    %c0_i32_0 = arith.constant 0 : i32
    %c0_i32_1 = arith.constant 0 : i32
    return %c0_i32, %c0_i32_0 : i32, i32
  }
  func.func @transform_18(%arg0: i32, %arg1: i32) -> (i32, i32) {
    %c0_i32 = arith.constant 0 : i32
    %c0_i32_0 = arith.constant 0 : i32
    %c0_i32_1 = arith.constant 0 : i32
    return %c0_i32, %c0_i32_0 : i32, i32
  }
  func.func @transform_19(%arg0: i32, %arg1: i32) -> (i32, i32) {
    %c0_i32 = arith.constant 0 : i32
    %c0_i32_0 = arith.constant 0 : i32
    %c0_i32_1 = arith.constant 0 : i32
    return %c0_i32, %c0_i32_0 : i32, i32
  }
}

</mosaic_0001>

<llo_original>
// kernel: tpu_custom_call.1
$region0: #{tpu_custom_call.1}
  #allocation0 [shape = 'u32[]', space=smem, size = 0x4, offset = 0x4, fixed_abs, tag = 'smem constant byte address 0x4 - core index']
  #allocation1 [shape = 'u32[144,128]{1,0:T(1,128)}', space=vmem, size = 0x12000, scoped, tag = 'internal scratch']
  #allocation2 [shape = 'f32[24,128]{1,0:T(8,128)}', space=vmem, size = 0x3000, scoped, tag = 'scratch operand']
  #allocation3 [shape = 'bf16[24,128]{1,0:T(8,128)(2,1)}', space=vmem, size = 0x1800, scoped, tag = 'scratch operand']
  #allocation4 [shape = 'f32[24,128]{1,0:T(8,128)}', space=vmem, size = 0x3000, scoped, tag = 'scratch operand']
  %s0 = inlined_call_operand.vmem [shape: f32[256,1], index: 0, kind: input, shape index: {}]
  %s1 = inlined_call_operand.vmem [shape: f32[1,128], index: 1, kind: input, shape index: {}]
  %s2 = inlined_call_operand.vmem [shape: bf16[256,24], index: 2, kind: input, shape index: {}]
  %s3 = inlined_call_operand.hbm [shape: bf16[24,256], index: 3, kind: input, shape index: {}]
  %s4 = inlined_call_operand.hbm [shape: f32[8,24], index: 4, kind: input, shape index: {}]
  %s5 = inlined_call_operand.hbm [shape: f32[24,128], index: 5, kind: input, shape index: {}]
  %s6 = inlined_call_operand.vmem [shape: bf16[3,128,128], index: 6, kind: input, shape index: {}]
  %s7 = inlined_call_operand.vmem [shape: bf16[3,128,128], index: 7, kind: input, shape index: {}]
  %s8 = inlined_call_operand.vmem [shape: f32[3,1,128], index: 8, kind: input, shape index: {}]
  %s9 = inlined_call_operand.hbm [shape: bf16[3,128,128], index: 9, kind: input, shape index: {}]
  %s10 = inlined_call_operand.vmem [shape: f32[3,1,128], index: 10, kind: input, shape index: {}]
  %s11 = inlined_call_operand.hbm [shape: bf16[3,128,128], index: 11, kind: input, shape index: {}]
  %s12 = inlined_call_operand.hbm [shape: f32[3,1,128], index: 12, kind: input, shape index: {}]
  %s13 = inlined_call_operand.hbm [shape: bf16[3,128,128], index: 13, kind: input, shape index: {}]
  %s14 = inlined_call_operand.vmem [shape: f32[3,1,128], index: 14, kind: input, shape index: {}]
  %s15 = inlined_call_operand.vmem [shape: bf16[128,128], index: 15, kind: input, shape index: {}]
  %s16 = inlined_call_operand.vmem [shape: f32[1,128], index: 16, kind: input, shape index: {}]
  %s17 = inlined_call_operand.hbm [shape: bf16[128,128], index: 17, kind: input, shape index: {}]
  %s18 = inlined_call_operand.vmem [shape: f32[1,128], index: 18, kind: input, shape index: {}]
  %s19 = inlined_call_operand.hbm [shape: f32[8,128], index: 19, kind: output, shape index: {}]
  %s20 = sld [smem:[#allocation0]]
  $region157: #{tpu_custom_call.1} parent=0
    _
  %s22 = ssub.s32 1, %s20
  %s23 = scalar_select 0, %s22, %s20
  $region1: #{tpu_custom_call.1} parent=0
    #allocation5 [shape = 'u8[12288]{0}', space=vmem, size = 0x3000, scoped, tag = 'input window, operand 3']
    #allocation6 [shape = 's32[2]{0}', space=sflag, size = 0x8, scoped, tag = 'scoped memory for tpu_custom_call.1']
    #allocation7 [shape = 's32[2]{0}', space=sflag, size = 0x8, scoped, tag = 'scoped memory for tpu_custom_call.1']
    #allocation8 [shape = 'u8[4096]{0}', space=vmem, size = 0x1000, scoped, tag = 'input window, operand 4, single buffered']
    #allocation9 [shape = 's32[1]{0}', space=sflag, size = 0x4, scoped, tag = 'scoped memory for tpu_custom_call.1']
    #allocation10 [shape = 'u8[12288]{0}', space=vmem, size = 0x3000, scoped, tag = 'input window, operand 5, single buffered']
    #allocation11 [shape = 'u8[65536]{0}', space=vmem, size = 0x10000, scoped, tag = 'input window, operand 9']
    #allocation12 [shape = 's32[2]{0}', space=sflag, size = 0x8, scoped, tag = 'scoped memory for tpu_custom_call.1']
    #allocation13 [shape = 'u8[65536]{0}', space=vmem, size = 0x10000, scoped, tag = 'input window, operand 11']
    #allocation14 [shape = 'u8[1024]{0}', space=vmem, size = 0x400, scoped, tag = 'input window, operand 12']
    #allocation15 [shape = 's32[2]{0}', space=sflag, size = 0x8, scoped, tag = 'scoped memory for tpu_custom_call.1']
    #allocation16 [shape = 'u8[65536]{0}', space=vmem, size = 0x10000, scoped, tag = 'input window, operand 13']
    #allocation17 [shape = 'u8[32768]{0}', space=vmem, size = 0x8000, scoped, tag = 'input window, operand 17, single buffered']
    #allocation18 [shape = 's32[1]{0}', space=sflag, size = 0x4, scoped, tag = 'scoped memory for tpu_custom_call.1']
    #allocation19 [shape = 'u8[4096]{0}', space=vmem, size = 0x1000, scoped, tag = 'output window, operand 0, single buffered']
    %24 = vsyncpa [#allocation6], 0
    %s25 = scalar_lea.sflag [#allocation6], 1
    %26 = vsyncpa %s25, 0
    %27 = vsyncpa [#allocation9], 0
    %28 = vsyncpa [#allocation12], 0
    %s29 = scalar_lea.sflag [#allocation12], 1
    %30 = vsyncpa %s29, 0
    %31 = vsyncpa [#allocation15], 0
    %s32 = scalar_lea.sflag [#allocation15], 1
    %33 = vsyncpa %s32, 0
    %34 = vsyncpa [#allocation18], 0
    %35 = vsyncpa [#allocation7], 0
    loop: start=0, step=1, limit=8
    $region2: #{tpu_custom_call.1} parent=1 // loop_pre_header
      _
    $region3: #{tpu_custom_call.1} parent=1 // loop_header
      %s37 = sphi 0, %s41
      %p38 = scmp.ge.s32.totalorder %s37, 8
      %s44 = sphi 0, %s56
      %s45 = sphi 0, %s52
      %s46 = sphi 0, %s44
      %s47 = sphi 0, %s45
      %s48 = sphi 0, %s46
      %s49 = sphi 0, %s47
      %s59 = sphi 0, %s61
      %s62 = sphi 0, %s59
      %s63 = sphi 0, %s62
      %s79 = sphi 0, %s63
      %s83 = sphi 0, %s83
      %s85 = sphi 0, %s83
      %s86 = sphi 0, %s85
      %s100 = sphi 0, %s86
      %s106 = sphi 0, %s108
      %s109 = sphi 0, %s106
      %s110 = sphi 0, %s109
      %s126 = sphi 0, %s110
      %s132 = sphi 0, %s134
      %s135 = sphi 0, %s132
      %s136 = sphi 0, %s135
      %s152 = sphi 0, %s136
      %s156 = sphi 0, %s156
      %s158 = sphi 0, %s156
      %s159 = sphi 0, %s158
      %s173 = sphi 0, %s159
      %s177 = sphi 0, %s177
      %s179 = sphi 0, %s177
      %s180 = sphi 0, %s179
      %s194 = sphi 0, %s180
      %s200 = sphi 0, %s202
      %s203 = sphi 0, %s200
      %s204 = sphi 0, %s203
      %s220 = sphi 0, %s204
      %s226 = sphi 0, %s228
      %s229 = sphi 0, %s226
      %s230 = sphi 0, %s229
      %s246 = sphi 0, %s230
      %s252 = sphi 0, %s254
      %s255 = sphi 0, %s252
      %s256 = sphi 0, %s255
      %s272 = sphi 0, %s256
      %s278 = sphi 0, %s280
      %s281 = sphi 0, %s278
      %s282 = sphi 0, %s281
      %s298 = sphi 0, %s282
      %s304 = sphi 0, %s306
      %s307 = sphi 0, %s304
      %s308 = sphi 0, %s307
      %s324 = sphi 0, %s308
      %s330 = sphi 0, %s332
      %s333 = sphi 0, %s330
      %s334 = sphi 0, %s333
      %s350 = sphi 0, %s334
      %s356 = sphi 0, %s358
      %s359 = sphi 0, %s356
      %s360 = sphi 0, %s359
      %s376 = sphi 0, %s360
      %s382 = sphi 0, %s384
      %s385 = sphi 0, %s382
      %s386 = sphi 0, %s385
      %s402 = sphi 0, %s386
      %s408 = sphi 0, %s410
      %s411 = sphi 0, %s408
      %s412 = sphi 0, %s411
      %s428 = sphi 0, %s412
      %s432 = sphi 0, %s432
      %s434 = sphi 0, %s432
      %s435 = sphi 0, %s434
      %s449 = sphi 0, %s435
      %s453 = sphi 0, %s453
      %s455 = sphi 0, %s453
      %s456 = sphi 0, %s455
      %s470 = sphi 0, %s456
      %s474 = sphi 0, %s474
      %s476 = sphi 0, %s474
      %s477 = sphi 0, %s476
      %s491 = sphi 0, %s477
      %s495 = sphi 0, %s495
      %s497 = sphi 0, %s495
      %s498 = sphi 0, %s497
      %s512 = sphi 0, %s498
      %s516 = sphi 0, %s516
      %s518 = sphi 0, %s516
      %s519 = sphi 0, %s518
      %s533 = sphi 0, %s519
    $region4: #{tpu_custom_call.1} parent=1 // loop_header_branch
      %40 = sbr.rel (%p38) target = $region8
    $region5: #{tpu_custom_call.1} parent=1 // loop_body
      %s42 = ssub.s32 %s37, 1
      %s43 = ssub.s32 %s37, 2
      %s50 = sadd.s32 1, %s45
      %p51 = scmp.ge.s32.totalorder %s50, 2
      %s52 = scalar_select %p51, 0, %s50
      %s53 = sadd.s32 1, %s44
      %s54 = scalar_select %p51, %s53, %s44
      %p55 = scmp.ge.s32.totalorder %s54, 3
      %s56 = scalar_select %p55, 0, %s54
      %s57 = ssub.s32 %s45, %s52
      %p58 = scmp.eq.s32.totalorder %s57, 0
      %s60 = sadd.s32 %s59, 1
      %s61 = scalar_select %p58, %s59, %s60
      %p64 = pneg %p58
      %p65 = scmp.eq.s32.totalorder %s37, 5
      %p66 = por %p64, %p65
      %p67 = scmp.ne.s32.totalorder %s59, %s62
      %p68 = scmp.eq.s32.totalorder %s37, 0
      %p69 = por %p67, %p68
      %p70 = scmp.ne.s32.totalorder %s59, %s62
      %p71 = scmp.eq.s32.totalorder %s42, 5
      %p72 = por %p70, %p71
      %p73 = scmp.ne.s32.totalorder %s62, %s63
      %p74 = scmp.eq.s32.totalorder %s42, 0
      %p75 = por %p73, %p74
      %p76 = scmp.ne.s32.totalorder %s62, %s63
      %p77 = scmp.eq.s32.totalorder %s43, 5
      %p78 = por %p76, %p77
      %p80 = scmp.ne.s32.totalorder %s63, %s79
      %p81 = scmp.eq.s32.totalorder %s43, 0
      %p82 = por %p80, %p81
      %s84 = sadd.s32 %s83, 1
      %p87 = scmp.eq.s32.totalorder %s37, 5
      %p88 = scmp.ne.s32.totalorder %s83, %s85
      %p89 = scmp.eq.s32.totalorder %s37, 0
      %p90 = por %p88, %p89
      %p91 = scmp.ne.s32.totalorder %s83, %s85
      %p92 = scmp.eq.s32.totalorder %s42, 5
      %p93 = por %p91, %p92
      %p94 = scmp.ne.s32.totalorder %s85, %s86
      %p95 = scmp.eq.s32.totalorder %s42, 0
      %p96 = por %p94, %p95
      %p97 = scmp.ne.s32.totalorder %s85, %s86
      %p98 = scmp.eq.s32.totalorder %s43, 5
      %p99 = por %p97, %p98
      %p101 = scmp.ne.s32.totalorder %s86, %s100
      %p102 = scmp.eq.s32.totalorder %s43, 0
      %p103 = por %p101, %p102
      %s104 = ssub.s32 %s45, %s52
      %p105 = scmp.eq.s32.totalorder %s104, 0
      %s107 = sadd.s32 %s106, 1
      %s108 = scalar_select %p105, %s106, %s107
      %p111 = pneg %p105
      %p112 = scmp.eq.s32.totalorder %s37, 5
      %p113 = por %p111, %p112
      %p114 = scmp.ne.s32.totalorder %s106, %s109
      %p115 = scmp.eq.s32.totalorder %s37, 0
      %p116 = por %p114, %p115
      %p117 = scmp.ne.s32.totalorder %s106, %s109
      %p118 = scmp.eq.s32.totalorder %s42, 5
      %p119 = por %p117, %p118
      %p120 = scmp.ne.s32.totalorder %s109, %s110
      %p121 = scmp.eq.s32.totalorder %s42, 0
      %p122 = por %p120, %p121
      %p123 = scmp.ne.s32.totalorder %s109, %s110
      %p124 = scmp.eq.s32.totalorder %s43, 5
      %p125 = por %p123, %p124
      %p127 = scmp.ne.s32.totalorder %s110, %s126
      %p128 = scmp.eq.s32.totalorder %s43, 0
      %p129 = por %p127, %p128
      %s130 = ssub.s32 %s45, %s52
      %p131 = scmp.eq.s32.totalorder %s130, 0
      %s133 = sadd.s32 %s132, 1
      %s134 = scalar_select %p131, %s132, %s133
      %p137 = pneg %p131
      %p138 = scmp.eq.s32.totalorder %s37, 5
      %p139 = por %p137, %p138
      %p140 = scmp.ne.s32.totalorder %s132, %s135
      %p141 = scmp.eq.s32.totalorder %s37, 0
      %p142 = por %p140, %p141
      %p143 = scmp.ne.s32.totalorder %s132, %s135
      %p144 = scmp.eq.s32.totalorder %s42, 5
      %p145 = por %p143, %p144
      %p146 = scmp.ne.s32.totalorder %s135, %s136
      %p147 = scmp.eq.s32.totalorder %s42, 0
      %p148 = por %p146, %p147
      %p149 = scmp.ne.s32.totalorder %s135, %s136
      %p150 = scmp.eq.s32.totalorder %s43, 5
      %p151 = por %p149, %p150
      %p153 = scmp.ne.s32.totalorder %s136, %s152
      %p154 = scmp.eq.s32.totalorder %s43, 0
      %p155 = por %p153, %p154
      %s157 = sadd.s32 %s156, 1
      %p160 = scmp.eq.s32.totalorder %s37, 5
      %p161 = scmp.ne.s32.totalorder %s156, %s158
      %p162 = scmp.eq.s32.totalorder %s37, 0
      %p163 = por %p161, %p162
      %p164 = scmp.ne.s32.totalorder %s156, %s158
      %p165 = scmp.eq.s32.totalorder %s42, 5
      %p166 = por %p164, %p165
      %p167 = scmp.ne.s32.totalorder %s158, %s159
      %p168 = scmp.eq.s32.totalorder %s42, 0
      %p169 = por %p167, %p168
      %p170 = scmp.ne.s32.totalorder %s158, %s159
      %p171 = scmp.eq.s32.totalorder %s43, 5
      %p172 = por %p170, %p171
      %p174 = scmp.ne.s32.totalorder %s159, %s173
      %p175 = scmp.eq.s32.totalorder %s43, 0
      %p176 = por %p174, %p175
      %s178 = sadd.s32 %s177, 1
      %p181 = scmp.eq.s32.totalorder %s37, 5
      %p182 = scmp.ne.s32.totalorder %s177, %s179
      %p183 = scmp.eq.s32.totalorder %s37, 0
      %p184 = por %p182, %p183
      %p185 = scmp.ne.s32.totalorder %s177, %s179
      %p186 = scmp.eq.s32.totalorder %s42, 5
      %p187 = por %p185, %p186
      %p188 = scmp.ne.s32.totalorder %s179, %s180
      %p189 = scmp.eq.s32.totalorder %s42, 0
      %p190 = por %p188, %p189
      %p191 = scmp.ne.s32.totalorder %s179, %s180
      %p192 = scmp.eq.s32.totalorder %s43, 5
      %p193 = por %p191, %p192
      %p195 = scmp.ne.s32.totalorder %s180, %s194
      %p196 = scmp.eq.s32.totalorder %s43, 0
      %p197 = por %p195, %p196
      %s198 = ssub.s32 %s44, %s56
      %p199 = scmp.eq.s32.totalorder %s198, 0
      %s201 = sadd.s32 %s200, 1
      %s202 = scalar_select %p199, %s200, %s201
      %p205 = pneg %p199
      %p206 = scmp.eq.s32.totalorder %s37, 5
      %p207 = por %p205, %p206
      %p208 = scmp.ne.s32.totalorder %s200, %s203
      %p209 = scmp.eq.s32.totalorder %s37, 0
      %p210 = por %p208, %p209
      %p211 = scmp.ne.s32.totalorder %s200, %s203
      %p212 = scmp.eq.s32.totalorder %s42, 5
      %p213 = por %p211, %p212
      %p214 = scmp.ne.s32.totalorder %s203, %s204
      %p215 = scmp.eq.s32.totalorder %s42, 0
      %p216 = por %p214, %p215
      %p217 = scmp.ne.s32.totalorder %s203, %s204
      %p218 = scmp.eq.s32.totalorder %s43, 5
      %p219 = por %p217, %p218
      %p221 = scmp.ne.s32.totalorder %s204, %s220
      %p222 = scmp.eq.s32.totalorder %s43, 0
      %p223 = por %p221, %p222
      %s224 = ssub.s32 %s44, %s56
      %p225 = scmp.eq.s32.totalorder %s224, 0
      %s227 = sadd.s32 %s226, 1
      %s228 = scalar_select %p225, %s226, %s227
      %p231 = pneg %p225
      %p232 = scmp.eq.s32.totalorder %s37, 5
      %p233 = por %p231, %p232
      %p234 = scmp.ne.s32.totalorder %s226, %s229
      %p235 = scmp.eq.s32.totalorder %s37, 0
      %p236 = por %p234, %p235
      %p237 = scmp.ne.s32.totalorder %s226, %s229
      %p238 = scmp.eq.s32.totalorder %s42, 5
      %p239 = por %p237, %p238
      %p240 = scmp.ne.s32.totalorder %s229, %s230
      %p241 = scmp.eq.s32.totalorder %s42, 0
      %p242 = por %p240, %p241
      %p243 = scmp.ne.s32.totalorder %s229, %s230
      %p244 = scmp.eq.s32.totalorder %s43, 5
      %p245 = por %p243, %p244
      %p247 = scmp.ne.s32.totalorder %s230, %s246
      %p248 = scmp.eq.s32.totalorder %s43, 0
      %p249 = por %p247, %p248
      %s250 = ssub.s32 %s44, %s56
      %p251 = scmp.eq.s32.totalorder %s250, 0
      %s253 = sadd.s32 %s252, 1
      %s254 = scalar_select %p251, %s252, %s253
      %p257 = pneg %p251
      %p258 = scmp.eq.s32.totalorder %s37, 5
      %p259 = por %p257, %p258
      %p260 = scmp.ne.s32.totalorder %s252, %s255
      %p261 = scmp.eq.s32.totalorder %s37, 0
      %p262 = por %p260, %p261
      %p263 = scmp.ne.s32.totalorder %s252, %s255
      %p264 = scmp.eq.s32.totalorder %s42, 5
      %p265 = por %p263, %p264
      %p266 = scmp.ne.s32.totalorder %s255, %s256
      %p267 = scmp.eq.s32.totalorder %s42, 0
      %p268 = por %p266, %p267
      %p269 = scmp.ne.s32.totalorder %s255, %s256
      %p270 = scmp.eq.s32.totalorder %s43, 5
      %p271 = por %p269, %p270
      %p273 = scmp.ne.s32.totalorder %s256, %s272
      %p274 = scmp.eq.s32.totalorder %s43, 0
      %p275 = por %p273, %p274
      %s276 = ssub.s32 %s44, %s56
      %p277 = scmp.eq.s32.totalorder %s276, 0
      %s279 = sadd.s32 %s278, 1
      %s280 = scalar_select %p277, %s278, %s279
      %p283 = pneg %p277
      %p284 = scmp.eq.s32.totalorder %s37, 5
      %p285 = por %p283, %p284
      %p286 = scmp.ne.s32.totalorder %s278, %s281
      %p287 = scmp.eq.s32.totalorder %s37, 0
      %p288 = por %p286, %p287
      %p289 = scmp.ne.s32.totalorder %s278, %s281
      %p290 = scmp.eq.s32.totalorder %s42, 5
      %p291 = por %p289, %p290
      %p292 = scmp.ne.s32.totalorder %s281, %s282
      %p293 = scmp.eq.s32.totalorder %s42, 0
      %p294 = por %p292, %p293
      %p295 = scmp.ne.s32.totalorder %s281, %s282
      %p296 = scmp.eq.s32.totalorder %s43, 5
      %p297 = por %p295, %p296
      %p299 = scmp.ne.s32.totalorder %s282, %s298
      %p300 = scmp.eq.s32.totalorder %s43, 0
      %p301 = por %p299, %p300
      %s302 = ssub.s32 %s44, %s56
      %p303 = scmp.eq.s32.totalorder %s302, 0
      %s305 = sadd.s32 %s304, 1
      %s306 = scalar_select %p303, %s304, %s305
      %p309 = pneg %p303
      %p310 = scmp.eq.s32.totalorder %s37, 5
      %p311 = por %p309, %p310
      %p312 = scmp.ne.s32.totalorder %s304, %s307
      %p313 = scmp.eq.s32.totalorder %s37, 0
      %p314 = por %p312, %p313
      %p315 = scmp.ne.s32.totalorder %s304, %s307
      %p316 = scmp.eq.s32.totalorder %s42, 5
      %p317 = por %p315, %p316
      %p318 = scmp.ne.s32.totalorder %s307, %s308
      %p319 = scmp.eq.s32.totalorder %s42, 0
      %p320 = por %p318, %p319
      %p321 = scmp.ne.s32.totalorder %s307, %s308
      %p322 = scmp.eq.s32.totalorder %s43, 5
      %p323 = por %p321, %p322
      %p325 = scmp.ne.s32.totalorder %s308, %s324
      %p326 = scmp.eq.s32.totalorder %s43, 0
      %p327 = por %p325, %p326
      %s328 = ssub.s32 %s44, %s56
      %p329 = scmp.eq.s32.totalorder %s328, 0
      %s331 = sadd.s32 %s330, 1
      %s332 = scalar_select %p329, %s330, %s331
      %p335 = pneg %p329
      %p336 = scmp.eq.s32.totalorder %s37, 5
      %p337 = por %p335, %p336
      %p338 = scmp.ne.s32.totalorder %s330, %s333
      %p339 = scmp.eq.s32.totalorder %s37, 0
      %p340 = por %p338, %p339
      %p341 = scmp.ne.s32.totalorder %s330, %s333
      %p342 = scmp.eq.s32.totalorder %s42, 5
      %p343 = por %p341, %p342
      %p344 = scmp.ne.s32.totalorder %s333, %s334
      %p345 = scmp.eq.s32.totalorder %s42, 0
      %p346 = por %p344, %p345
      %p347 = scmp.ne.s32.totalorder %s333, %s334
      %p348 = scmp.eq.s32.totalorder %s43, 5
      %p349 = por %p347, %p348
      %p351 = scmp.ne.s32.totalorder %s334, %s350
      %p352 = scmp.eq.s32.totalorder %s43, 0
      %p353 = por %p351, %p352
      %s354 = ssub.s32 %s44, %s56
      %p355 = scmp.eq.s32.totalorder %s354, 0
      %s357 = sadd.s32 %s356, 1
      %s358 = scalar_select %p355, %s356, %s357
      %p361 = pneg %p355
      %p362 = scmp.eq.s32.totalorder %s37, 5
      %p363 = por %p361, %p362
      %p364 = scmp.ne.s32.totalorder %s356, %s359
      %p365 = scmp.eq.s32.totalorder %s37, 0
      %p366 = por %p364, %p365
      %p367 = scmp.ne.s32.totalorder %s356, %s359
      %p368 = scmp.eq.s32.totalorder %s42, 5
      %p369 = por %p367, %p368
      %p370 = scmp.ne.s32.totalorder %s359, %s360
      %p371 = scmp.eq.s32.totalorder %s42, 0
      %p372 = por %p370, %p371
      %p373 = scmp.ne.s32.totalorder %s359, %s360
      %p374 = scmp.eq.s32.totalorder %s43, 5
      %p375 = por %p373, %p374
      %p377 = scmp.ne.s32.totalorder %s360, %s376
      %p378 = scmp.eq.s32.totalorder %s43, 0
      %p379 = por %p377, %p378
      %s380 = ssub.s32 %s44, %s56
      %p381 = scmp.eq.s32.totalorder %s380, 0
      %s383 = sadd.s32 %s382, 1
      %s384 = scalar_select %p381, %s382, %s383
      %p387 = pneg %p381
      %p388 = scmp.eq.s32.totalorder %s37, 5
      %p389 = por %p387, %p388
      %p390 = scmp.ne.s32.totalorder %s382, %s385
      %p391 = scmp.eq.s32.totalorder %s37, 0
      %p392 = por %p390, %p391
      %p393 = scmp.ne.s32.totalorder %s382, %s385
      %p394 = scmp.eq.s32.totalorder %s42, 5
      %p395 = por %p393, %p394
      %p396 = scmp.ne.s32.totalorder %s385, %s386
      %p397 = scmp.eq.s32.totalorder %s42, 0
      %p398 = por %p396, %p397
      %p399 = scmp.ne.s32.totalorder %s385, %s386
      %p400 = scmp.eq.s32.totalorder %s43, 5
      %p401 = por %p399, %p400
      %p403 = scmp.ne.s32.totalorder %s386, %s402
      %p404 = scmp.eq.s32.totalorder %s43, 0
      %p405 = por %p403, %p404
      %s406 = ssub.s32 %s44, %s56
      %p407 = scmp.eq.s32.totalorder %s406, 0
      %s409 = sadd.s32 %s408, 1
      %s410 = scalar_select %p407, %s408, %s409
      %p413 = pneg %p407
      %p414 = scmp.eq.s32.totalorder %s37, 5
      %p415 = por %p413, %p414
      %p416 = scmp.ne.s32.totalorder %s408, %s411
      %p417 = scmp.eq.s32.totalorder %s37, 0
      %p418 = por %p416, %p417
      %p419 = scmp.ne.s32.totalorder %s408, %s411
      %p420 = scmp.eq.s32.totalorder %s42, 5
      %p421 = por %p419, %p420
      %p422 = scmp.ne.s32.totalorder %s411, %s412
      %p423 = scmp.eq.s32.totalorder %s42, 0
      %p424 = por %p422, %p423
      %p425 = scmp.ne.s32.totalorder %s411, %s412
      %p426 = scmp.eq.s32.totalorder %s43, 5
      %p427 = por %p425, %p426
      %p429 = scmp.ne.s32.totalorder %s412, %s428
      %p430 = scmp.eq.s32.totalorder %s43, 0
      %p431 = por %p429, %p430
      %s433 = sadd.s32 %s432, 1
      %p436 = scmp.eq.s32.totalorder %s37, 5
      %p437 = scmp.ne.s32.totalorder %s432, %s434
      %p438 = scmp.eq.s32.totalorder %s37, 0
      %p439 = por %p437, %p438
      %p440 = scmp.ne.s32.totalorder %s432, %s434
      %p441 = scmp.eq.s32.totalorder %s42, 5
      %p442 = por %p440, %p441
      %p443 = scmp.ne.s32.totalorder %s434, %s435
      %p444 = scmp.eq.s32.totalorder %s42, 0
      %p445 = por %p443, %p444
      %p446 = scmp.ne.s32.totalorder %s434, %s435
      %p447 = scmp.eq.s32.totalorder %s43, 5
      %p448 = por %p446, %p447
      %p450 = scmp.ne.s32.totalorder %s435, %s449
      %p451 = scmp.eq.s32.totalorder %s43, 0
      %p452 = por %p450, %p451
      %s454 = sadd.s32 %s453, 1
      %p457 = scmp.eq.s32.totalorder %s37, 5
      %p458 = scmp.ne.s32.totalorder %s453, %s455
      %p459 = scmp.eq.s32.totalorder %s37, 0
      %p460 = por %p458, %p459
      %p461 = scmp.ne.s32.totalorder %s453, %s455
      %p462 = scmp.eq.s32.totalorder %s42, 5
      %p463 = por %p461, %p462
      %p464 = scmp.ne.s32.totalorder %s455, %s456
      %p465 = scmp.eq.s32.totalorder %s42, 0
      %p466 = por %p464, %p465
      %p467 = scmp.ne.s32.totalorder %s455, %s456
      %p468 = scmp.eq.s32.totalorder %s43, 5
      %p469 = por %p467, %p468
      %p471 = scmp.ne.s32.totalorder %s456, %s470
      %p472 = scmp.eq.s32.totalorder %s43, 0
      %p473 = por %p471, %p472
      %s475 = sadd.s32 %s474, 1
      %p478 = scmp.eq.s32.totalorder %s37, 5
      %p479 = scmp.ne.s32.totalorder %s474, %s476
      %p480 = scmp.eq.s32.totalorder %s37, 0
      %p481 = por %p479, %p480
      %p482 = scmp.ne.s32.totalorder %s474, %s476
      %p483 = scmp.eq.s32.totalorder %s42, 5
      %p484 = por %p482, %p483
      %p485 = scmp.ne.s32.totalorder %s476, %s477
      %p486 = scmp.eq.s32.totalorder %s42, 0
      %p487 = por %p485, %p486
      %p488 = scmp.ne.s32.totalorder %s476, %s477
      %p489 = scmp.eq.s32.totalorder %s43, 5
      %p490 = por %p488, %p489
      %p492 = scmp.ne.s32.totalorder %s477, %s491
      %p493 = scmp.eq.s32.totalorder %s43, 0
      %p494 = por %p492, %p493
      %s496 = sadd.s32 %s495, 1
      %p499 = scmp.eq.s32.totalorder %s37, 5
      %p500 = scmp.ne.s32.totalorder %s495, %s497
      %p501 = scmp.eq.s32.totalorder %s37, 0
      %p502 = por %p500, %p501
      %p503 = scmp.ne.s32.totalorder %s495, %s497
      %p504 = scmp.eq.s32.totalorder %s42, 5
      %p505 = por %p503, %p504
      %p506 = scmp.ne.s32.totalorder %s497, %s498
      %p507 = scmp.eq.s32.totalorder %s42, 0
      %p508 = por %p506, %p507
      %p509 = scmp.ne.s32.totalorder %s497, %s498
      %p510 = scmp.eq.s32.totalorder %s43, 5
      %p511 = por %p509, %p510
      %p513 = scmp.ne.s32.totalorder %s498, %s512
      %p514 = scmp.eq.s32.totalorder %s43, 0
      %p515 = por %p513, %p514
      %s517 = sadd.s32 %s516, 1
      %p520 = scmp.eq.s32.totalorder %s37, 5
      %p521 = scmp.ne.s32.totalorder %s516, %s518
      %p522 = scmp.eq.s32.totalorder %s37, 0
      %p523 = por %p521, %p522
      %p524 = scmp.ne.s32.totalorder %s516, %s518
      %p525 = scmp.eq.s32.totalorder %s42, 5
      %p526 = por %p524, %p525
      %p527 = scmp.ne.s32.totalorder %s518, %s519
      %p528 = scmp.eq.s32.totalorder %s42, 0
      %p529 = por %p527, %p528
      %p530 = scmp.ne.s32.totalorder %s518, %s519
      %p531 = scmp.eq.s32.totalorder %s43, 5
      %p532 = por %p530, %p531
      %p534 = scmp.ne.s32.totalorder %s519, %s533
      %p535 = scmp.eq.s32.totalorder %s43, 0
      %p536 = por %p534, %p535
      %p537 = scmp.le.s32.totalorder 1, %s37
      %p538 = scmp.lt.s32.totalorder %s37, 7
      %p539 = pnand %p537, %p538
      %p540 = pneg %p539
      // Predicated region
      $region9: #{tpu_custom_call.1} parent=5 // pred_check
        _
      $region10: #{tpu_custom_call.1} parent=5 // pred_check_branch
        %542 = sbr.rel (%p539) target = $region12
      $region11: #{tpu_custom_call.1} parent=5 // pred_region
        %s543 = ssub.s32 %s37, 1
        // Predicated region
        $region13: #{tpu_custom_call.1} parent=11 // pred_check
          %p544 = pneg %p96
        $region14: #{tpu_custom_call.1} parent=11 // pred_check_branch
          %546 = sbr.rel (%p544) target = $region16
        $region15: #{tpu_custom_call.1} parent=11 // pred_region
          _
        $region16: #{tpu_custom_call.1} parent=11 // pred_fallthru
          _
        // Predicated region
        $region17: #{tpu_custom_call.1} parent=11 // pred_check
          %p547 = pneg %p169
        $region18: #{tpu_custom_call.1} parent=11 // pred_check_branch
          %549 = sbr.rel (%p547) target = $region20
        $region19: #{tpu_custom_call.1} parent=11 // pred_region
          %s551 = ssub.s32 128, 128
          %552 = vsyncadd [#allocation9], %s551
          %s554 = sshll.u32 [#allocation8], 4
          %s555 = int_to_ptr.vmem [resolvable:$true] %s554
          %557 = dma.hbm_to_vmem [thread:$0]  %s4, 128, %s555, [#allocation9]
        $region20: #{tpu_custom_call.1} parent=11 // pred_fallthru
          _
        // Predicated region
        $region21: #{tpu_custom_call.1} parent=11 // pred_check
          %p558 = pneg %p190
        $region22: #{tpu_custom_call.1} parent=11 // pred_check_branch
          %560 = sbr.rel (%p558) target = $region24
        $region23: #{tpu_custom_call.1} parent=11 // pred_region
          %s562 = ssub.s32 384, 384
          %563 = vsyncadd [#allocation9], %s562
          %s564 = sshll.u32 [#allocation10], 4
          %s565 = int_to_ptr.vmem [resolvable:$true] %s564
          %570 = dma.hbm_to_vmem [thread:$0]  %s5, 384, %s565, [#allocation9], 128, 128, 8
        $region24: #{tpu_custom_call.1} parent=11 // pred_fallthru
          _
        // Predicated region
        $region25: #{tpu_custom_call.1} parent=11 // pred_check
          %p571 = pneg %p445
        $region26: #{tpu_custom_call.1} parent=11 // pred_check_branch
          %573 = sbr.rel (%p571) target = $region28
        $region27: #{tpu_custom_call.1} parent=11 // pred_region
          _
        $region28: #{tpu_custom_call.1} parent=11 // pred_fallthru
          _
        // Predicated region
        $region29: #{tpu_custom_call.1} parent=11 // pred_check
          %p574 = pneg %p466
        $region30: #{tpu_custom_call.1} parent=11 // pred_check_branch
          %576 = sbr.rel (%p574) target = $region32
        $region31: #{tpu_custom_call.1} parent=11 // pred_region
          _
        $region32: #{tpu_custom_call.1} parent=11 // pred_fallthru
          _
        // Predicated region
        $region33: #{tpu_custom_call.1} parent=11 // pred_check
          %p577 = pneg %p487
        $region34: #{tpu_custom_call.1} parent=11 // pred_check_branch
          %579 = sbr.rel (%p577) target = $region36
        $region35: #{tpu_custom_call.1} parent=11 // pred_region
          %s581 = ssub.s32 1024, 1024
          %582 = vsyncadd [#allocation18], %s581
          %s583 = sshll.u32 [#allocation17], 4
          %s584 = int_to_ptr.vmem [resolvable:$true] %s583
          %589 = dma.hbm_to_vmem [thread:$0]  %s17, 1024, %s584, [#allocation18], 64, 64, 4
        $region36: #{tpu_custom_call.1} parent=11 // pred_fallthru
          _
        // Predicated region
        $region37: #{tpu_custom_call.1} parent=11 // pred_check
          %p590 = pneg %p508
        $region38: #{tpu_custom_call.1} parent=11 // pred_check_branch
          %592 = sbr.rel (%p590) target = $region40
        $region39: #{tpu_custom_call.1} parent=11 // pred_region
          _
        $region40: #{tpu_custom_call.1} parent=11 // pred_fallthru
          _
      $region12: #{tpu_custom_call.1} parent=5 // pred_fallthru
        _
      %p593 = scmp.lt.s32.totalorder %s37, 6
      // Predicated region
      $region41: #{tpu_custom_call.1} parent=5 // pred_check
        %p594 = pneg %p593
      $region42: #{tpu_custom_call.1} parent=5 // pred_check_branch
        %596 = sbr.rel (%p594) target = $region44
      $region43: #{tpu_custom_call.1} parent=5 // pred_region
        // Predicated region
        $region45: #{tpu_custom_call.1} parent=43 // pred_check
          %p597 = pneg %p69
        $region46: #{tpu_custom_call.1} parent=43 // pred_check_branch
          %599 = sbr.rel (%p597) target = $region48
        $region47: #{tpu_custom_call.1} parent=43 // pred_region
          %s600 = smul.u32 16, %s45
          %p601 = scmp.lt.s32.totalorder %s600, 31
          %s602 = scalar_select %p601, %s600, 31
          %s603 = smul.addr %s602, 8
          %s604 = scalar_lea.vmem %s0, %s603
          %s605 = smul.u32 16, %s45
        $region48: #{tpu_custom_call.1} parent=43 // pred_fallthru
          _
        // Predicated region
        $region49: #{tpu_custom_call.1} parent=43 // pred_check
          %p606 = pneg %p116
        $region50: #{tpu_custom_call.1} parent=43 // pred_check_branch
          %608 = sbr.rel (%p606) target = $region52
        $region51: #{tpu_custom_call.1} parent=43 // pred_region
          %s609 = smul.u32 16, %s45
          %p610 = scmp.lt.s32.totalorder %s609, 31
          %s611 = scalar_select %p610, %s609, 31
          %s612 = smul.addr %s611, 4
          %s613 = scalar_lea.vmem %s2, %s612
          %s614 = smul.u32 16, %s45
        $region52: #{tpu_custom_call.1} parent=43 // pred_fallthru
          _
        // Predicated region
        $region53: #{tpu_custom_call.1} parent=43 // pred_check
          %p615 = pneg %p142
        $region54: #{tpu_custom_call.1} parent=43 // pred_check_branch
          %617 = sbr.rel (%p615) target = $region56
        $region55: #{tpu_custom_call.1} parent=43 // pred_region
          %s618 = sand.u32 %s132, 1
          %s619 = scalar_lea.sflag [#allocation6], %s618
          %s620 = sand.u32 %s132, 1
          %s621 = smul.addr %s620, 12
          %s622 = scalar_lea.vmem [#allocation5], %s621
          %s624 = ssub.s32 192, 192
          %625 = vsyncadd %s619, %s624
          %s626 = smul.addr %s45, 64
          %s627 = scalar_lea.hbm %s3, %s626
          %s628 = sshll.u32 %s622, 4
          %s629 = int_to_ptr.vmem [resolvable:$true] %s628
          %634 = dma.hbm_to_vmem [thread:$0]  %s627, 192, %s629, %s619, 128, 64, 4
        $region56: #{tpu_custom_call.1} parent=43 // pred_fallthru
          _
        // Predicated region
        $region57: #{tpu_custom_call.1} parent=43 // pred_check
          %p635 = pneg %p210
        $region58: #{tpu_custom_call.1} parent=43 // pred_check_branch
          %637 = sbr.rel (%p635) target = $region60
        $region59: #{tpu_custom_call.1} parent=43 // pred_region
          %p638 = scmp.lt.s32.totalorder %s44, 2
          %s639 = scalar_select %p638, %s44, 2
          %s640 = smul.addr %s639, 16
          %s641 = smul.addr %s640, 4
          %s642 = scalar_lea.vmem %s6, %s641
        $region60: #{tpu_custom_call.1} parent=43 // pred_fallthru
          _
        // Predicated region
        $region61: #{tpu_custom_call.1} parent=43 // pred_check
          %p643 = pneg %p236
        $region62: #{tpu_custom_call.1} parent=43 // pred_check_branch
          %645 = sbr.rel (%p643) target = $region64
        $region63: #{tpu_custom_call.1} parent=43 // pred_region
          %p646 = scmp.lt.s32.totalorder %s44, 2
          %s647 = scalar_select %p646, %s44, 2
          %s648 = smul.addr %s647, 16
          %s649 = smul.addr %s648, 4
          %s650 = scalar_lea.vmem %s7, %s649
        $region64: #{tpu_custom_call.1} parent=43 // pred_fallthru
          _
        // Predicated region
        $region65: #{tpu_custom_call.1} parent=43 // pred_check
          %p651 = pneg %p262
        $region66: #{tpu_custom_call.1} parent=43 // pred_check_branch
          %653 = sbr.rel (%p651) target = $region68
        $region67: #{tpu_custom_call.1} parent=43 // pred_region
          %p654 = scmp.lt.s32.totalorder %s44, 2
          %s655 = scalar_select %p654, %s44, 2
          %s656 = scalar_lea.vmem %s8, %s655
        $region68: #{tpu_custom_call.1} parent=43 // pred_fallthru
          _
        // Predicated region
        $region69: #{tpu_custom_call.1} parent=43 // pred_check
          %p657 = pneg %p288
        $region70: #{tpu_custom_call.1} parent=43 // pred_check_branch
          %659 = sbr.rel (%p657) target = $region72
        $region71: #{tpu_custom_call.1} parent=43 // pred_region
          %s660 = sand.u32 %s37, 1
          %s661 = scalar_lea.sflag [#allocation12], %s660
          %s662 = sand.u32 %s278, 1
          %s663 = smul.addr %s662, 64
          %s664 = scalar_lea.vmem [#allocation11], %s663
          %s666 = ssub.s32 1024, 1024
          %667 = vsyncadd %s661, %s666
          %s668 = smul.addr %s44, 16
          %s669 = smul.addr %s668, 64
          %s670 = scalar_lea.hbm %s9, %s669
          %s671 = sshll.u32 %s664, 4
          %s672 = int_to_ptr.vmem [resolvable:$true] %s671
          %677 = dma.hbm_to_vmem [thread:$0]  %s670, 1024, %s672, %s661, 64, 64, 4
        $region72: #{tpu_custom_call.1} parent=43 // pred_fallthru
          _
        // Predicated region
        $region73: #{tpu_custom_call.1} parent=43 // pred_check
          %p678 = pneg %p314
        $region74: #{tpu_custom_call.1} parent=43 // pred_check_branch
          %680 = sbr.rel (%p678) target = $region76
        $region75: #{tpu_custom_call.1} parent=43 // pred_region
          %p681 = scmp.lt.s32.totalorder %s44, 2
          %s682 = scalar_select %p681, %s44, 2
          %s683 = scalar_lea.vmem %s10, %s682
        $region76: #{tpu_custom_call.1} parent=43 // pred_fallthru
          _
        // Predicated region
        $region77: #{tpu_custom_call.1} parent=43 // pred_check
          %p684 = pneg %p340
        $region78: #{tpu_custom_call.1} parent=43 // pred_check_branch
          %686 = sbr.rel (%p684) target = $region80
        $region79: #{tpu_custom_call.1} parent=43 // pred_region
          %s687 = sand.u32 %s37, 1
          %s688 = scalar_lea.sflag [#allocation12], %s687
          %s689 = sand.u32 %s330, 1
          %s690 = smul.addr %s689, 64
          %s691 = scalar_lea.vmem [#allocation13], %s690
          %s693 = ssub.s32 1024, 1024
          %694 = vsyncadd %s688, %s693
          %s695 = smul.addr %s44, 16
          %s696 = smul.addr %s695, 64
          %s697 = scalar_lea.hbm %s11, %s696
          %s698 = sshll.u32 %s691, 4
          %s699 = int_to_ptr.vmem [resolvable:$true] %s698
          %704 = dma.hbm_to_vmem [thread:$0]  %s697, 1024, %s699, %s688, 64, 64, 4
        $region80: #{tpu_custom_call.1} parent=43 // pred_fallthru
          _
        // Predicated region
        $region81: #{tpu_custom_call.1} parent=43 // pred_check
          %p705 = pneg %p366
        $region82: #{tpu_custom_call.1} parent=43 // pred_check_branch
          %707 = sbr.rel (%p705) target = $region84
        $region83: #{tpu_custom_call.1} parent=43 // pred_region
          %s708 = sand.u32 %s37, 1
          %s709 = scalar_lea.sflag [#allocation15], %s708
          %s710 = sand.u32 %s356, 1
          %s711 = scalar_lea.vmem [#allocation14], %s710
          %s713 = ssub.s32 16, 16
          %714 = vsyncadd %s709, %s713
          %s715 = smul.addr %s44, 16
          %s716 = scalar_lea.hbm %s12, %s715
          %s718 = sshll.u32 %s711, 4
          %s719 = int_to_ptr.vmem [resolvable:$true] %s718
          %721 = dma.hbm_to_vmem [thread:$0]  %s716, 16, %s719, %s709
        $region84: #{tpu_custom_call.1} parent=43 // pred_fallthru
          _
        // Predicated region
        $region85: #{tpu_custom_call.1} parent=43 // pred_check
          %p722 = pneg %p392
        $region86: #{tpu_custom_call.1} parent=43 // pred_check_branch
          %724 = sbr.rel (%p722) target = $region88
        $region87: #{tpu_custom_call.1} parent=43 // pred_region
          %s725 = sand.u32 %s37, 1
          %s726 = scalar_lea.sflag [#allocation15], %s725
          %s727 = sand.u32 %s382, 1
          %s728 = smul.addr %s727, 64
          %s729 = scalar_lea.vmem [#allocation16], %s728
          %s731 = ssub.s32 1024, 1024
          %732 = vsyncadd %s726, %s731
          %s733 = smul.addr %s44, 16
          %s734 = smul.addr %s733, 64
          %s735 = scalar_lea.hbm %s13, %s734
          %s736 = sshll.u32 %s729, 4
          %s737 = int_to_ptr.vmem [resolvable:$true] %s736
          %742 = dma.hbm_to_vmem [thread:$0]  %s735, 1024, %s737, %s726, 64, 64, 4
        $region88: #{tpu_custom_call.1} parent=43 // pred_fallthru
          _
        // Predicated region
        $region89: #{tpu_custom_call.1} parent=43 // pred_check
          %p743 = pneg %p418
        $region90: #{tpu_custom_call.1} parent=43 // pred_check_branch
          %745 = sbr.rel (%p743) target = $region92
        $region91: #{tpu_custom_call.1} parent=43 // pred_region
          %p746 = scmp.lt.s32.totalorder %s44, 2
          %s747 = scalar_select %p746, %s44, 2
          %s748 = scalar_lea.vmem %s14, %s747
        $region92: #{tpu_custom_call.1} parent=43 // pred_fallthru
          _
      $region44: #{tpu_custom_call.1} parent=5 // pred_fallthru
        _
      %p749 = scmp.le.s32.totalorder 1, %s37
      %p750 = scmp.lt.s32.totalorder %s37, 7
      %p751 = pnand %p749, %p750
      %p752 = pneg %p751
      // Predicated region
      $region93: #{tpu_custom_call.1} parent=5 // pred_check
        _
      $region94: #{tpu_custom_call.1} parent=5 // pred_check_branch
        %754 = sbr.rel (%p751) target = $region96
      $region95: #{tpu_custom_call.1} parent=5 // pred_region
        %s755 = ssub.s32 %s37, 1
        %s756 = sand.u32 %s135, 1
        %s757 = scalar_lea.sflag [#allocation6], %s756
        %s758 = sand.u32 %s135, 1
        %s759 = smul.addr %s758, 12
        %s760 = scalar_lea.vmem [#allocation5], %s759
        // Predicated region
        $region97: #{tpu_custom_call.1} parent=95 // pred_check
          %p761 = pneg %p148
        $region98: #{tpu_custom_call.1} parent=95 // pred_check_branch
          %763 = sbr.rel (%p761) target = $region100
        $region99: #{tpu_custom_call.1} parent=95 // pred_region
          %764 = dma.done %s757, 192
        $region100: #{tpu_custom_call.1} parent=95 // pred_fallthru
          _
        // Predicated region
        $region101: #{tpu_custom_call.1} parent=95 // pred_check
          %p765 = pneg %p169
        $region102: #{tpu_custom_call.1} parent=95 // pred_check_branch
          %767 = sbr.rel (%p765) target = $region104
        $region103: #{tpu_custom_call.1} parent=95 // pred_region
          %768 = dma.done [#allocation9], 128
        $region104: #{tpu_custom_call.1} parent=95 // pred_fallthru
          _
        // Predicated region
        $region105: #{tpu_custom_call.1} parent=95 // pred_check
          %p769 = pneg %p190
        $region106: #{tpu_custom_call.1} parent=95 // pred_check_branch
          %771 = sbr.rel (%p769) target = $region108
        $region107: #{tpu_custom_call.1} parent=95 // pred_region
          %772 = dma.done [#allocation9], 384
        $region108: #{tpu_custom_call.1} parent=95 // pred_fallthru
          _
        %s773 = sand.u32 %s42, 1
        %s774 = scalar_lea.sflag [#allocation12], %s773
        %s775 = sand.u32 %s281, 1
        %s776 = smul.addr %s775, 64
        %s777 = scalar_lea.vmem [#allocation11], %s776
        // Predicated region
        $region109: #{tpu_custom_call.1} parent=95 // pred_check
          %p778 = pneg %p294
        $region110: #{tpu_custom_call.1} parent=95 // pred_check_branch
          %780 = sbr.rel (%p778) target = $region112
        $region111: #{tpu_custom_call.1} parent=95 // pred_region
          %781 = dma.done %s774, 1024
        $region112: #{tpu_custom_call.1} parent=95 // pred_fallthru
          _
        %s782 = sand.u32 %s42, 1
        %s783 = scalar_lea.sflag [#allocation12], %s782
        %s784 = sand.u32 %s333, 1
        %s785 = smul.addr %s784, 64
        %s786 = scalar_lea.vmem [#allocation13], %s785
        // Predicated region
        $region113: #{tpu_custom_call.1} parent=95 // pred_check
          %p787 = pneg %p346
        $region114: #{tpu_custom_call.1} parent=95 // pred_check_branch
          %789 = sbr.rel (%p787) target = $region116
        $region115: #{tpu_custom_call.1} parent=95 // pred_region
          %790 = dma.done %s783, 1024
        $region116: #{tpu_custom_call.1} parent=95 // pred_fallthru
          _
        %s791 = sand.u32 %s42, 1
        %s792 = scalar_lea.sflag [#allocation15], %s791
        %s793 = sand.u32 %s359, 1
        %s794 = scalar_lea.vmem [#allocation14], %s793
        // Predicated region
        $region117: #{tpu_custom_call.1} parent=95 // pred_check
          %p795 = pneg %p372
        $region118: #{tpu_custom_call.1} parent=95 // pred_check_branch
          %797 = sbr.rel (%p795) target = $region120
        $region119: #{tpu_custom_call.1} parent=95 // pred_region
          %798 = dma.done %s792, 16
        $region120: #{tpu_custom_call.1} parent=95 // pred_fallthru
          _
        %s799 = sand.u32 %s42, 1
        %s800 = scalar_lea.sflag [#allocation15], %s799
        %s801 = sand.u32 %s385, 1
        %s802 = smul.addr %s801, 64
        %s803 = scalar_lea.vmem [#allocation16], %s802
        // Predicated region
        $region121: #{tpu_custom_call.1} parent=95 // pred_check
          %p804 = pneg %p398
        $region122: #{tpu_custom_call.1} parent=95 // pred_check_branch
          %806 = sbr.rel (%p804) target = $region124
        $region123: #{tpu_custom_call.1} parent=95 // pred_region
          %807 = dma.done %s800, 1024
        $region124: #{tpu_custom_call.1} parent=95 // pred_fallthru
          _
        // Predicated region
        $region125: #{tpu_custom_call.1} parent=95 // pred_check
          %p808 = pneg %p487
        $region126: #{tpu_custom_call.1} parent=95 // pred_check_branch
          %810 = sbr.rel (%p808) target = $region128
        $region127: #{tpu_custom_call.1} parent=95 // pred_region
          %811 = dma.done [#allocation18], 1024
        $region128: #{tpu_custom_call.1} parent=95 // pred_fallthru
          _
        %s812 = smul.u32 16, %s47
        %p813 = scmp.lt.s32.totalorder %s812, 31
        %s814 = scalar_select %p813, %s812, 31
        %s815 = smul.addr %s814, 8
        %s816 = scalar_lea.vmem %s0, %s815
        %p817 = pneg %p75
        %p818 = pneg %p72
        %p819 = pneg %p96
        %p820 = pneg %p93
        %s821 = smul.u32 16, %s47
        %p822 = scmp.lt.s32.totalorder %s821, 31
        %s823 = scalar_select %p822, %s821, 31
        %s824 = smul.addr %s823, 4
        %s825 = scalar_lea.vmem %s2, %s824
        %p826 = pneg %p122
        %p827 = pneg %p119
        %s828 = sand.u32 %s135, 1
        %s829 = scalar_lea.sflag [#allocation6], %s828
        %s830 = sand.u32 %s135, 1
        %s831 = smul.addr %s830, 12
        %s832 = scalar_lea.vmem [#allocation5], %s831
        %p833 = pneg %p148
        %p834 = pneg %p145
        %p835 = pneg %p169
        %p836 = pneg %p166
        %p837 = pneg %p190
        %p838 = pneg %p187
        %p839 = scmp.lt.s32.totalorder %s46, 2
        %s840 = scalar_select %p839, %s46, 2
        %s841 = smul.addr %s840, 16
        %s842 = smul.addr %s841, 4
        %s843 = scalar_lea.vmem %s6, %s842
        %p844 = pneg %p216
        %p845 = pneg %p213
        %p846 = scmp.lt.s32.totalorder %s46, 2
        %s847 = scalar_select %p846, %s46, 2
        %s848 = smul.addr %s847, 16
        %s849 = smul.addr %s848, 4
        %s850 = scalar_lea.vmem %s7, %s849
        %p851 = pneg %p242
        %p852 = pneg %p239
        %p853 = scmp.lt.s32.totalorder %s46, 2
        %s854 = scalar_select %p853, %s46, 2
        %s855 = scalar_lea.vmem %s8, %s854
        %p856 = pneg %p268
        %p857 = pneg %p265
        %s858 = sand.u32 %s42, 1
        %s859 = scalar_lea.sflag [#allocation12], %s858
        %s860 = sand.u32 %s281, 1
        %s861 = smul.addr %s860, 64
        %s862 = scalar_lea.vmem [#allocation11], %s861
        %p863 = pneg %p294
        %p864 = pneg %p291
        %p865 = scmp.lt.s32.totalorder %s46, 2
        %s866 = scalar_select %p865, %s46, 2
        %s867 = scalar_lea.vmem %s10, %s866
        %p868 = pneg %p320
        %p869 = pneg %p317
        %s870 = sand.u32 %s42, 1
        %s871 = scalar_lea.sflag [#allocation12], %s870
        %s872 = sand.u32 %s333, 1
        %s873 = smul.addr %s872, 64
        %s874 = scalar_lea.vmem [#allocation13], %s873
        %p875 = pneg %p346
        %p876 = pneg %p343
        %s877 = sand.u32 %s42, 1
        %s878 = scalar_lea.sflag [#allocation15], %s877
        %s879 = sand.u32 %s359, 1
        %s880 = scalar_lea.vmem [#allocation14], %s879
        %p881 = pneg %p372
        %p882 = pneg %p369
        %s883 = sand.u32 %s42, 1
        %s884 = scalar_lea.sflag [#allocation15], %s883
        %s885 = sand.u32 %s385, 1
        %s886 = smul.addr %s885, 64
        %s887 = scalar_lea.vmem [#allocation16], %s886
        %p888 = pneg %p398
        %p889 = pneg %p395
        %p890 = scmp.lt.s32.totalorder %s46, 2
        %s891 = scalar_select %p890, %s46, 2
        %s892 = scalar_lea.vmem %s14, %s891
        %p893 = pneg %p424
        %p894 = pneg %p421
        %p895 = pneg %p445
        %p896 = pneg %p442
        %p897 = pneg %p466
        %p898 = pneg %p463
        %p899 = pneg %p487
        %p900 = pneg %p484
        %p901 = pneg %p508
        %p902 = pneg %p505
        %p903 = pneg %p529
        %p904 = pneg %p526
        %s905 = smul.u32 16, %s47
        %p906 = scmp.lt.s32.totalorder %s905, 31
        %s907 = scalar_select %p906, %s905, 31
        %s908 = smul.addr %s907, 8
        %s909 = scalar_lea.vmem %s0, %s908
        %s910 = smul.u32 16, %s47
        %s911 = smul.u32 16, %s47
        %p912 = scmp.lt.s32.totalorder %s911, 31
        %s913 = scalar_select %p912, %s911, 31
        %s914 = smul.addr %s913, 4
        %s915 = scalar_lea.vmem %s2, %s914
        %s916 = smul.u32 16, %s47
        %p917 = scmp.lt.s32.totalorder %s46, 2
        %s918 = scalar_select %p917, %s46, 2
        %s919 = smul.addr %s918, 16
        %s920 = smul.addr %s919, 4
        %s921 = scalar_lea.vmem %s6, %s920
        %p922 = scmp.lt.s32.totalorder %s46, 2
        %s923 = scalar_select %p922, %s46, 2
        %s924 = smul.addr %s923, 16
        %s925 = smul.addr %s924, 4
        %s926 = scalar_lea.vmem %s7, %s925
        %p927 = scmp.lt.s32.totalorder %s46, 2
        %s928 = scalar_select %p927, %s46, 2
        %s929 = scalar_lea.vmem %s8, %s928
        %p930 = scmp.lt.s32.totalorder %s46, 2
        %s931 = scalar_select %p930, %s46, 2
        %s932 = scalar_lea.vmem %s10, %s931
        %p933 = scmp.lt.s32.totalorder %s46, 2
        %s934 = scalar_select %p933, %s46, 2
        %s935 = scalar_lea.vmem %s14, %s934
        %p937 = scmp.eq.s32.totalorder %s46, 0
        %p938 = scmp.eq.s32.totalorder %s47, 0
        %p939 = pnand %p937, %p938
        %p940 = pneg %p939
        // Predicated region
        $region129: #{tpu_custom_call.1} parent=95 // pred_check
          _
        $region130: #{tpu_custom_call.1} parent=95 // pred_check_branch
          %942 = sbr.rel (%p939) target = $region132
        $region131: #{tpu_custom_call.1} parent=95 // pred_region
          %v943 = vld [vmem:[#allocation10] sm:$0xff]
          %v944 = vld [vmem:[#allocation10 + $0x8] sm:$0xff]
          %v945 = vld [vmem:[#allocation10 + $0x10] sm:$0xff]
          %946 = vst [vmem:[#allocation2] sm:$0xff] %v943
          %947 = vst [vmem:[#allocation2 + $0x8] sm:$0xff] %v944
          %948 = vst [vmem:[#allocation2 + $0x10] sm:$0xff] %v945
        $region132: #{tpu_custom_call.1} parent=95 // pred_fallthru
          _
        // Predicated region
        $region133: #{tpu_custom_call.1} parent=95 // pred_check
          %p949 = pneg %p938
        $region134: #{tpu_custom_call.1} parent=95 // pred_check_branch
          %951 = sbr.rel (%p949) target = $region136
        $region135: #{tpu_custom_call.1} parent=95 // pred_region
          %v952 = vld [vmem:[#allocation2] sm:$0xff]
          %v953 = vld [vmem:[#allocation2 + $0x8] sm:$0xff]
          %v954 = vld [vmem:[#allocation2 + $0x10] sm:$0xff]
          %v955 = vpack.c.bf16 %v953, %v952
          %v956 = vpack.c.bf16 %v954, %v954
          %v957 = vld [vmem:[%s921] sm:$0xf]
          %v958 = vld [vmem:[%s921 + $0x4] sm:$0xf]
          %v959 = vld [vmem:[%s921 + $0x8] sm:$0xf]
          %v960 = vld [vmem:[%s921 + $0xc] sm:$0xf]
          %v961 = vld [vmem:[%s921 + $0x10] sm:$0xf]
          %v962 = vld [vmem:[%s921 + $0x14] sm:$0xf]
          %v963 = vld [vmem:[%s921 + $0x18] sm:$0xf]
          %v964 = vld [vmem:[%s921 + $0x1c] sm:$0xf]
          %v965 = vld [vmem:[%s921 + $0x20] sm:$0xf]
          %v966 = vld [vmem:[%s921 + $0x24] sm:$0xf]
          %v967 = vld [vmem:[%s921 + $0x28] sm:$0xf]
          %v968 = vld [vmem:[%s921 + $0x2c] sm:$0xf]
          %v969 = vld [vmem:[%s921 + $0x30] sm:$0xf]
          %v970 = vld [vmem:[%s921 + $0x34] sm:$0xf]
          %v971 = vld [vmem:[%s921 + $0x38] sm:$0xf]
          %v972 = vld [vmem:[%s921 + $0x3c] sm:$0xf]
          %v989 = vunpack.c.l.b16 %v957
          %v990 = vunpack.c.l.b16 %v958
          %v991 = vunpack.c.l.b16 %v959
          %v992 = vunpack.c.l.b16 %v960
          %v993 = vunpack.c.l.b16 %v961
          %v994 = vunpack.c.l.b16 %v962
          %v995 = vunpack.c.l.b16 %v963
          %v996 = vunpack.c.l.b16 %v964
          %v997 = vunpack.c.l.b16 %v965
          %v998 = vunpack.c.l.b16 %v966
          %v999 = vunpack.c.l.b16 %v967
          %v1000 = vunpack.c.l.b16 %v968
          %v1001 = vunpack.c.l.b16 %v969
          %v1002 = vunpack.c.l.b16 %v970
          %v1003 = vunpack.c.l.b16 %v971
          %v1004 = vunpack.c.l.b16 %v972
          %v1005 = vpack.c.b16 %v990, %v989
          %v1006 = vpack.c.b16 %v992, %v991
          %v1007 = vpack.c.b16 %v994, %v993
          %v1008 = vpack.c.b16 %v996, %v995
          %v1009 = vpack.c.b16 %v998, %v997
          %v1010 = vpack.c.b16 %v1000, %v999
          %v1011 = vpack.c.b16 %v1002, %v1001
          %v1012 = vpack.c.b16 %v1004, %v1003
          %1021 = vmatprep.subr.bf16.mxu0 0
          %1022 = vmatpush1.bf16.msra.mxu0 %v1005
          %1023 = vmatprep.subr.bf16.mxu0 0
          %1024 = vmatpush1.bf16.msra.mxu0 %v1006
          %1025 = vmatprep.subr.bf16.mxu0 0
          %1026 = vmatpush1.bf16.msra.mxu0 %v1007
          %1027 = vmatprep.subr.bf16.mxu0 0
          %1028 = vmatpush1.bf16.msra.mxu0 %v1008
          %1029 = vmatprep.subr.bf16.mxu0 0
          %1030 = vmatpush1.bf16.msra.mxu0 %v1009
          %1031 = vmatprep.subr.bf16.mxu0 0
          %1032 = vmatpush1.bf16.msra.mxu0 %v1010
          %1033 = vmatprep.subr.bf16.mxu0 0
          %1034 = vmatpush1.bf16.msra.mxu0 %v1011
          %1035 = vmatprep.subr.bf16.mxu0 0
          %1036 = vmatpush1.bf16.msra.mxu0 %v1012
          %1037 = vmatprep.subr.bf16.mxu0 0
          %1038 = vmatpush1.bf16.msra.mxu0 0
          %1039 = vmatprep.subr.bf16.mxu0 0
          %1040 = vmatpush1.bf16.msra.mxu0 0
          %1041 = vmatprep.subr.bf16.mxu0 0
          %1042 = vmatpush1.bf16.msra.mxu0 0
          %1043 = vmatprep.subr.bf16.mxu0 0
          %1044 = vmatpush1.bf16.msra.mxu0 0
          %1045 = vmatprep.subr.bf16.mxu0 0
          %1046 = vmatpush1.bf16.msra.mxu0 0
          %1047 = vmatprep.subr.bf16.mxu0 0
          %1048 = vmatpush1.bf16.msra.mxu0 0
          %1049 = vmatprep.subr.bf16.mxu0 0
          %1050 = vmatpush1.bf16.msra.mxu0 0
          %1051 = vmatprep.subr.bf16.mxu0 0
          %1052 = vmatpush1.bf16.msra.mxu0 0
          %1053 = vmatprep.mubr.bf16.mxu0 0
          %1054 = vmatmul.mubr.bf16.gmra.mrb[0].mxu0 %v955
          %v1055 = vpop.f32.mrb[0].mxu0
          %v1056 = vadd.f32 0.0, %v1055
          %v1057 = vpop.f32.mrb[0].mxu0
          %v1058 = vpop.f32.mrb[0].mxu0
          %v1059 = vadd.f32 0.0, %v1058
          %v1060 = vpop.f32.mrb[0].mxu0
          %1061 = vmatprep.mubr.bf16.mxu0 0
          %1062 = vmatmul.mubr.bf16.gmra.mrb[0].mxu0 %v956
          %v1063 = vpop.f32.mrb[0].mxu0
          %v1064 = vadd.f32 0.0, %v1063
          %v1065 = vpop.f32.mrb[0].mxu0
          %v1066 = vpop.f32.mrb[0].mxu0
          %v1067 = vpop.f32.mrb[0].mxu0
          %1068 = vdwg.mxu0
          %v1069 = vpack.c.bf16 %v1059, %v1056
          %v1070 = vpack.c.bf16 %v1064, %v1064
          %v1073 = vunpack.c.l.b16 %v1069
          %v1074 = vunpack.c.h.b16 %v1069
          %v1075 = vunpack.c.l.b16 %v1070
          %v1076 = vpack.c.b16 %v1073, %v1073
          %v1077 = vpack.c.b16 %v1074, %v1074
          %v1078 = vpack.c.b16 %v1075, %v1075
          %1082 = vst [vmem:[#allocation3] sm:$0xf] %v1076
          %1083 = vst [vmem:[#allocation3 + $0x4] sm:$0xf] %v1077
          %1084 = vst [vmem:[#allocation3 + $0x8] sm:$0xf] %v1078
          %1085 = vst [vmem:[#allocation4] sm:$0xff] 0.0
          %1086 = vst [vmem:[#allocation4 + $0x8] sm:$0xff] 0.0
          %1087 = vst [vmem:[#allocation4 + $0x10] sm:$0xff] 0.0
        $region136: #{tpu_custom_call.1} parent=95 // pred_fallthru
          _
        %v1088 = vld [vmem:[%s909] sm:$0xff]
        %v1089 = vld [vmem:[%s909 + $0x8] sm:$0xff]
        %v1090 = vld [vmem:[%s909 + $0x10] sm:$0xff]
        %v1091 = vld [vmem:[%s909 + $0x18] sm:$0xff]
        %v1092 = vld [vmem:[%s909 + $0x20] sm:$0xff]
        %v1093 = vld [vmem:[%s909 + $0x28] sm:$0xff]
        %v1094 = vld [vmem:[%s909 + $0x30] sm:$0xff]
        %v1095 = vld [vmem:[%s909 + $0x38] sm:$0xff]
        %v1096 = vld [vmem:[%s909 + $0x40] sm:$0xff]
        %v1097 = vld [vmem:[%s909 + $0x48] sm:$0xff]
        %v1098 = vld [vmem:[%s909 + $0x50] sm:$0xff]
        %v1099 = vld [vmem:[%s909 + $0x58] sm:$0xff]
        %v1100 = vld [vmem:[%s909 + $0x60] sm:$0xff]
        %v1101 = vld [vmem:[%s909 + $0x68] sm:$0xff]
        %v1102 = vld [vmem:[%s909 + $0x70] sm:$0xff]
        %v1103 = vld [vmem:[%s909 + $0x78] sm:$0xff]
        %v1104 = vld [vmem:[%s1] sm:$0x1]
        %1106 = vset.pattern.permute.xlu0 0
        %1107 = vperm.xlu0 %1106, %v1088
        %v1108 = vpop.permute.xlu0 %1107
        %1111 = vset.pattern.permute.xlu0 0
        %1112 = vperm.xlu0 %1111, %v1089
        %v1113 = vpop.permute.xlu0 %1112
        %1116 = vset.pattern.permute.xlu0 0
        %1117 = vperm.xlu0 %1116, %v1090
        %v1118 = vpop.permute.xlu0 %1117
        %1121 = vset.pattern.permute.xlu0 0
        %1122 = vperm.xlu0 %1121, %v1091
        %v1123 = vpop.permute.xlu0 %1122
        %1126 = vset.pattern.permute.xlu0 0
        %1127 = vperm.xlu0 %1126, %v1092
        %v1128 = vpop.permute.xlu0 %1127
        %1131 = vset.pattern.permute.xlu0 0
        %1132 = vperm.xlu0 %1131, %v1093
        %v1133 = vpop.permute.xlu0 %1132
        %1136 = vset.pattern.permute.xlu0 0
        %1137 = vperm.xlu0 %1136, %v1094
        %v1138 = vpop.permute.xlu0 %1137
        %1141 = vset.pattern.permute.xlu0 0
        %1142 = vperm.xlu0 %1141, %v1095
        %v1143 = vpop.permute.xlu0 %1142
        %1146 = vset.pattern.permute.xlu0 0
        %1147 = vperm.xlu0 %1146, %v1096
        %v1148 = vpop.permute.xlu0 %1147
        %1151 = vset.pattern.permute.xlu0 0
        %1152 = vperm.xlu0 %1151, %v1097
        %v1153 = vpop.permute.xlu0 %1152
        %1156 = vset.pattern.permute.xlu0 0
        %1157 = vperm.xlu0 %1156, %v1098
        %v1158 = vpop.permute.xlu0 %1157
        %1161 = vset.pattern.permute.xlu0 0
        %1162 = vperm.xlu0 %1161, %v1099
        %v1163 = vpop.permute.xlu0 %1162
        %1166 = vset.pattern.permute.xlu0 0
        %1167 = vperm.xlu0 %1166, %v1100
        %v1168 = vpop.permute.xlu0 %1167
        %1171 = vset.pattern.permute.xlu0 0
        %1172 = vperm.xlu0 %1171, %v1101
        %v1173 = vpop.permute.xlu0 %1172
        %1176 = vset.pattern.permute.xlu0 0
        %1177 = vperm.xlu0 %1176, %v1102
        %v1178 = vpop.permute.xlu0 %1177
        %1181 = vset.pattern.permute.xlu0 0
        %1182 = vperm.xlu0 %1181, %v1103
        %v1183 = vpop.permute.xlu0 %1182
        %v1186 = vlaneseq
        %v1187 = vshrl.u32 %v1186, 7
        %v1188 = vsub.s32 0, %v1187
        %v1189 = vrot.slane %v1104, %v1188
        %v1191 = vsub.f32 %v1108, %v1189
        %v1192 = vsub.f32 %v1113, %v1189
        %v1193 = vsub.f32 %v1118, %v1189
        %v1194 = vsub.f32 %v1123, %v1189
        %v1195 = vsub.f32 %v1128, %v1189
        %v1196 = vsub.f32 %v1133, %v1189
        %v1197 = vsub.f32 %v1138, %v1189
        %v1198 = vsub.f32 %v1143, %v1189
        %v1199 = vsub.f32 %v1148, %v1189
        %v1200 = vsub.f32 %v1153, %v1189
        %v1201 = vsub.f32 %v1158, %v1189
        %v1202 = vsub.f32 %v1163, %v1189
        %v1203 = vsub.f32 %v1168, %v1189
        %v1204 = vsub.f32 %v1173, %v1189
        %v1205 = vsub.f32 %v1178, %v1189
        %v1206 = vsub.f32 %v1183, %v1189
        %v1207 = vmul.f32 %v1191, -48.019997
        %v1208 = vmul.f32 %v1192, -48.019997
        %v1209 = vmul.f32 %v1193, -48.019997
        %v1210 = vmul.f32 %v1194, -48.019997
        %v1211 = vmul.f32 %v1195, -48.019997
        %v1212 = vmul.f32 %v1196, -48.019997
        %v1213 = vmul.f32 %v1197, -48.019997
        %v1214 = vmul.f32 %v1198, -48.019997
        %v1215 = vmul.f32 %v1199, -48.019997
        %v1216 = vmul.f32 %v1200, -48.019997
        %v1217 = vmul.f32 %v1201, -48.019997
        %v1218 = vmul.f32 %v1202, -48.019997
        %v1219 = vmul.f32 %v1203, -48.019997
        %v1220 = vmul.f32 %v1204, -48.019997
        %v1221 = vmul.f32 %v1205, -48.019997
        %v1222 = vmul.f32 %v1206, -48.019997
        %v1223 = vmul.f32 %v1207, %v1191
        %v1224 = vmul.f32 %v1208, %v1192
        %v1225 = vmul.f32 %v1209, %v1193
        %v1226 = vmul.f32 %v1210, %v1194
        %v1227 = vmul.f32 %v1211, %v1195
        %v1228 = vmul.f32 %v1212, %v1196
        %v1229 = vmul.f32 %v1213, %v1197
        %v1230 = vmul.f32 %v1214, %v1198
        %v1231 = vmul.f32 %v1215, %v1199
        %v1232 = vmul.f32 %v1216, %v1200
        %v1233 = vmul.f32 %v1217, %v1201
        %v1234 = vmul.f32 %v1218, %v1202
        %v1235 = vmul.f32 %v1219, %v1203
        %v1236 = vmul.f32 %v1220, %v1204
        %v1237 = vmul.f32 %v1221, %v1205
        %v1238 = vmul.f32 %v1222, %v1206
        %v1239 = vmul.f32 %v1223, 1.442695
        %v1240 = vpow.pop %v1239
        %v1241 = vmul.f32 %v1224, 1.442695
        %v1242 = vpow.pop %v1241
        %v1243 = vmul.f32 %v1225, 1.442695
        %v1244 = vpow.pop %v1243
        %v1245 = vmul.f32 %v1226, 1.442695
        %v1246 = vpow.pop %v1245
        %v1247 = vmul.f32 %v1227, 1.442695
        %v1248 = vpow.pop %v1247
        %v1249 = vmul.f32 %v1228, 1.442695
        %v1250 = vpow.pop %v1249
        %v1251 = vmul.f32 %v1229, 1.442695
        %v1252 = vpow.pop %v1251
        %v1253 = vmul.f32 %v1230, 1.442695
        %v1254 = vpow.pop %v1253
        %v1255 = vmul.f32 %v1231, 1.442695
        %v1256 = vpow.pop %v1255
        %v1257 = vmul.f32 %v1232, 1.442695
        %v1258 = vpow.pop %v1257
        %v1259 = vmul.f32 %v1233, 1.442695
        %v1260 = vpow.pop %v1259
        %v1261 = vmul.f32 %v1234, 1.442695
        %v1262 = vpow.pop %v1261
        %v1263 = vmul.f32 %v1235, 1.442695
        %v1264 = vpow.pop %v1263
        %v1265 = vmul.f32 %v1236, 1.442695
        %v1266 = vpow.pop %v1265
        %v1267 = vmul.f32 %v1237, 1.442695
        %v1268 = vpow.pop %v1267
        %v1269 = vmul.f32 %v1238, 1.442695
        %v1270 = vpow.pop %v1269
        %v1271 = vmul.f32 %v1088, 0.62831855
        %v1272 = vmul.f32 %v1089, 0.62831855
        %v1273 = vmul.f32 %v1090, 0.62831855
        %v1274 = vmul.f32 %v1091, 0.62831855
        %v1275 = vmul.f32 %v1092, 0.62831855
        %v1276 = vmul.f32 %v1093, 0.62831855
        %v1277 = vmul.f32 %v1094, 0.62831855
        %v1278 = vmul.f32 %v1095, 0.62831855
        %v1279 = vmul.f32 %v1096, 0.62831855
        %v1280 = vmul.f32 %v1097, 0.62831855
        %v1281 = vmul.f32 %v1098, 0.62831855
        %v1282 = vmul.f32 %v1099, 0.62831855
        %v1283 = vmul.f32 %v1100, 0.62831855
        %v1284 = vmul.f32 %v1101, 0.62831855
        %v1285 = vmul.f32 %v1102, 0.62831855
        %v1286 = vmul.f32 %v1103, 0.62831855
        %v1287 = vand.u32 2147483647, %v1271
        %vm1288 = vcmp.le.f32.partialorder %v1287, 0.7853982
        %vm1289 = vcmp.lt.s32.totalorder %v1271, 0
        %v1290 = vand.u32 %v1271, 2139095040
        %v1291 = vshrl.u32 %v1290, 23
        %v1292 = vsub.s32 %v1291, 127
        %v1293 = vand.u32 2147483647, %v1271
        %v1294 = vand.u32 %v1293, 8388607
        %v1295 = vor.u32 %v1294, 8388608
        %v1296 = vsub.s32 0, %v1295
        %v1297 = vadd.s32 %v1292, 1
        %vm1298 = vcmp.gt.s32.totalorder %v1297, 0
        %v1299 = vsel %vm1298, %v1297, 0
        %v1300 = vshrl.u32 %v1299, 5
        %v1301 = vand.u32 %v1299, 31
        %v1302 = vsub.s32 32, %v1301
        %v1303 = vshrl.u32 683565275, %v1302
        %v1304 = vshll.u32 683565275, %v1301
        %v1305 = vshrl.u32 2475754826, %v1302
        %v1306 = vor.u32 %v1304, %v1305
        %v1307 = vshll.u32 2475754826, %v1301
        %v1308 = vshrl.u32 2131351028, %v1302
        %v1309 = vor.u32 %v1307, %v1308
        %v1310 = vshll.u32 2131351028, %v1301
        %v1311 = vshrl.u32 2102212464, %v1302
        %v1312 = vor.u32 %v1310, %v1311
        %v1313 = vshll.u32 2102212464, %v1301
        %v1314 = vshrl.u32 920167782, %v1302
        %v1315 = vor.u32 %v1313, %v1314
        %v1316 = vshll.u32 920167782, %v1301
        %v1317 = vshrl.u32 1326507024, %v1302
        %v1318 = vor.u32 %v1316, %v1317
        %vm1319 = vcmp.lt.s32.totalorder %v1300, 1
        %vm1320 = vcmp.lt.s32.totalorder %v1300, 2
        %vm1321 = vcmp.lt.s32.totalorder %v1300, 3
        %vm1322 = vcmp.lt.s32.totalorder %v1300, 4
        %v1323 = vsel %vm1319, %v1303, %v1306
        %v1324 = vsel %vm1322, %v1312, 2102212464
        %v1325 = vsel %vm1321, %v1309, %v1324
        %v1326 = vsel %vm1320, %v1323, %v1325
        %v1327 = vsel %vm1319, %v1306, %v1309
        %v1328 = vsel %vm1322, %v1315, 920167782
        %v1329 = vsel %vm1321, %v1312, %v1328
        %v1330 = vsel %vm1320, %v1327, %v1329
        %v1331 = vsel %vm1319, %v1309, %v1312
        %v1332 = vsel %vm1322, %v1318, 1326507024
        %v1333 = vsel %vm1321, %v1315, %v1332
        %v1334 = vsel %vm1320, %v1331, %v1333
        %v1335 = vshll.u32 %v1295, 8
        %v1336 = vmul.u32.u64.compose %v1335, %v1334
        %v1337 = vextract.low.u32 %v1336
        %v1338 = vextract.high.u32 %v1336
        %v1339 = vmul.u32.u64.compose %v1335, %v1330
        %v1340 = vextract.low.u32 %v1339
        %v1341 = vextract.high.u32 %v1339
        %v1342 = vmul.u32 %v1335, %v1326
        %v1343 = vadd.s32 %v1338, %v1340
        %vm1344 = vc.u32 %v1338, %v1340
        %v1345 = vadd.s32 %v1341, 1
        %v1346 = vsel %vm1344, %v1345, %v1341
        %v1347 = vadd.s32 %v1342, %v1346
        %v1348 = vadd.s32 %v1347, 536870912
        %v1349 = vshrl.u32 %v1348, 30
        %v1350 = vshll.u32 %v1349, 30
        %v1351 = vsub.s32 %v1347, %v1350
        %vm1352 = vcmp.lt.s32.totalorder %v1351, 0
        %v1353 = vsub.s32 0, %v1351
        %v1354 = vsel %vm1352, %v1353, %v1351
        %v1355 = vclz %v1354
        %v1356 = vsub.s32 %v1355, 2
        %vm1357 = vcmp.gt.s32.totalorder 0, %v1356
        %v1358 = vsel %vm1357, 0, %v1356
        %v1359 = vsub.s32 32, %v1358
        %v1360 = vshll.u32 %v1351, %v1358
        %v1361 = vshrl.u32 %v1343, %v1359
        %v1362 = vor.u32 %v1360, %v1361
        %v1363 = vsub.s32 4294967266, %v1358
        %v1364 = vadd.s32 %v1363, 127
        %v1365 = vshll.u32 %v1364, 23
        %v1366 = vor.u32 4788187, %v1365
        %v1367 = vand.u32 2147483647, %v1366
        %v1369 = vcvt.s32.f32 %v1362
        %v1370 = vmul.f32 %v1369, %v1367
        %v1371 = vxor.u32 %v1370, 2147483648
        %v1372 = vsel %vm1289, %v1371, %v1370
        %v1373 = vsub.s32 4, %v1349
        %v1374 = vsel %vm1289, %v1373, %v1349
        %v1375 = vsel %vm1288, %v1271, %v1372
        %v1376 = vsel %vm1288, 0, %v1374
        %v1377 = vcosq.f32.pop %v1375
        %v1378 = vsinq.f32.pop %v1375
        %vm1379 = vweird.f32 %v1271
        %v1380 = vand.u32 %v1376, 3
        %vm1381 = vcmp.lt.s32.totalorder %v1380, 2
        %vm1382 = vcmp.eq.s32.totalorder %v1380, 0
        %v1383 = vxor.u32 %v1378, 2147483648
        %v1384 = vsel %vm1382, %v1377, %v1383
        %vm1385 = vcmp.eq.s32.totalorder %v1380, 2
        %v1386 = vxor.u32 %v1377, 2147483648
        %v1387 = vsel %vm1385, %v1386, %v1378
        %v1388 = vsel %vm1381, %v1384, %v1387
        %v1389 = vsel %vm1379, nan, %v1388
        %v1390 = vand.u32 2147483647, %v1272
        %vm1391 = vcmp.le.f32.partialorder %v1390, 0.7853982
        %vm1392 = vcmp.lt.s32.totalorder %v1272, 0
        %v1393 = vand.u32 %v1272, 2139095040
        %v1394 = vshrl.u32 %v1393, 23
        %v1395 = vsub.s32 %v1394, 127
        %v1396 = vand.u32 2147483647, %v1272
        %v1397 = vand.u32 %v1396, 8388607
        %v1398 = vor.u32 %v1397, 8388608
        %v1399 = vsub.s32 0, %v1398
        %v1400 = vadd.s32 %v1395, 1
        %vm1401 = vcmp.gt.s32.totalorder %v1400, 0
        %v1402 = vsel %vm1401, %v1400, 0
        %v1403 = vshrl.u32 %v1402, 5
        %v1404 = vand.u32 %v1402, 31
        %v1405 = vsub.s32 32, %v1404
        %v1406 = vshrl.u32 683565275, %v1405
        %v1407 = vshll.u32 683565275, %v1404
        %v1408 = vshrl.u32 2475754826, %v1405
        %v1409 = vor.u32 %v1407, %v1408
        %v1410 = vshll.u32 2475754826, %v1404
        %v1411 = vshrl.u32 2131351028, %v1405
        %v1412 = vor.u32 %v1410, %v1411
        %v1413 = vshll.u32 2131351028, %v1404
        %v1414 = vshrl.u32 2102212464, %v1405
        %v1415 = vor.u32 %v1413, %v1414
        %v1416 = vshll.u32 2102212464, %v1404
        %v1417 = vshrl.u32 920167782, %v1405
        %v1418 = vor.u32 %v1416, %v1417
        %v1419 = vshll.u32 920167782, %v1404
        %v1420 = vshrl.u32 1326507024, %v1405
        %v1421 = vor.u32 %v1419, %v1420
        %vm1422 = vcmp.lt.s32.totalorder %v1403, 1
        %vm1423 = vcmp.lt.s32.totalorder %v1403, 2
        %vm1424 = vcmp.lt.s32.totalorder %v1403, 3
        %vm1425 = vcmp.lt.s32.totalorder %v1403, 4
        %v1426 = vsel %vm1422, %v1406, %v1409
        %v1427 = vsel %vm1425, %v1415, 2102212464
        %v1428 = vsel %vm1424, %v1412, %v1427
        %v1429 = vsel %vm1423, %v1426, %v1428
        %v1430 = vsel %vm1422, %v1409, %v1412
        %v1431 = vsel %vm1425, %v1418, 920167782
        %v1432 = vsel %vm1424, %v1415, %v1431
        %v1433 = vsel %vm1423, %v1430, %v1432
        %v1434 = vsel %vm1422, %v1412, %v1415
        %v1435 = vsel %vm1425, %v1421, 1326507024
        %v1436 = vsel %vm1424, %v1418, %v1435
        %v1437 = vsel %vm1423, %v1434, %v1436
        %v1438 = vshll.u32 %v1398, 8
        %v1439 = vmul.u32.u64.compose %v1438, %v1437
        %v1440 = vextract.low.u32 %v1439
        %v1441 = vextract.high.u32 %v1439
        %v1442 = vmul.u32.u64.compose %v1438, %v1433
        %v1443 = vextract.low.u32 %v1442
        %v1444 = vextract.high.u32 %v1442
        %v1445 = vmul.u32 %v1438, %v1429
        %v1446 = vadd.s32 %v1441, %v1443
        %vm1447 = vc.u32 %v1441, %v1443
        %v1448 = vadd.s32 %v1444, 1
        %v1449 = vsel %vm1447, %v1448, %v1444
        %v1450 = vadd.s32 %v1445, %v1449
        %v1451 = vadd.s32 %v1450, 536870912
        %v1452 = vshrl.u32 %v1451, 30
        %v1453 = vshll.u32 %v1452, 30
        %v1454 = vsub.s32 %v1450, %v1453
        %vm1455 = vcmp.lt.s32.totalorder %v1454, 0
        %v1456 = vsub.s32 0, %v1454
        %v1457 = vsel %vm1455, %v1456, %v1454
        %v1458 = vclz %v1457
        %v1459 = vsub.s32 %v1458, 2
        %vm1460 = vcmp.gt.s32.totalorder 0, %v1459
        %v1461 = vsel %vm1460, 0, %v1459
        %v1462 = vsub.s32 32, %v1461
        %v1463 = vshll.u32 %v1454, %v1461
        %v1464 = vshrl.u32 %v1446, %v1462
        %v1465 = vor.u32 %v1463, %v1464
        %v1466 = vsub.s32 4294967266, %v1461
        %v1467 = vadd.s32 %v1466, 127
        %v1468 = vshll.u32 %v1467, 23
        %v1469 = vor.u32 4788187, %v1468
        %v1470 = vand.u32 2147483647, %v1469
        %v1472 = vcvt.s32.f32 %v1465
        %v1473 = vmul.f32 %v1472, %v1470
        %v1474 = vxor.u32 %v1473, 2147483648
        %v1475 = vsel %vm1392, %v1474, %v1473
        %v1476 = vsub.s32 4, %v1452
        %v1477 = vsel %vm1392, %v1476, %v1452
        %v1478 = vsel %vm1391, %v1272, %v1475
        %v1479 = vsel %vm1391, 0, %v1477
        %v1480 = vcosq.f32.pop %v1478
        %v1481 = vsinq.f32.pop %v1478
        %vm1482 = vweird.f32 %v1272
        %v1483 = vand.u32 %v1479, 3
        %vm1484 = vcmp.lt.s32.totalorder %v1483, 2
        %vm1485 = vcmp.eq.s32.totalorder %v1483, 0
        %v1486 = vxor.u32 %v1481, 2147483648
        %v1487 = vsel %vm1485, %v1480, %v1486
        %vm1488 = vcmp.eq.s32.totalorder %v1483, 2
        %v1489 = vxor.u32 %v1480, 2147483648
        %v1490 = vsel %vm1488, %v1489, %v1481
        %v1491 = vsel %vm1484, %v1487, %v1490
        %v1492 = vsel %vm1482, nan, %v1491
        %v1493 = vand.u32 2147483647, %v1273
        %vm1494 = vcmp.le.f32.partialorder %v1493, 0.7853982
        %vm1495 = vcmp.lt.s32.totalorder %v1273, 0
        %v1496 = vand.u32 %v1273, 2139095040
        %v1497 = vshrl.u32 %v1496, 23
        %v1498 = vsub.s32 %v1497, 127
        %v1499 = vand.u32 2147483647, %v1273
        %v1500 = vand.u32 %v1499, 8388607
        %v1501 = vor.u32 %v1500, 8388608
        %v1502 = vsub.s32 0, %v1501
        %v1503 = vadd.s32 %v1498, 1
        %vm1504 = vcmp.gt.s32.totalorder %v1503, 0
        %v1505 = vsel %vm1504, %v1503, 0
        %v1506 = vshrl.u32 %v1505, 5
        %v1507 = vand.u32 %v1505, 31
        %v1508 = vsub.s32 32, %v1507
        %v1509 = vshrl.u32 683565275, %v1508
        %v1510 = vshll.u32 683565275, %v1507
        %v1511 = vshrl.u32 2475754826, %v1508
        %v1512 = vor.u32 %v1510, %v1511
        %v1513 = vshll.u32 2475754826, %v1507
        %v1514 = vshrl.u32 2131351028, %v1508
        %v1515 = vor.u32 %v1513, %v1514
        %v1516 = vshll.u32 2131351028, %v1507
        %v1517 = vshrl.u32 2102212464, %v1508
        %v1518 = vor.u32 %v1516, %v1517
        %v1519 = vshll.u32 2102212464, %v1507
        %v1520 = vshrl.u32 920167782, %v1508
        %v1521 = vor.u32 %v1519, %v1520
        %v1522 = vshll.u32 920167782, %v1507
        %v1523 = vshrl.u32 1326507024, %v1508
        %v1524 = vor.u32 %v1522, %v1523
        %vm1525 = vcmp.lt.s32.totalorder %v1506, 1
        %vm1526 = vcmp.lt.s32.totalorder %v1506, 2
        %vm1527 = vcmp.lt.s32.totalorder %v1506, 3
        %vm1528 = vcmp.lt.s32.totalorder %v1506, 4
        %v1529 = vsel %vm1525, %v1509, %v1512
        %v1530 = vsel %vm1528, %v1518, 2102212464
        %v1531 = vsel %vm1527, %v1515, %v1530
        %v1532 = vsel %vm1526, %v1529, %v1531
        %v1533 = vsel %vm1525, %v1512, %v1515
        %v1534 = vsel %vm1528, %v1521, 920167782
        %v1535 = vsel %vm1527, %v1518, %v1534
        %v1536 = vsel %vm1526, %v1533, %v1535
        %v1537 = vsel %vm1525, %v1515, %v1518
        %v1538 = vsel %vm1528, %v1524, 1326507024
        %v1539 = vsel %vm1527, %v1521, %v1538
        %v1540 = vsel %vm1526, %v1537, %v1539
        %v1541 = vshll.u32 %v1501, 8
        %v1542 = vmul.u32.u64.compose %v1541, %v1540
        %v1543 = vextract.low.u32 %v1542
        %v1544 = vextract.high.u32 %v1542
        %v1545 = vmul.u32.u64.compose %v1541, %v1536
        %v1546 = vextract.low.u32 %v1545
        %v1547 = vextract.high.u32 %v1545
        %v1548 = vmul.u32 %v1541, %v1532
        %v1549 = vadd.s32 %v1544, %v1546
        %vm1550 = vc.u32 %v1544, %v1546
        %v1551 = vadd.s32 %v1547, 1
        %v1552 = vsel %vm1550, %v1551, %v1547
        %v1553 = vadd.s32 %v1548, %v1552
        %v1554 = vadd.s32 %v1553, 536870912
        %v1555 = vshrl.u32 %v1554, 30
        %v1556 = vshll.u32 %v1555, 30
        %v1557 = vsub.s32 %v1553, %v1556
        %vm1558 = vcmp.lt.s32.totalorder %v1557, 0
        %v1559 = vsub.s32 0, %v1557
        %v1560 = vsel %vm1558, %v1559, %v1557
        %v1561 = vclz %v1560
        %v1562 = vsub.s32 %v1561, 2
        %vm1563 = vcmp.gt.s32.totalorder 0, %v1562
        %v1564 = vsel %vm1563, 0, %v1562
        %v1565 = vsub.s32 32, %v1564
        %v1566 = vshll.u32 %v1557, %v1564
        %v1567 = vshrl.u32 %v1549, %v1565
        %v1568 = vor.u32 %v1566, %v1567
        %v1569 = vsub.s32 4294967266, %v1564
        %v1570 = vadd.s32 %v1569, 127
        %v1571 = vshll.u32 %v1570, 23
        %v1572 = vor.u32 4788187, %v1571
        %v1573 = vand.u32 2147483647, %v1572
        %v1575 = vcvt.s32.f32 %v1568
        %v1576 = vmul.f32 %v1575, %v1573
        %v1577 = vxor.u32 %v1576, 2147483648
        %v1578 = vsel %vm1495, %v1577, %v1576
        %v1579 = vsub.s32 4, %v1555
        %v1580 = vsel %vm1495, %v1579, %v1555
        %v1581 = vsel %vm1494, %v1273, %v1578
        %v1582 = vsel %vm1494, 0, %v1580
        %v1583 = vcosq.f32.pop %v1581
        %v1584 = vsinq.f32.pop %v1581
        %vm1585 = vweird.f32 %v1273
        %v1586 = vand.u32 %v1582, 3
        %vm1587 = vcmp.lt.s32.totalorder %v1586, 2
        %vm1588 = vcmp.eq.s32.totalorder %v1586, 0
        %v1589 = vxor.u32 %v1584, 2147483648
        %v1590 = vsel %vm1588, %v1583, %v1589
        %vm1591 = vcmp.eq.s32.totalorder %v1586, 2
        %v1592 = vxor.u32 %v1583, 2147483648
        %v1593 = vsel %vm1591, %v1592, %v1584
        %v1594 = vsel %vm1587, %v1590, %v1593
        %v1595 = vsel %vm1585, nan, %v1594
        %v1596 = vand.u32 2147483647, %v1274
        %vm1597 = vcmp.le.f32.partialorder %v1596, 0.7853982
        %vm1598 = vcmp.lt.s32.totalorder %v1274, 0
        %v1599 = vand.u32 %v1274, 2139095040
        %v1600 = vshrl.u32 %v1599, 23
        %v1601 = vsub.s32 %v1600, 127
        %v1602 = vand.u32 2147483647, %v1274
        %v1603 = vand.u32 %v1602, 8388607
        %v1604 = vor.u32 %v1603, 8388608
        %v1605 = vsub.s32 0, %v1604
        %v1606 = vadd.s32 %v1601, 1
        %vm1607 = vcmp.gt.s32.totalorder %v1606, 0
        %v1608 = vsel %vm1607, %v1606, 0
        %v1609 = vshrl.u32 %v1608, 5
        %v1610 = vand.u32 %v1608, 31
        %v1611 = vsub.s32 32, %v1610
        %v1612 = vshrl.u32 683565275, %v1611
        %v1613 = vshll.u32 683565275, %v1610
        %v1614 = vshrl.u32 2475754826, %v1611
        %v1615 = vor.u32 %v1613, %v1614
        %v1616 = vshll.u32 2475754826, %v1610
        %v1617 = vshrl.u32 2131351028, %v1611
        %v1618 = vor.u32 %v1616, %v1617
        %v1619 = vshll.u32 2131351028, %v1610
        %v1620 = vshrl.u32 2102212464, %v1611
        %v1621 = vor.u32 %v1619, %v1620
        %v1622 = vshll.u32 2102212464, %v1610
        %v1623 = vshrl.u32 920167782, %v1611
        %v1624 = vor.u32 %v1622, %v1623
        %v1625 = vshll.u32 920167782, %v1610
        %v1626 = vshrl.u32 1326507024, %v1611
        %v1627 = vor.u32 %v1625, %v1626
        %vm1628 = vcmp.lt.s32.totalorder %v1609, 1
        %vm1629 = vcmp.lt.s32.totalorder %v1609, 2
        %vm1630 = vcmp.lt.s32.totalorder %v1609, 3
        %vm1631 = vcmp.lt.s32.totalorder %v1609, 4
        %v1632 = vsel %vm1628, %v1612, %v1615
        %v1633 = vsel %vm1631, %v1621, 2102212464
        %v1634 = vsel %vm1630, %v1618, %v1633
        %v1635 = vsel %vm1629, %v1632, %v1634
        %v1636 = vsel %vm1628, %v1615, %v1618
        %v1637 = vsel %vm1631, %v1624, 920167782
        %v1638 = vsel %vm1630, %v1621, %v1637
        %v1639 = vsel %vm1629, %v1636, %v1638
        %v1640 = vsel %vm1628, %v1618, %v1621
        %v1641 = vsel %vm1631, %v1627, 1326507024
        %v1642 = vsel %vm1630, %v1624, %v1641
        %v1643 = vsel %vm1629, %v1640, %v1642
        %v1644 = vshll.u32 %v1604, 8
        %v1645 = vmul.u32.u64.compose %v1644, %v1643
        %v1646 = vextract.low.u32 %v1645
        %v1647 = vextract.high.u32 %v1645
        %v1648 = vmul.u32.u64.compose %v1644, %v1639
        %v1649 = vextract.low.u32 %v1648
        %v1650 = vextract.high.u32 %v1648
        %v1651 = vmul.u32 %v1644, %v1635
        %v1652 = vadd.s32 %v1647, %v1649
        %vm1653 = vc.u32 %v1647, %v1649
        %v1654 = vadd.s32 %v1650, 1
        %v1655 = vsel %vm1653, %v1654, %v1650
        %v1656 = vadd.s32 %v1651, %v1655
        %v1657 = vadd.s32 %v1656, 536870912
        %v1658 = vshrl.u32 %v1657, 30
        %v1659 = vshll.u32 %v1658, 30
        %v1660 = vsub.s32 %v1656, %v1659
        %vm1661 = vcmp.lt.s32.totalorder %v1660, 0
        %v1662 = vsub.s32 0, %v1660
        %v1663 = vsel %vm1661, %v1662, %v1660
        %v1664 = vclz %v1663
        %v1665 = vsub.s32 %v1664, 2
        %vm1666 = vcmp.gt.s32.totalorder 0, %v1665
        %v1667 = vsel %vm1666, 0, %v1665
        %v1668 = vsub.s32 32, %v1667
        %v1669 = vshll.u32 %v1660, %v1667
        %v1670 = vshrl.u32 %v1652, %v1668
        %v1671 = vor.u32 %v1669, %v1670
        %v1672 = vsub.s32 4294967266, %v1667
        %v1673 = vadd.s32 %v1672, 127
        %v1674 = vshll.u32 %v1673, 23
        %v1675 = vor.u32 4788187, %v1674
        %v1676 = vand.u32 2147483647, %v1675
        %v1678 = vcvt.s32.f32 %v1671
        %v1679 = vmul.f32 %v1678, %v1676
        %v1680 = vxor.u32 %v1679, 2147483648
        %v1681 = vsel %vm1598, %v1680, %v1679
        %v1682 = vsub.s32 4, %v1658
        %v1683 = vsel %vm1598, %v1682, %v1658
        %v1684 = vsel %vm1597, %v1274, %v1681
        %v1685 = vsel %vm1597, 0, %v1683
        %v1686 = vcosq.f32.pop %v1684
        %v1687 = vsinq.f32.pop %v1684
        %vm1688 = vweird.f32 %v1274
        %v1689 = vand.u32 %v1685, 3
        %vm1690 = vcmp.lt.s32.totalorder %v1689, 2
        %vm1691 = vcmp.eq.s32.totalorder %v1689, 0
        %v1692 = vxor.u32 %v1687, 2147483648
        %v1693 = vsel %vm1691, %v1686, %v1692
        %vm1694 = vcmp.eq.s32.totalorder %v1689, 2
        %v1695 = vxor.u32 %v1686, 2147483648
        %v1696 = vsel %vm1694, %v1695, %v1687
        %v1697 = vsel %vm1690, %v1693, %v1696
        %v1698 = vsel %vm1688, nan, %v1697
        %v1699 = vand.u32 2147483647, %v1275
        %vm1700 = vcmp.le.f32.partialorder %v1699, 0.7853982
        %vm1701 = vcmp.lt.s32.totalorder %v1275, 0
        %v1702 = vand.u32 %v1275, 2139095040
        %v1703 = vshrl.u32 %v1702, 23
        %v1704 = vsub.s32 %v1703, 127
        %v1705 = vand.u32 2147483647, %v1275
        %v1706 = vand.u32 %v1705, 8388607
        %v1707 = vor.u32 %v1706, 8388608
        %v1708 = vsub.s32 0, %v1707
        %v1709 = vadd.s32 %v1704, 1
        %vm1710 = vcmp.gt.s32.totalorder %v1709, 0
        %v1711 = vsel %vm1710, %v1709, 0
        %v1712 = vshrl.u32 %v1711, 5
        %v1713 = vand.u32 %v1711, 31
        %v1714 = vsub.s32 32, %v1713
        %v1715 = vshrl.u32 683565275, %v1714
        %v1716 = vshll.u32 683565275, %v1713
        %v1717 = vshrl.u32 2475754826, %v1714
        %v1718 = vor.u32 %v1716, %v1717
        %v1719 = vshll.u32 2475754826, %v1713
        %v1720 = vshrl.u32 2131351028, %v1714
        %v1721 = vor.u32 %v1719, %v1720
        %v1722 = vshll.u32 2131351028, %v1713
        %v1723 = vshrl.u32 2102212464, %v1714
        %v1724 = vor.u32 %v1722, %v1723
        %v1725 = vshll.u32 2102212464, %v1713
        %v1726 = vshrl.u32 920167782, %v1714
        %v1727 = vor.u32 %v1725, %v1726
        %v1728 = vshll.u32 920167782, %v1713
        %v1729 = vshrl.u32 1326507024, %v1714
        %v1730 = vor.u32 %v1728, %v1729
        %vm1731 = vcmp.lt.s32.totalorder %v1712, 1
        %vm1732 = vcmp.lt.s32.totalorder %v1712, 2
        %vm1733 = vcmp.lt.s32.totalorder %v1712, 3
        %vm1734 = vcmp.lt.s32.totalorder %v1712, 4
        %v1735 = vsel %vm1731, %v1715, %v1718
        %v1736 = vsel %vm1734, %v1724, 2102212464
        %v1737 = vsel %vm1733, %v1721, %v1736
        %v1738 = vsel %vm1732, %v1735, %v1737
        %v1739 = vsel %vm1731, %v1718, %v1721
        %v1740 = vsel %vm1734, %v1727, 920167782
        %v1741 = vsel %vm1733, %v1724, %v1740
        %v1742 = vsel %vm1732, %v1739, %v1741
        %v1743 = vsel %vm1731, %v1721, %v1724
        %v1744 = vsel %vm1734, %v1730, 1326507024
        %v1745 = vsel %vm1733, %v1727, %v1744
        %v1746 = vsel %vm1732, %v1743, %v1745
        %v1747 = vshll.u32 %v1707, 8
        %v1748 = vmul.u32.u64.compose %v1747, %v1746
        %v1749 = vextract.low.u32 %v1748
        %v1750 = vextract.high.u32 %v1748
        %v1751 = vmul.u32.u64.compose %v1747, %v1742
        %v1752 = vextract.low.u32 %v1751
        %v1753 = vextract.high.u32 %v1751
        %v1754 = vmul.u32 %v1747, %v1738
        %v1755 = vadd.s32 %v1750, %v1752
        %vm1756 = vc.u32 %v1750, %v1752
        %v1757 = vadd.s32 %v1753, 1
        %v1758 = vsel %vm1756, %v1757, %v1753
        %v1759 = vadd.s32 %v1754, %v1758
        %v1760 = vadd.s32 %v1759, 536870912
        %v1761 = vshrl.u32 %v1760, 30
        %v1762 = vshll.u32 %v1761, 30
        %v1763 = vsub.s32 %v1759, %v1762
        %vm1764 = vcmp.lt.s32.totalorder %v1763, 0
        %v1765 = vsub.s32 0, %v1763
        %v1766 = vsel %vm1764, %v1765, %v1763
        %v1767 = vclz %v1766
        %v1768 = vsub.s32 %v1767, 2
        %vm1769 = vcmp.gt.s32.totalorder 0, %v1768
        %v1770 = vsel %vm1769, 0, %v1768
        %v1771 = vsub.s32 32, %v1770
        %v1772 = vshll.u32 %v1763, %v1770
        %v1773 = vshrl.u32 %v1755, %v1771
        %v1774 = vor.u32 %v1772, %v1773
        %v1775 = vsub.s32 4294967266, %v1770
        %v1776 = vadd.s32 %v1775, 127
        %v1777 = vshll.u32 %v1776, 23
        %v1778 = vor.u32 4788187, %v1777
        %v1779 = vand.u32 2147483647, %v1778
        %v1781 = vcvt.s32.f32 %v1774
        %v1782 = vmul.f32 %v1781, %v1779
        %v1783 = vxor.u32 %v1782, 2147483648
        %v1784 = vsel %vm1701, %v1783, %v1782
        %v1785 = vsub.s32 4, %v1761
        %v1786 = vsel %vm1701, %v1785, %v1761
        %v1787 = vsel %vm1700, %v1275, %v1784
        %v1788 = vsel %vm1700, 0, %v1786
        %v1789 = vcosq.f32.pop %v1787
        %v1790 = vsinq.f32.pop %v1787
        %vm1791 = vweird.f32 %v1275
        %v1792 = vand.u32 %v1788, 3
        %vm1793 = vcmp.lt.s32.totalorder %v1792, 2
        %vm1794 = vcmp.eq.s32.totalorder %v1792, 0
        %v1795 = vxor.u32 %v1790, 2147483648
        %v1796 = vsel %vm1794, %v1789, %v1795
        %vm1797 = vcmp.eq.s32.totalorder %v1792, 2
        %v1798 = vxor.u32 %v1789, 2147483648
        %v1799 = vsel %vm1797, %v1798, %v1790
        %v1800 = vsel %vm1793, %v1796, %v1799
        %v1801 = vsel %vm1791, nan, %v1800
        %v1802 = vand.u32 2147483647, %v1276
        %vm1803 = vcmp.le.f32.partialorder %v1802, 0.7853982
        %vm1804 = vcmp.lt.s32.totalorder %v1276, 0
        %v1805 = vand.u32 %v1276, 2139095040
        %v1806 = vshrl.u32 %v1805, 23
        %v1807 = vsub.s32 %v1806, 127
        %v1808 = vand.u32 2147483647, %v1276
        %v1809 = vand.u32 %v1808, 8388607
        %v1810 = vor.u32 %v1809, 8388608
        %v1811 = vsub.s32 0, %v1810
        %v1812 = vadd.s32 %v1807, 1
        %vm1813 = vcmp.gt.s32.totalorder %v1812, 0
        %v1814 = vsel %vm1813, %v1812, 0
        %v1815 = vshrl.u32 %v1814, 5
        %v1816 = vand.u32 %v1814, 31
        %v1817 = vsub.s32 32, %v1816
        %v1818 = vshrl.u32 683565275, %v1817
        %v1819 = vshll.u32 683565275, %v1816
        %v1820 = vshrl.u32 2475754826, %v1817
        %v1821 = vor.u32 %v1819, %v1820
        %v1822 = vshll.u32 2475754826, %v1816
        %v1823 = vshrl.u32 2131351028, %v1817
        %v1824 = vor.u32 %v1822, %v1823
        %v1825 = vshll.u32 2131351028, %v1816
        %v1826 = vshrl.u32 2102212464, %v1817
        %v1827 = vor.u32 %v1825, %v1826
        %v1828 = vshll.u32 2102212464, %v1816
        %v1829 = vshrl.u32 920167782, %v1817
        %v1830 = vor.u32 %v1828, %v1829
        %v1831 = vshll.u32 920167782, %v1816
        %v1832 = vshrl.u32 1326507024, %v1817
        %v1833 = vor.u32 %v1831, %v1832
        %vm1834 = vcmp.lt.s32.totalorder %v1815, 1
        %vm1835 = vcmp.lt.s32.totalorder %v1815, 2
        %vm1836 = vcmp.lt.s32.totalorder %v1815, 3
        %vm1837 = vcmp.lt.s32.totalorder %v1815, 4
        %v1838 = vsel %vm1834, %v1818, %v1821
        %v1839 = vsel %vm1837, %v1827, 2102212464
        %v1840 = vsel %vm1836, %v1824, %v1839
        %v1841 = vsel %vm1835, %v1838, %v1840
        %v1842 = vsel %vm1834, %v1821, %v1824
        %v1843 = vsel %vm1837, %v1830, 920167782
        %v1844 = vsel %vm1836, %v1827, %v1843
        %v1845 = vsel %vm1835, %v1842, %v1844
        %v1846 = vsel %vm1834, %v1824, %v1827
        %v1847 = vsel %vm1837, %v1833, 1326507024
        %v1848 = vsel %vm1836, %v1830, %v1847
        %v1849 = vsel %vm1835, %v1846, %v1848
        %v1850 = vshll.u32 %v1810, 8
        %v1851 = vmul.u32.u64.compose %v1850, %v1849
        %v1852 = vextract.low.u32 %v1851
        %v1853 = vextract.high.u32 %v1851
        %v1854 = vmul.u32.u64.compose %v1850, %v1845
        %v1855 = vextract.low.u32 %v1854
        %v1856 = vextract.high.u32 %v1854
        %v1857 = vmul.u32 %v1850, %v1841
        %v1858 = vadd.s32 %v1853, %v1855
        %vm1859 = vc.u32 %v1853, %v1855
        %v1860 = vadd.s32 %v1856, 1
        %v1861 = vsel %vm1859, %v1860, %v1856
        %v1862 = vadd.s32 %v1857, %v1861
        %v1863 = vadd.s32 %v1862, 536870912
        %v1864 = vshrl.u32 %v1863, 30
        %v1865 = vshll.u32 %v1864, 30
        %v1866 = vsub.s32 %v1862, %v1865
        %vm1867 = vcmp.lt.s32.totalorder %v1866, 0
        %v1868 = vsub.s32 0, %v1866
        %v1869 = vsel %vm1867, %v1868, %v1866
        %v1870 = vclz %v1869
        %v1871 = vsub.s32 %v1870, 2
        %vm1872 = vcmp.gt.s32.totalorder 0, %v1871
        %v1873 = vsel %vm1872, 0, %v1871
        %v1874 = vsub.s32 32, %v1873
        %v1875 = vshll.u32 %v1866, %v1873
        %v1876 = vshrl.u32 %v1858, %v1874
        %v1877 = vor.u32 %v1875, %v1876
        %v1878 = vsub.s32 4294967266, %v1873
        %v1879 = vadd.s32 %v1878, 127
        %v1880 = vshll.u32 %v1879, 23
        %v1881 = vor.u32 4788187, %v1880
        %v1882 = vand.u32 2147483647, %v1881
        %v1884 = vcvt.s32.f32 %v1877
        %v1885 = vmul.f32 %v1884, %v1882
        %v1886 = vxor.u32 %v1885, 2147483648
        %v1887 = vsel %vm1804, %v1886, %v1885
        %v1888 = vsub.s32 4, %v1864
        %v1889 = vsel %vm1804, %v1888, %v1864
        %v1890 = vsel %vm1803, %v1276, %v1887
        %v1891 = vsel %vm1803, 0, %v1889
        %v1892 = vcosq.f32.pop %v1890
        %v1893 = vsinq.f32.pop %v1890
        %vm1894 = vweird.f32 %v1276
        %v1895 = vand.u32 %v1891, 3
        %vm1896 = vcmp.lt.s32.totalorder %v1895, 2
        %vm1897 = vcmp.eq.s32.totalorder %v1895, 0
        %v1898 = vxor.u32 %v1893, 2147483648
        %v1899 = vsel %vm1897, %v1892, %v1898
        %vm1900 = vcmp.eq.s32.totalorder %v1895, 2
        %v1901 = vxor.u32 %v1892, 2147483648
        %v1902 = vsel %vm1900, %v1901, %v1893
        %v1903 = vsel %vm1896, %v1899, %v1902
        %v1904 = vsel %vm1894, nan, %v1903
        %v1905 = vand.u32 2147483647, %v1277
        %vm1906 = vcmp.le.f32.partialorder %v1905, 0.7853982
        %vm1907 = vcmp.lt.s32.totalorder %v1277, 0
        %v1908 = vand.u32 %v1277, 2139095040
        %v1909 = vshrl.u32 %v1908, 23
        %v1910 = vsub.s32 %v1909, 127
        %v1911 = vand.u32 2147483647, %v1277
        %v1912 = vand.u32 %v1911, 8388607
        %v1913 = vor.u32 %v1912, 8388608
        %v1914 = vsub.s32 0, %v1913
        %v1915 = vadd.s32 %v1910, 1
        %vm1916 = vcmp.gt.s32.totalorder %v1915, 0
        %v1917 = vsel %vm1916, %v1915, 0
        %v1918 = vshrl.u32 %v1917, 5
        %v1919 = vand.u32 %v1917, 31
        %v1920 = vsub.s32 32, %v1919
        %v1921 = vshrl.u32 683565275, %v1920
        %v1922 = vshll.u32 683565275, %v1919
        %v1923 = vshrl.u32 2475754826, %v1920
        %v1924 = vor.u32 %v1922, %v1923
        %v1925 = vshll.u32 2475754826, %v1919
        %v1926 = vshrl.u32 2131351028, %v1920
        %v1927 = vor.u32 %v1925, %v1926
        %v1928 = vshll.u32 2131351028, %v1919
        %v1929 = vshrl.u32 2102212464, %v1920
        %v1930 = vor.u32 %v1928, %v1929
        %v1931 = vshll.u32 2102212464, %v1919
        %v1932 = vshrl.u32 920167782, %v1920
        %v1933 = vor.u32 %v1931, %v1932
        %v1934 = vshll.u32 920167782, %v1919
        %v1935 = vshrl.u32 1326507024, %v1920
        %v1936 = vor.u32 %v1934, %v1935
        %vm1937 = vcmp.lt.s32.totalorder %v1918, 1
        %vm1938 = vcmp.lt.s32.totalorder %v1918, 2
        %vm1939 = vcmp.lt.s32.totalorder %v1918, 3
        %vm1940 = vcmp.lt.s32.totalorder %v1918, 4
        %v1941 = vsel %vm1937, %v1921, %v1924
        %v1942 = vsel %vm1940, %v1930, 2102212464
        %v1943 = vsel %vm1939, %v1927, %v1942
        %v1944 = vsel %vm1938, %v1941, %v1943
        %v1945 = vsel %vm1937, %v1924, %v1927
        %v1946 = vsel %vm1940, %v1933, 920167782
        %v1947 = vsel %vm1939, %v1930, %v1946
        %v1948 = vsel %vm1938, %v1945, %v1947
        %v1949 = vsel %vm1937, %v1927, %v1930
        %v1950 = vsel %vm1940, %v1936, 1326507024
        %v1951 = vsel %vm1939, %v1933, %v1950
        %v1952 = vsel %vm1938, %v1949, %v1951
        %v1953 = vshll.u32 %v1913, 8
        %v1954 = vmul.u32.u64.compose %v1953, %v1952
        %v1955 = vextract.low.u32 %v1954
        %v1956 = vextract.high.u32 %v1954
        %v1957 = vmul.u32.u64.compose %v1953, %v1948
        %v1958 = vextract.low.u32 %v1957
        %v1959 = vextract.high.u32 %v1957
        %v1960 = vmul.u32 %v1953, %v1944
        %v1961 = vadd.s32 %v1956, %v1958
        %vm1962 = vc.u32 %v1956, %v1958
        %v1963 = vadd.s32 %v1959, 1
        %v1964 = vsel %vm1962, %v1963, %v1959
        %v1965 = vadd.s32 %v1960, %v1964
        %v1966 = vadd.s32 %v1965, 536870912
        %v1967 = vshrl.u32 %v1966, 30
        %v1968 = vshll.u32 %v1967, 30
        %v1969 = vsub.s32 %v1965, %v1968
        %vm1970 = vcmp.lt.s32.totalorder %v1969, 0
        %v1971 = vsub.s32 0, %v1969
        %v1972 = vsel %vm1970, %v1971, %v1969
        %v1973 = vclz %v1972
        %v1974 = vsub.s32 %v1973, 2
        %vm1975 = vcmp.gt.s32.totalorder 0, %v1974
        %v1976 = vsel %vm1975, 0, %v1974
        %v1977 = vsub.s32 32, %v1976
        %v1978 = vshll.u32 %v1969, %v1976
        %v1979 = vshrl.u32 %v1961, %v1977
        %v1980 = vor.u32 %v1978, %v1979
        %v1981 = vsub.s32 4294967266, %v1976
        %v1982 = vadd.s32 %v1981, 127
        %v1983 = vshll.u32 %v1982, 23
        %v1984 = vor.u32 4788187, %v1983
        %v1985 = vand.u32 2147483647, %v1984
        %v1987 = vcvt.s32.f32 %v1980
        %v1988 = vmul.f32 %v1987, %v1985
        %v1989 = vxor.u32 %v1988, 2147483648
        %v1990 = vsel %vm1907, %v1989, %v1988
        %v1991 = vsub.s32 4, %v1967
        %v1992 = vsel %vm1907, %v1991, %v1967
        %v1993 = vsel %vm1906, %v1277, %v1990
        %v1994 = vsel %vm1906, 0, %v1992
        %v1995 = vcosq.f32.pop %v1993
        %v1996 = vsinq.f32.pop %v1993
        %vm1997 = vweird.f32 %v1277
        %v1998 = vand.u32 %v1994, 3
        %vm1999 = vcmp.lt.s32.totalorder %v1998, 2
        %vm2000 = vcmp.eq.s32.totalorder %v1998, 0
        %v2001 = vxor.u32 %v1996, 2147483648
        %v2002 = vsel %vm2000, %v1995, %v2001
        %vm2003 = vcmp.eq.s32.totalorder %v1998, 2
        %v2004 = vxor.u32 %v1995, 2147483648
        %v2005 = vsel %vm2003, %v2004, %v1996
        %v2006 = vsel %vm1999, %v2002, %v2005
        %v2007 = vsel %vm1997, nan, %v2006
        %v2008 = vand.u32 2147483647, %v1278
        %vm2009 = vcmp.le.f32.partialorder %v2008, 0.7853982
        %vm2010 = vcmp.lt.s32.totalorder %v1278, 0
        %v2011 = vand.u32 %v1278, 2139095040
        %v2012 = vshrl.u32 %v2011, 23
        %v2013 = vsub.s32 %v2012, 127
        %v2014 = vand.u32 2147483647, %v1278
        %v2015 = vand.u32 %v2014, 8388607
        %v2016 = vor.u32 %v2015, 8388608
        %v2017 = vsub.s32 0, %v2016
        %v2018 = vadd.s32 %v2013, 1
        %vm2019 = vcmp.gt.s32.totalorder %v2018, 0
        %v2020 = vsel %vm2019, %v2018, 0
        %v2021 = vshrl.u32 %v2020, 5
        %v2022 = vand.u32 %v2020, 31
        %v2023 = vsub.s32 32, %v2022
        %v2024 = vshrl.u32 683565275, %v2023
        %v2025 = vshll.u32 683565275, %v2022
        %v2026 = vshrl.u32 2475754826, %v2023
        %v2027 = vor.u32 %v2025, %v2026
        %v2028 = vshll.u32 2475754826, %v2022
        %v2029 = vshrl.u32 2131351028, %v2023
        %v2030 = vor.u32 %v2028, %v2029
        %v2031 = vshll.u32 2131351028, %v2022
        %v2032 = vshrl.u32 2102212464, %v2023
        %v2033 = vor.u32 %v2031, %v2032
        %v2034 = vshll.u32 2102212464, %v2022
        %v2035 = vshrl.u32 920167782, %v2023
        %v2036 = vor.u32 %v2034, %v2035
        %v2037 = vshll.u32 920167782, %v2022
        %v2038 = vshrl.u32 1326507024, %v2023
        %v2039 = vor.u32 %v2037, %v2038
        %vm2040 = vcmp.lt.s32.totalorder %v2021, 1
        %vm2041 = vcmp.lt.s32.totalorder %v2021, 2
        %vm2042 = vcmp.lt.s32.totalorder %v2021, 3
        %vm2043 = vcmp.lt.s32.totalorder %v2021, 4
        %v2044 = vsel %vm2040, %v2024, %v2027
        %v2045 = vsel %vm2043, %v2033, 2102212464
        %v2046 = vsel %vm2042, %v2030, %v2045
        %v2047 = vsel %vm2041, %v2044, %v2046
        %v2048 = vsel %vm2040, %v2027, %v2030
        %v2049 = vsel %vm2043, %v2036, 920167782
        %v2050 = vsel %vm2042, %v2033, %v2049
        %v2051 = vsel %vm2041, %v2048, %v2050
        %v2052 = vsel %vm2040, %v2030, %v2033
        %v2053 = vsel %vm2043, %v2039, 1326507024
        %v2054 = vsel %vm2042, %v2036, %v2053
        %v2055 = vsel %vm2041, %v2052, %v2054
        %v2056 = vshll.u32 %v2016, 8
        %v2057 = vmul.u32.u64.compose %v2056, %v2055
        %v2058 = vextract.low.u32 %v2057
        %v2059 = vextract.high.u32 %v2057
        %v2060 = vmul.u32.u64.compose %v2056, %v2051
        %v2061 = vextract.low.u32 %v2060
        %v2062 = vextract.high.u32 %v2060
        %v2063 = vmul.u32 %v2056, %v2047
        %v2064 = vadd.s32 %v2059, %v2061
        %vm2065 = vc.u32 %v2059, %v2061
        %v2066 = vadd.s32 %v2062, 1
        %v2067 = vsel %vm2065, %v2066, %v2062
        %v2068 = vadd.s32 %v2063, %v2067
        %v2069 = vadd.s32 %v2068, 536870912
        %v2070 = vshrl.u32 %v2069, 30
        %v2071 = vshll.u32 %v2070, 30
        %v2072 = vsub.s32 %v2068, %v2071
        %vm2073 = vcmp.lt.s32.totalorder %v2072, 0
        %v2074 = vsub.s32 0, %v2072
        %v2075 = vsel %vm2073, %v2074, %v2072
        %v2076 = vclz %v2075
        %v2077 = vsub.s32 %v2076, 2
        %vm2078 = vcmp.gt.s32.totalorder 0, %v2077
        %v2079 = vsel %vm2078, 0, %v2077
        %v2080 = vsub.s32 32, %v2079
        %v2081 = vshll.u32 %v2072, %v2079
        %v2082 = vshrl.u32 %v2064, %v2080
        %v2083 = vor.u32 %v2081, %v2082
        %v2084 = vsub.s32 4294967266, %v2079
        %v2085 = vadd.s32 %v2084, 127
        %v2086 = vshll.u32 %v2085, 23
        %v2087 = vor.u32 4788187, %v2086
        %v2088 = vand.u32 2147483647, %v2087
        %v2090 = vcvt.s32.f32 %v2083
        %v2091 = vmul.f32 %v2090, %v2088
        %v2092 = vxor.u32 %v2091, 2147483648
        %v2093 = vsel %vm2010, %v2092, %v2091
        %v2094 = vsub.s32 4, %v2070
        %v2095 = vsel %vm2010, %v2094, %v2070
        %v2096 = vsel %vm2009, %v1278, %v2093
        %v2097 = vsel %vm2009, 0, %v2095
        %v2098 = vcosq.f32.pop %v2096
        %v2099 = vsinq.f32.pop %v2096
        %vm2100 = vweird.f32 %v1278
        %v2101 = vand.u32 %v2097, 3
        %vm2102 = vcmp.lt.s32.totalorder %v2101, 2
        %vm2103 = vcmp.eq.s32.totalorder %v2101, 0
        %v2104 = vxor.u32 %v2099, 2147483648
        %v2105 = vsel %vm2103, %v2098, %v2104
        %vm2106 = vcmp.eq.s32.totalorder %v2101, 2
        %v2107 = vxor.u32 %v2098, 2147483648
        %v2108 = vsel %vm2106, %v2107, %v2099
        %v2109 = vsel %vm2102, %v2105, %v2108
        %v2110 = vsel %vm2100, nan, %v2109
        %v2111 = vand.u32 2147483647, %v1279
        %vm2112 = vcmp.le.f32.partialorder %v2111, 0.7853982
        %vm2113 = vcmp.lt.s32.totalorder %v1279, 0
        %v2114 = vand.u32 %v1279, 2139095040
        %v2115 = vshrl.u32 %v2114, 23
        %v2116 = vsub.s32 %v2115, 127
        %v2117 = vand.u32 2147483647, %v1279
        %v2118 = vand.u32 %v2117, 8388607
        %v2119 = vor.u32 %v2118, 8388608
        %v2120 = vsub.s32 0, %v2119
        %v2121 = vadd.s32 %v2116, 1
        %vm2122 = vcmp.gt.s32.totalorder %v2121, 0
        %v2123 = vsel %vm2122, %v2121, 0
        %v2124 = vshrl.u32 %v2123, 5
        %v2125 = vand.u32 %v2123, 31
        %v2126 = vsub.s32 32, %v2125
        %v2127 = vshrl.u32 683565275, %v2126
        %v2128 = vshll.u32 683565275, %v2125
        %v2129 = vshrl.u32 2475754826, %v2126
        %v2130 = vor.u32 %v2128, %v2129
        %v2131 = vshll.u32 2475754826, %v2125
        %v2132 = vshrl.u32 2131351028, %v2126
        %v2133 = vor.u32 %v2131, %v2132
        %v2134 = vshll.u32 2131351028, %v2125
        %v2135 = vshrl.u32 2102212464, %v2126
        %v2136 = vor.u32 %v2134, %v2135
        %v2137 = vshll.u32 2102212464, %v2125
        %v2138 = vshrl.u32 920167782, %v2126
        %v2139 = vor.u32 %v2137, %v2138
        %v2140 = vshll.u32 920167782, %v2125
        %v2141 = vshrl.u32 1326507024, %v2126
        %v2142 = vor.u32 %v2140, %v2141
        %vm2143 = vcmp.lt.s32.totalorder %v2124, 1
        %vm2144 = vcmp.lt.s32.totalorder %v2124, 2
        %vm2145 = vcmp.lt.s32.totalorder %v2124, 3
        %vm2146 = vcmp.lt.s32.totalorder %v2124, 4
        %v2147 = vsel %vm2143, %v2127, %v2130
        %v2148 = vsel %vm2146, %v2136, 2102212464
        %v2149 = vsel %vm2145, %v2133, %v2148
        %v2150 = vsel %vm2144, %v2147, %v2149
        %v2151 = vsel %vm2143, %v2130, %v2133
        %v2152 = vsel %vm2146, %v2139, 920167782
        %v2153 = vsel %vm2145, %v2136, %v2152
        %v2154 = vsel %vm2144, %v2151, %v2153
        %v2155 = vsel %vm2143, %v2133, %v2136
        %v2156 = vsel %vm2146, %v2142, 1326507024
        %v2157 = vsel %vm2145, %v2139, %v2156
        %v2158 = vsel %vm2144, %v2155, %v2157
        %v2159 = vshll.u32 %v2119, 8
        %v2160 = vmul.u32.u64.compose %v2159, %v2158
        %v2161 = vextract.low.u32 %v2160
        %v2162 = vextract.high.u32 %v2160
        %v2163 = vmul.u32.u64.compose %v2159, %v2154
        %v2164 = vextract.low.u32 %v2163
        %v2165 = vextract.high.u32 %v2163
        %v2166 = vmul.u32 %v2159, %v2150
        %v2167 = vadd.s32 %v2162, %v2164
        %vm2168 = vc.u32 %v2162, %v2164
        %v2169 = vadd.s32 %v2165, 1
        %v2170 = vsel %vm2168, %v2169, %v2165
        %v2171 = vadd.s32 %v2166, %v2170
        %v2172 = vadd.s32 %v2171, 536870912
        %v2173 = vshrl.u32 %v2172, 30
        %v2174 = vshll.u32 %v2173, 30
        %v2175 = vsub.s32 %v2171, %v2174
        %vm2176 = vcmp.lt.s32.totalorder %v2175, 0
        %v2177 = vsub.s32 0, %v2175
        %v2178 = vsel %vm2176, %v2177, %v2175
        %v2179 = vclz %v2178
        %v2180 = vsub.s32 %v2179, 2
        %vm2181 = vcmp.gt.s32.totalorder 0, %v2180
        %v2182 = vsel %vm2181, 0, %v2180
        %v2183 = vsub.s32 32, %v2182
        %v2184 = vshll.u32 %v2175, %v2182
        %v2185 = vshrl.u32 %v2167, %v2183
        %v2186 = vor.u32 %v2184, %v2185
        %v2187 = vsub.s32 4294967266, %v2182
        %v2188 = vadd.s32 %v2187, 127
        %v2189 = vshll.u32 %v2188, 23
        %v2190 = vor.u32 4788187, %v2189
        %v2191 = vand.u32 2147483647, %v2190
        %v2193 = vcvt.s32.f32 %v2186
        %v2194 = vmul.f32 %v2193, %v2191
        %v2195 = vxor.u32 %v2194, 2147483648
        %v2196 = vsel %vm2113, %v2195, %v2194
        %v2197 = vsub.s32 4, %v2173
        %v2198 = vsel %vm2113, %v2197, %v2173
        %v2199 = vsel %vm2112, %v1279, %v2196
        %v2200 = vsel %vm2112, 0, %v2198
        %v2201 = vcosq.f32.pop %v2199
        %v2202 = vsinq.f32.pop %v2199
        %vm2203 = vweird.f32 %v1279
        %v2204 = vand.u32 %v2200, 3
        %vm2205 = vcmp.lt.s32.totalorder %v2204, 2
        %vm2206 = vcmp.eq.s32.totalorder %v2204, 0
        %v2207 = vxor.u32 %v2202, 2147483648
        %v2208 = vsel %vm2206, %v2201, %v2207
        %vm2209 = vcmp.eq.s32.totalorder %v2204, 2
        %v2210 = vxor.u32 %v2201, 2147483648
        %v2211 = vsel %vm2209, %v2210, %v2202
        %v2212 = vsel %vm2205, %v2208, %v2211
        %v2213 = vsel %vm2203, nan, %v2212
        %v2214 = vand.u32 2147483647, %v1280
        %vm2215 = vcmp.le.f32.partialorder %v2214, 0.7853982
        %vm2216 = vcmp.lt.s32.totalorder %v1280, 0
        %v2217 = vand.u32 %v1280, 2139095040
        %v2218 = vshrl.u32 %v2217, 23
        %v2219 = vsub.s32 %v2218, 127
        %v2220 = vand.u32 2147483647, %v1280
        %v2221 = vand.u32 %v2220, 8388607
        %v2222 = vor.u32 %v2221, 8388608
        %v2223 = vsub.s32 0, %v2222
        %v2224 = vadd.s32 %v2219, 1
        %vm2225 = vcmp.gt.s32.totalorder %v2224, 0
        %v2226 = vsel %vm2225, %v2224, 0
        %v2227 = vshrl.u32 %v2226, 5
        %v2228 = vand.u32 %v2226, 31
        %v2229 = vsub.s32 32, %v2228
        %v2230 = vshrl.u32 683565275, %v2229
        %v2231 = vshll.u32 683565275, %v2228
        %v2232 = vshrl.u32 2475754826, %v2229
        %v2233 = vor.u32 %v2231, %v2232
        %v2234 = vshll.u32 2475754826, %v2228
        %v2235 = vshrl.u32 2131351028, %v2229
        %v2236 = vor.u32 %v2234, %v2235
        %v2237 = vshll.u32 2131351028, %v2228
        %v2238 = vshrl.u32 2102212464, %v2229
        %v2239 = vor.u32 %v2237, %v2238
        %v2240 = vshll.u32 2102212464, %v2228
        %v2241 = vshrl.u32 920167782, %v2229
        %v2242 = vor.u32 %v2240, %v2241
        %v2243 = vshll.u32 920167782, %v2228
        %v2244 = vshrl.u32 1326507024, %v2229
        %v2245 = vor.u32 %v2243, %v2244
        %vm2246 = vcmp.lt.s32.totalorder %v2227, 1
        %vm2247 = vcmp.lt.s32.totalorder %v2227, 2
        %vm2248 = vcmp.lt.s32.totalorder %v2227, 3
        %vm2249 = vcmp.lt.s32.totalorder %v2227, 4
        %v2250 = vsel %vm2246, %v2230, %v2233
        %v2251 = vsel %vm2249, %v2239, 2102212464
        %v2252 = vsel %vm2248, %v2236, %v2251
        %v2253 = vsel %vm2247, %v2250, %v2252
        %v2254 = vsel %vm2246, %v2233, %v2236
        %v2255 = vsel %vm2249, %v2242, 920167782
        %v2256 = vsel %vm2248, %v2239, %v2255
        %v2257 = vsel %vm2247, %v2254, %v2256
        %v2258 = vsel %vm2246, %v2236, %v2239
        %v2259 = vsel %vm2249, %v2245, 1326507024
        %v2260 = vsel %vm2248, %v2242, %v2259
        %v2261 = vsel %vm2247, %v2258, %v2260
        %v2262 = vshll.u32 %v2222, 8
        %v2263 = vmul.u32.u64.compose %v2262, %v2261
        %v2264 = vextract.low.u32 %v2263
        %v2265 = vextract.high.u32 %v2263
        %v2266 = vmul.u32.u64.compose %v2262, %v2257
        %v2267 = vextract.low.u32 %v2266
        %v2268 = vextract.high.u32 %v2266
        %v2269 = vmul.u32 %v2262, %v2253
        %v2270 = vadd.s32 %v2265, %v2267
        %vm2271 = vc.u32 %v2265, %v2267
        %v2272 = vadd.s32 %v2268, 1
        %v2273 = vsel %vm2271, %v2272, %v2268
        %v2274 = vadd.s32 %v2269, %v2273
        %v2275 = vadd.s32 %v2274, 536870912
        %v2276 = vshrl.u32 %v2275, 30
        %v2277 = vshll.u32 %v2276, 30
        %v2278 = vsub.s32 %v2274, %v2277
        %vm2279 = vcmp.lt.s32.totalorder %v2278, 0
        %v2280 = vsub.s32 0, %v2278
        %v2281 = vsel %vm2279, %v2280, %v2278
        %v2282 = vclz %v2281
        %v2283 = vsub.s32 %v2282, 2
        %vm2284 = vcmp.gt.s32.totalorder 0, %v2283
        %v2285 = vsel %vm2284, 0, %v2283
        %v2286 = vsub.s32 32, %v2285
        %v2287 = vshll.u32 %v2278, %v2285
        %v2288 = vshrl.u32 %v2270, %v2286
        %v2289 = vor.u32 %v2287, %v2288
        %v2290 = vsub.s32 4294967266, %v2285
        %v2291 = vadd.s32 %v2290, 127
        %v2292 = vshll.u32 %v2291, 23
        %v2293 = vor.u32 4788187, %v2292
        %v2294 = vand.u32 2147483647, %v2293
        %v2296 = vcvt.s32.f32 %v2289
        %v2297 = vmul.f32 %v2296, %v2294
        %v2298 = vxor.u32 %v2297, 2147483648
        %v2299 = vsel %vm2216, %v2298, %v2297
        %v2300 = vsub.s32 4, %v2276
        %v2301 = vsel %vm2216, %v2300, %v2276
        %v2302 = vsel %vm2215, %v1280, %v2299
        %v2303 = vsel %vm2215, 0, %v2301
        %v2304 = vcosq.f32.pop %v2302
        %v2305 = vsinq.f32.pop %v2302
        %vm2306 = vweird.f32 %v1280
        %v2307 = vand.u32 %v2303, 3
        %vm2308 = vcmp.lt.s32.totalorder %v2307, 2
        %vm2309 = vcmp.eq.s32.totalorder %v2307, 0
        %v2310 = vxor.u32 %v2305, 2147483648
        %v2311 = vsel %vm2309, %v2304, %v2310
        %vm2312 = vcmp.eq.s32.totalorder %v2307, 2
        %v2313 = vxor.u32 %v2304, 2147483648
        %v2314 = vsel %vm2312, %v2313, %v2305
        %v2315 = vsel %vm2308, %v2311, %v2314
        %v2316 = vsel %vm2306, nan, %v2315
        %v2317 = vand.u32 2147483647, %v1281
        %vm2318 = vcmp.le.f32.partialorder %v2317, 0.7853982
        %vm2319 = vcmp.lt.s32.totalorder %v1281, 0
        %v2320 = vand.u32 %v1281, 2139095040
        %v2321 = vshrl.u32 %v2320, 23
        %v2322 = vsub.s32 %v2321, 127
        %v2323 = vand.u32 2147483647, %v1281
        %v2324 = vand.u32 %v2323, 8388607
        %v2325 = vor.u32 %v2324, 8388608
        %v2326 = vsub.s32 0, %v2325
        %v2327 = vadd.s32 %v2322, 1
        %vm2328 = vcmp.gt.s32.totalorder %v2327, 0
        %v2329 = vsel %vm2328, %v2327, 0
        %v2330 = vshrl.u32 %v2329, 5
        %v2331 = vand.u32 %v2329, 31
        %v2332 = vsub.s32 32, %v2331
        %v2333 = vshrl.u32 683565275, %v2332
        %v2334 = vshll.u32 683565275, %v2331
        %v2335 = vshrl.u32 2475754826, %v2332
        %v2336 = vor.u32 %v2334, %v2335
        %v2337 = vshll.u32 2475754826, %v2331
        %v2338 = vshrl.u32 2131351028, %v2332
        %v2339 = vor.u32 %v2337, %v2338
        %v2340 = vshll.u32 2131351028, %v2331
        %v2341 = vshrl.u32 2102212464, %v2332
        %v2342 = vor.u32 %v2340, %v2341
        %v2343 = vshll.u32 2102212464, %v2331
        %v2344 = vshrl.u32 920167782, %v2332
        %v2345 = vor.u32 %v2343, %v2344
        %v2346 = vshll.u32 920167782, %v2331
        %v2347 = vshrl.u32 1326507024, %v2332
        %v2348 = vor.u32 %v2346, %v2347
        %vm2349 = vcmp.lt.s32.totalorder %v2330, 1
        %vm2350 = vcmp.lt.s32.totalorder %v2330, 2
        %vm2351 = vcmp.lt.s32.totalorder %v2330, 3
        %vm2352 = vcmp.lt.s32.totalorder %v2330, 4
        %v2353 = vsel %vm2349, %v2333, %v2336
        %v2354 = vsel %vm2352, %v2342, 2102212464
        %v2355 = vsel %vm2351, %v2339, %v2354
        %v2356 = vsel %vm2350, %v2353, %v2355
        %v2357 = vsel %vm2349, %v2336, %v2339
        %v2358 = vsel %vm2352, %v2345, 920167782
        %v2359 = vsel %vm2351, %v2342, %v2358
        %v2360 = vsel %vm2350, %v2357, %v2359
        %v2361 = vsel %vm2349, %v2339, %v2342
        %v2362 = vsel %vm2352, %v2348, 1326507024
        %v2363 = vsel %vm2351, %v2345, %v2362
        %v2364 = vsel %vm2350, %v2361, %v2363
        %v2365 = vshll.u32 %v2325, 8
        %v2366 = vmul.u32.u64.compose %v2365, %v2364
        %v2367 = vextract.low.u32 %v2366
        %v2368 = vextract.high.u32 %v2366
        %v2369 = vmul.u32.u64.compose %v2365, %v2360
        %v2370 = vextract.low.u32 %v2369
        %v2371 = vextract.high.u32 %v2369
        %v2372 = vmul.u32 %v2365, %v2356
        %v2373 = vadd.s32 %v2368, %v2370
        %vm2374 = vc.u32 %v2368, %v2370
        %v2375 = vadd.s32 %v2371, 1
        %v2376 = vsel %vm2374, %v2375, %v2371
        %v2377 = vadd.s32 %v2372, %v2376
        %v2378 = vadd.s32 %v2377, 536870912
        %v2379 = vshrl.u32 %v2378, 30
        %v2380 = vshll.u32 %v2379, 30
        %v2381 = vsub.s32 %v2377, %v2380
        %vm2382 = vcmp.lt.s32.totalorder %v2381, 0
        %v2383 = vsub.s32 0, %v2381
        %v2384 = vsel %vm2382, %v2383, %v2381
        %v2385 = vclz %v2384
        %v2386 = vsub.s32 %v2385, 2
        %vm2387 = vcmp.gt.s32.totalorder 0, %v2386
        %v2388 = vsel %vm2387, 0, %v2386
        %v2389 = vsub.s32 32, %v2388
        %v2390 = vshll.u32 %v2381, %v2388
        %v2391 = vshrl.u32 %v2373, %v2389
        %v2392 = vor.u32 %v2390, %v2391
        %v2393 = vsub.s32 4294967266, %v2388
        %v2394 = vadd.s32 %v2393, 127
        %v2395 = vshll.u32 %v2394, 23
        %v2396 = vor.u32 4788187, %v2395
        %v2397 = vand.u32 2147483647, %v2396
        %v2399 = vcvt.s32.f32 %v2392
        %v2400 = vmul.f32 %v2399, %v2397
        %v2401 = vxor.u32 %v2400, 2147483648
        %v2402 = vsel %vm2319, %v2401, %v2400
        %v2403 = vsub.s32 4, %v2379
        %v2404 = vsel %vm2319, %v2403, %v2379
        %v2405 = vsel %vm2318, %v1281, %v2402
        %v2406 = vsel %vm2318, 0, %v2404
        %v2407 = vcosq.f32.pop %v2405
        %v2408 = vsinq.f32.pop %v2405
        %vm2409 = vweird.f32 %v1281
        %v2410 = vand.u32 %v2406, 3
        %vm2411 = vcmp.lt.s32.totalorder %v2410, 2
        %vm2412 = vcmp.eq.s32.totalorder %v2410, 0
        %v2413 = vxor.u32 %v2408, 2147483648
        %v2414 = vsel %vm2412, %v2407, %v2413
        %vm2415 = vcmp.eq.s32.totalorder %v2410, 2
        %v2416 = vxor.u32 %v2407, 2147483648
        %v2417 = vsel %vm2415, %v2416, %v2408
        %v2418 = vsel %vm2411, %v2414, %v2417
        %v2419 = vsel %vm2409, nan, %v2418
        %v2420 = vand.u32 2147483647, %v1282
        %vm2421 = vcmp.le.f32.partialorder %v2420, 0.7853982
        %vm2422 = vcmp.lt.s32.totalorder %v1282, 0
        %v2423 = vand.u32 %v1282, 2139095040
        %v2424 = vshrl.u32 %v2423, 23
        %v2425 = vsub.s32 %v2424, 127
        %v2426 = vand.u32 2147483647, %v1282
        %v2427 = vand.u32 %v2426, 8388607
        %v2428 = vor.u32 %v2427, 8388608
        %v2429 = vsub.s32 0, %v2428
        %v2430 = vadd.s32 %v2425, 1
        %vm2431 = vcmp.gt.s32.totalorder %v2430, 0
        %v2432 = vsel %vm2431, %v2430, 0
        %v2433 = vshrl.u32 %v2432, 5
        %v2434 = vand.u32 %v2432, 31
        %v2435 = vsub.s32 32, %v2434
        %v2436 = vshrl.u32 683565275, %v2435
        %v2437 = vshll.u32 683565275, %v2434
        %v2438 = vshrl.u32 2475754826, %v2435
        %v2439 = vor.u32 %v2437, %v2438
        %v2440 = vshll.u32 2475754826, %v2434
        %v2441 = vshrl.u32 2131351028, %v2435
        %v2442 = vor.u32 %v2440, %v2441
        %v2443 = vshll.u32 2131351028, %v2434
        %v2444 = vshrl.u32 2102212464, %v2435
        %v2445 = vor.u32 %v2443, %v2444
        %v2446 = vshll.u32 2102212464, %v2434
        %v2447 = vshrl.u32 920167782, %v2435
        %v2448 = vor.u32 %v2446, %v2447
        %v2449 = vshll.u32 920167782, %v2434
        %v2450 = vshrl.u32 1326507024, %v2435
        %v2451 = vor.u32 %v2449, %v2450
        %vm2452 = vcmp.lt.s32.totalorder %v2433, 1
        %vm2453 = vcmp.lt.s32.totalorder %v2433, 2
        %vm2454 = vcmp.lt.s32.totalorder %v2433, 3
        %vm2455 = vcmp.lt.s32.totalorder %v2433, 4
        %v2456 = vsel %vm2452, %v2436, %v2439
        %v2457 = vsel %vm2455, %v2445, 2102212464
        %v2458 = vsel %vm2454, %v2442, %v2457
        %v2459 = vsel %vm2453, %v2456, %v2458
        %v2460 = vsel %vm2452, %v2439, %v2442
        %v2461 = vsel %vm2455, %v2448, 920167782
        %v2462 = vsel %vm2454, %v2445, %v2461
        %v2463 = vsel %vm2453, %v2460, %v2462
        %v2464 = vsel %vm2452, %v2442, %v2445
        %v2465 = vsel %vm2455, %v2451, 1326507024
        %v2466 = vsel %vm2454, %v2448, %v2465
        %v2467 = vsel %vm2453, %v2464, %v2466
        %v2468 = vshll.u32 %v2428, 8
        %v2469 = vmul.u32.u64.compose %v2468, %v2467
        %v2470 = vextract.low.u32 %v2469
        %v2471 = vextract.high.u32 %v2469
        %v2472 = vmul.u32.u64.compose %v2468, %v2463
        %v2473 = vextract.low.u32 %v2472
        %v2474 = vextract.high.u32 %v2472
        %v2475 = vmul.u32 %v2468, %v2459
        %v2476 = vadd.s32 %v2471, %v2473
        %vm2477 = vc.u32 %v2471, %v2473
        %v2478 = vadd.s32 %v2474, 1
        %v2479 = vsel %vm2477, %v2478, %v2474
        %v2480 = vadd.s32 %v2475, %v2479
        %v2481 = vadd.s32 %v2480, 536870912
        %v2482 = vshrl.u32 %v2481, 30
        %v2483 = vshll.u32 %v2482, 30
        %v2484 = vsub.s32 %v2480, %v2483
        %vm2485 = vcmp.lt.s32.totalorder %v2484, 0
        %v2486 = vsub.s32 0, %v2484
        %v2487 = vsel %vm2485, %v2486, %v2484
        %v2488 = vclz %v2487
        %v2489 = vsub.s32 %v2488, 2
        %vm2490 = vcmp.gt.s32.totalorder 0, %v2489
        %v2491 = vsel %vm2490, 0, %v2489
        %v2492 = vsub.s32 32, %v2491
        %v2493 = vshll.u32 %v2484, %v2491
        %v2494 = vshrl.u32 %v2476, %v2492
        %v2495 = vor.u32 %v2493, %v2494
        %v2496 = vsub.s32 4294967266, %v2491
        %v2497 = vadd.s32 %v2496, 127
        %v2498 = vshll.u32 %v2497, 23
        %v2499 = vor.u32 4788187, %v2498
        %v2500 = vand.u32 2147483647, %v2499
        %v2502 = vcvt.s32.f32 %v2495
        %v2503 = vmul.f32 %v2502, %v2500
        %v2504 = vxor.u32 %v2503, 2147483648
        %v2505 = vsel %vm2422, %v2504, %v2503
        %v2506 = vsub.s32 4, %v2482
        %v2507 = vsel %vm2422, %v2506, %v2482
        %v2508 = vsel %vm2421, %v1282, %v2505
        %v2509 = vsel %vm2421, 0, %v2507
        %v2510 = vcosq.f32.pop %v2508
        %v2511 = vsinq.f32.pop %v2508
        %vm2512 = vweird.f32 %v1282
        %v2513 = vand.u32 %v2509, 3
        %vm2514 = vcmp.lt.s32.totalorder %v2513, 2
        %vm2515 = vcmp.eq.s32.totalorder %v2513, 0
        %v2516 = vxor.u32 %v2511, 2147483648
        %v2517 = vsel %vm2515, %v2510, %v2516
        %vm2518 = vcmp.eq.s32.totalorder %v2513, 2
        %v2519 = vxor.u32 %v2510, 2147483648
        %v2520 = vsel %vm2518, %v2519, %v2511
        %v2521 = vsel %vm2514, %v2517, %v2520
        %v2522 = vsel %vm2512, nan, %v2521
        %v2523 = vand.u32 2147483647, %v1283
        %vm2524 = vcmp.le.f32.partialorder %v2523, 0.7853982
        %vm2525 = vcmp.lt.s32.totalorder %v1283, 0
        %v2526 = vand.u32 %v1283, 2139095040
        %v2527 = vshrl.u32 %v2526, 23
        %v2528 = vsub.s32 %v2527, 127
        %v2529 = vand.u32 2147483647, %v1283
        %v2530 = vand.u32 %v2529, 8388607
        %v2531 = vor.u32 %v2530, 8388608
        %v2532 = vsub.s32 0, %v2531
        %v2533 = vadd.s32 %v2528, 1
        %vm2534 = vcmp.gt.s32.totalorder %v2533, 0
        %v2535 = vsel %vm2534, %v2533, 0
        %v2536 = vshrl.u32 %v2535, 5
        %v2537 = vand.u32 %v2535, 31
        %v2538 = vsub.s32 32, %v2537
        %v2539 = vshrl.u32 683565275, %v2538
        %v2540 = vshll.u32 683565275, %v2537
        %v2541 = vshrl.u32 2475754826, %v2538
        %v2542 = vor.u32 %v2540, %v2541
        %v2543 = vshll.u32 2475754826, %v2537
        %v2544 = vshrl.u32 2131351028, %v2538
        %v2545 = vor.u32 %v2543, %v2544
        %v2546 = vshll.u32 2131351028, %v2537
        %v2547 = vshrl.u32 2102212464, %v2538
        %v2548 = vor.u32 %v2546, %v2547
        %v2549 = vshll.u32 2102212464, %v2537
        %v2550 = vshrl.u32 920167782, %v2538
        %v2551 = vor.u32 %v2549, %v2550
        %v2552 = vshll.u32 920167782, %v2537
        %v2553 = vshrl.u32 1326507024, %v2538
        %v2554 = vor.u32 %v2552, %v2553
        %vm2555 = vcmp.lt.s32.totalorder %v2536, 1
        %vm2556 = vcmp.lt.s32.totalorder %v2536, 2
        %vm2557 = vcmp.lt.s32.totalorder %v2536, 3
        %vm2558 = vcmp.lt.s32.totalorder %v2536, 4
        %v2559 = vsel %vm2555, %v2539, %v2542
        %v2560 = vsel %vm2558, %v2548, 2102212464
        %v2561 = vsel %vm2557, %v2545, %v2560
        %v2562 = vsel %vm2556, %v2559, %v2561
        %v2563 = vsel %vm2555, %v2542, %v2545
        %v2564 = vsel %vm2558, %v2551, 920167782
        %v2565 = vsel %vm2557, %v2548, %v2564
        %v2566 = vsel %vm2556, %v2563, %v2565
        %v2567 = vsel %vm2555, %v2545, %v2548
        %v2568 = vsel %vm2558, %v2554, 1326507024
        %v2569 = vsel %vm2557, %v2551, %v2568
        %v2570 = vsel %vm2556, %v2567, %v2569
        %v2571 = vshll.u32 %v2531, 8
        %v2572 = vmul.u32.u64.compose %v2571, %v2570
        %v2573 = vextract.low.u32 %v2572
        %v2574 = vextract.high.u32 %v2572
        %v2575 = vmul.u32.u64.compose %v2571, %v2566
        %v2576 = vextract.low.u32 %v2575
        %v2577 = vextract.high.u32 %v2575
        %v2578 = vmul.u32 %v2571, %v2562
        %v2579 = vadd.s32 %v2574, %v2576
        %vm2580 = vc.u32 %v2574, %v2576
        %v2581 = vadd.s32 %v2577, 1
        %v2582 = vsel %vm2580, %v2581, %v2577
        %v2583 = vadd.s32 %v2578, %v2582
        %v2584 = vadd.s32 %v2583, 536870912
        %v2585 = vshrl.u32 %v2584, 30
        %v2586 = vshll.u32 %v2585, 30
        %v2587 = vsub.s32 %v2583, %v2586
        %vm2588 = vcmp.lt.s32.totalorder %v2587, 0
        %v2589 = vsub.s32 0, %v2587
        %v2590 = vsel %vm2588, %v2589, %v2587
        %v2591 = vclz %v2590
        %v2592 = vsub.s32 %v2591, 2
        %vm2593 = vcmp.gt.s32.totalorder 0, %v2592
        %v2594 = vsel %vm2593, 0, %v2592
        %v2595 = vsub.s32 32, %v2594
        %v2596 = vshll.u32 %v2587, %v2594
        %v2597 = vshrl.u32 %v2579, %v2595
        %v2598 = vor.u32 %v2596, %v2597
        %v2599 = vsub.s32 4294967266, %v2594
        %v2600 = vadd.s32 %v2599, 127
        %v2601 = vshll.u32 %v2600, 23
        %v2602 = vor.u32 4788187, %v2601
        %v2603 = vand.u32 2147483647, %v2602
        %v2605 = vcvt.s32.f32 %v2598
        %v2606 = vmul.f32 %v2605, %v2603
        %v2607 = vxor.u32 %v2606, 2147483648
        %v2608 = vsel %vm2525, %v2607, %v2606
        %v2609 = vsub.s32 4, %v2585
        %v2610 = vsel %vm2525, %v2609, %v2585
        %v2611 = vsel %vm2524, %v1283, %v2608
        %v2612 = vsel %vm2524, 0, %v2610
        %v2613 = vcosq.f32.pop %v2611
        %v2614 = vsinq.f32.pop %v2611
        %vm2615 = vweird.f32 %v1283
        %v2616 = vand.u32 %v2612, 3
        %vm2617 = vcmp.lt.s32.totalorder %v2616, 2
        %vm2618 = vcmp.eq.s32.totalorder %v2616, 0
        %v2619 = vxor.u32 %v2614, 2147483648
        %v2620 = vsel %vm2618, %v2613, %v2619
        %vm2621 = vcmp.eq.s32.totalorder %v2616, 2
        %v2622 = vxor.u32 %v2613, 2147483648
        %v2623 = vsel %vm2621, %v2622, %v2614
        %v2624 = vsel %vm2617, %v2620, %v2623
        %v2625 = vsel %vm2615, nan, %v2624
        %v2626 = vand.u32 2147483647, %v1284
        %vm2627 = vcmp.le.f32.partialorder %v2626, 0.7853982
        %vm2628 = vcmp.lt.s32.totalorder %v1284, 0
        %v2629 = vand.u32 %v1284, 2139095040
        %v2630 = vshrl.u32 %v2629, 23
        %v2631 = vsub.s32 %v2630, 127
        %v2632 = vand.u32 2147483647, %v1284
        %v2633 = vand.u32 %v2632, 8388607
        %v2634 = vor.u32 %v2633, 8388608
        %v2635 = vsub.s32 0, %v2634
        %v2636 = vadd.s32 %v2631, 1
        %vm2637 = vcmp.gt.s32.totalorder %v2636, 0
        %v2638 = vsel %vm2637, %v2636, 0
        %v2639 = vshrl.u32 %v2638, 5
        %v2640 = vand.u32 %v2638, 31
        %v2641 = vsub.s32 32, %v2640
        %v2642 = vshrl.u32 683565275, %v2641
        %v2643 = vshll.u32 683565275, %v2640
        %v2644 = vshrl.u32 2475754826, %v2641
        %v2645 = vor.u32 %v2643, %v2644
        %v2646 = vshll.u32 2475754826, %v2640
        %v2647 = vshrl.u32 2131351028, %v2641
        %v2648 = vor.u32 %v2646, %v2647
        %v2649 = vshll.u32 2131351028, %v2640
        %v2650 = vshrl.u32 2102212464, %v2641
        %v2651 = vor.u32 %v2649, %v2650
        %v2652 = vshll.u32 2102212464, %v2640
        %v2653 = vshrl.u32 920167782, %v2641
        %v2654 = vor.u32 %v2652, %v2653
        %v2655 = vshll.u32 920167782, %v2640
        %v2656 = vshrl.u32 1326507024, %v2641
        %v2657 = vor.u32 %v2655, %v2656
        %vm2658 = vcmp.lt.s32.totalorder %v2639, 1
        %vm2659 = vcmp.lt.s32.totalorder %v2639, 2
        %vm2660 = vcmp.lt.s32.totalorder %v2639, 3
        %vm2661 = vcmp.lt.s32.totalorder %v2639, 4
        %v2662 = vsel %vm2658, %v2642, %v2645
        %v2663 = vsel %vm2661, %v2651, 2102212464
        %v2664 = vsel %vm2660, %v2648, %v2663
        %v2665 = vsel %vm2659, %v2662, %v2664
        %v2666 = vsel %vm2658, %v2645, %v2648
        %v2667 = vsel %vm2661, %v2654, 920167782
        %v2668 = vsel %vm2660, %v2651, %v2667
        %v2669 = vsel %vm2659, %v2666, %v2668
        %v2670 = vsel %vm2658, %v2648, %v2651
        %v2671 = vsel %vm2661, %v2657, 1326507024
        %v2672 = vsel %vm2660, %v2654, %v2671
        %v2673 = vsel %vm2659, %v2670, %v2672
        %v2674 = vshll.u32 %v2634, 8
        %v2675 = vmul.u32.u64.compose %v2674, %v2673
        %v2676 = vextract.low.u32 %v2675
        %v2677 = vextract.high.u32 %v2675
        %v2678 = vmul.u32.u64.compose %v2674, %v2669
        %v2679 = vextract.low.u32 %v2678
        %v2680 = vextract.high.u32 %v2678
        %v2681 = vmul.u32 %v2674, %v2665
        %v2682 = vadd.s32 %v2677, %v2679
        %vm2683 = vc.u32 %v2677, %v2679
        %v2684 = vadd.s32 %v2680, 1
        %v2685 = vsel %vm2683, %v2684, %v2680
        %v2686 = vadd.s32 %v2681, %v2685
        %v2687 = vadd.s32 %v2686, 536870912
        %v2688 = vshrl.u32 %v2687, 30
        %v2689 = vshll.u32 %v2688, 30
        %v2690 = vsub.s32 %v2686, %v2689
        %vm2691 = vcmp.lt.s32.totalorder %v2690, 0
        %v2692 = vsub.s32 0, %v2690
        %v2693 = vsel %vm2691, %v2692, %v2690
        %v2694 = vclz %v2693
        %v2695 = vsub.s32 %v2694, 2
        %vm2696 = vcmp.gt.s32.totalorder 0, %v2695
        %v2697 = vsel %vm2696, 0, %v2695
        %v2698 = vsub.s32 32, %v2697
        %v2699 = vshll.u32 %v2690, %v2697
        %v2700 = vshrl.u32 %v2682, %v2698
        %v2701 = vor.u32 %v2699, %v2700
        %v2702 = vsub.s32 4294967266, %v2697
        %v2703 = vadd.s32 %v2702, 127
        %v2704 = vshll.u32 %v2703, 23
        %v2705 = vor.u32 4788187, %v2704
        %v2706 = vand.u32 2147483647, %v2705
        %v2708 = vcvt.s32.f32 %v2701
        %v2709 = vmul.f32 %v2708, %v2706
        %v2710 = vxor.u32 %v2709, 2147483648
        %v2711 = vsel %vm2628, %v2710, %v2709
        %v2712 = vsub.s32 4, %v2688
        %v2713 = vsel %vm2628, %v2712, %v2688
        %v2714 = vsel %vm2627, %v1284, %v2711
        %v2715 = vsel %vm2627, 0, %v2713
        %v2716 = vcosq.f32.pop %v2714
        %v2717 = vsinq.f32.pop %v2714
        %vm2718 = vweird.f32 %v1284
        %v2719 = vand.u32 %v2715, 3
        %vm2720 = vcmp.lt.s32.totalorder %v2719, 2
        %vm2721 = vcmp.eq.s32.totalorder %v2719, 0
        %v2722 = vxor.u32 %v2717, 2147483648
        %v2723 = vsel %vm2721, %v2716, %v2722
        %vm2724 = vcmp.eq.s32.totalorder %v2719, 2
        %v2725 = vxor.u32 %v2716, 2147483648
        %v2726 = vsel %vm2724, %v2725, %v2717
        %v2727 = vsel %vm2720, %v2723, %v2726
        %v2728 = vsel %vm2718, nan, %v2727
        %v2729 = vand.u32 2147483647, %v1285
        %vm2730 = vcmp.le.f32.partialorder %v2729, 0.7853982
        %vm2731 = vcmp.lt.s32.totalorder %v1285, 0
        %v2732 = vand.u32 %v1285, 2139095040
        %v2733 = vshrl.u32 %v2732, 23
        %v2734 = vsub.s32 %v2733, 127
        %v2735 = vand.u32 2147483647, %v1285
        %v2736 = vand.u32 %v2735, 8388607
        %v2737 = vor.u32 %v2736, 8388608
        %v2738 = vsub.s32 0, %v2737
        %v2739 = vadd.s32 %v2734, 1
        %vm2740 = vcmp.gt.s32.totalorder %v2739, 0
        %v2741 = vsel %vm2740, %v2739, 0
        %v2742 = vshrl.u32 %v2741, 5
        %v2743 = vand.u32 %v2741, 31
        %v2744 = vsub.s32 32, %v2743
        %v2745 = vshrl.u32 683565275, %v2744
        %v2746 = vshll.u32 683565275, %v2743
        %v2747 = vshrl.u32 2475754826, %v2744
        %v2748 = vor.u32 %v2746, %v2747
        %v2749 = vshll.u32 2475754826, %v2743
        %v2750 = vshrl.u32 2131351028, %v2744
        %v2751 = vor.u32 %v2749, %v2750
        %v2752 = vshll.u32 2131351028, %v2743
        %v2753 = vshrl.u32 2102212464, %v2744
        %v2754 = vor.u32 %v2752, %v2753
        %v2755 = vshll.u32 2102212464, %v2743
        %v2756 = vshrl.u32 920167782, %v2744
        %v2757 = vor.u32 %v2755, %v2756
        %v2758 = vshll.u32 920167782, %v2743
        %v2759 = vshrl.u32 1326507024, %v2744
        %v2760 = vor.u32 %v2758, %v2759
        %vm2761 = vcmp.lt.s32.totalorder %v2742, 1
        %vm2762 = vcmp.lt.s32.totalorder %v2742, 2
        %vm2763 = vcmp.lt.s32.totalorder %v2742, 3
        %vm2764 = vcmp.lt.s32.totalorder %v2742, 4
        %v2765 = vsel %vm2761, %v2745, %v2748
        %v2766 = vsel %vm2764, %v2754, 2102212464
        %v2767 = vsel %vm2763, %v2751, %v2766
        %v2768 = vsel %vm2762, %v2765, %v2767
        %v2769 = vsel %vm2761, %v2748, %v2751
        %v2770 = vsel %vm2764, %v2757, 920167782
        %v2771 = vsel %vm2763, %v2754, %v2770
        %v2772 = vsel %vm2762, %v2769, %v2771
        %v2773 = vsel %vm2761, %v2751, %v2754
        %v2774 = vsel %vm2764, %v2760, 1326507024
        %v2775 = vsel %vm2763, %v2757, %v2774
        %v2776 = vsel %vm2762, %v2773, %v2775
        %v2777 = vshll.u32 %v2737, 8
        %v2778 = vmul.u32.u64.compose %v2777, %v2776
        %v2779 = vextract.low.u32 %v2778
        %v2780 = vextract.high.u32 %v2778
        %v2781 = vmul.u32.u64.compose %v2777, %v2772
        %v2782 = vextract.low.u32 %v2781
        %v2783 = vextract.high.u32 %v2781
        %v2784 = vmul.u32 %v2777, %v2768
        %v2785 = vadd.s32 %v2780, %v2782
        %vm2786 = vc.u32 %v2780, %v2782
        %v2787 = vadd.s32 %v2783, 1
        %v2788 = vsel %vm2786, %v2787, %v2783
        %v2789 = vadd.s32 %v2784, %v2788
        %v2790 = vadd.s32 %v2789, 536870912
        %v2791 = vshrl.u32 %v2790, 30
        %v2792 = vshll.u32 %v2791, 30
        %v2793 = vsub.s32 %v2789, %v2792
        %vm2794 = vcmp.lt.s32.totalorder %v2793, 0
        %v2795 = vsub.s32 0, %v2793
        %v2796 = vsel %vm2794, %v2795, %v2793
        %v2797 = vclz %v2796
        %v2798 = vsub.s32 %v2797, 2
        %vm2799 = vcmp.gt.s32.totalorder 0, %v2798
        %v2800 = vsel %vm2799, 0, %v2798
        %v2801 = vsub.s32 32, %v2800
        %v2802 = vshll.u32 %v2793, %v2800
        %v2803 = vshrl.u32 %v2785, %v2801
        %v2804 = vor.u32 %v2802, %v2803
        %v2805 = vsub.s32 4294967266, %v2800
        %v2806 = vadd.s32 %v2805, 127
        %v2807 = vshll.u32 %v2806, 23
        %v2808 = vor.u32 4788187, %v2807
        %v2809 = vand.u32 2147483647, %v2808
        %v2811 = vcvt.s32.f32 %v2804
        %v2812 = vmul.f32 %v2811, %v2809
        %v2813 = vxor.u32 %v2812, 2147483648
        %v2814 = vsel %vm2731, %v2813, %v2812
        %v2815 = vsub.s32 4, %v2791
        %v2816 = vsel %vm2731, %v2815, %v2791
        %v2817 = vsel %vm2730, %v1285, %v2814
        %v2818 = vsel %vm2730, 0, %v2816
        %v2819 = vcosq.f32.pop %v2817
        %v2820 = vsinq.f32.pop %v2817
        %vm2821 = vweird.f32 %v1285
        %v2822 = vand.u32 %v2818, 3
        %vm2823 = vcmp.lt.s32.totalorder %v2822, 2
        %vm2824 = vcmp.eq.s32.totalorder %v2822, 0
        %v2825 = vxor.u32 %v2820, 2147483648
        %v2826 = vsel %vm2824, %v2819, %v2825
        %vm2827 = vcmp.eq.s32.totalorder %v2822, 2
        %v2828 = vxor.u32 %v2819, 2147483648
        %v2829 = vsel %vm2827, %v2828, %v2820
        %v2830 = vsel %vm2823, %v2826, %v2829
        %v2831 = vsel %vm2821, nan, %v2830
        %v2832 = vand.u32 2147483647, %v1286
        %vm2833 = vcmp.le.f32.partialorder %v2832, 0.7853982
        %vm2834 = vcmp.lt.s32.totalorder %v1286, 0
        %v2835 = vand.u32 %v1286, 2139095040
        %v2836 = vshrl.u32 %v2835, 23
        %v2837 = vsub.s32 %v2836, 127
        %v2838 = vand.u32 2147483647, %v1286
        %v2839 = vand.u32 %v2838, 8388607
        %v2840 = vor.u32 %v2839, 8388608
        %v2841 = vsub.s32 0, %v2840
        %v2842 = vadd.s32 %v2837, 1
        %vm2843 = vcmp.gt.s32.totalorder %v2842, 0
        %v2844 = vsel %vm2843, %v2842, 0
        %v2845 = vshrl.u32 %v2844, 5
        %v2846 = vand.u32 %v2844, 31
        %v2847 = vsub.s32 32, %v2846
        %v2848 = vshrl.u32 683565275, %v2847
        %v2849 = vshll.u32 683565275, %v2846
        %v2850 = vshrl.u32 2475754826, %v2847
        %v2851 = vor.u32 %v2849, %v2850
        %v2852 = vshll.u32 2475754826, %v2846
        %v2853 = vshrl.u32 2131351028, %v2847
        %v2854 = vor.u32 %v2852, %v2853
        %v2855 = vshll.u32 2131351028, %v2846
        %v2856 = vshrl.u32 2102212464, %v2847
        %v2857 = vor.u32 %v2855, %v2856
        %v2858 = vshll.u32 2102212464, %v2846
        %v2859 = vshrl.u32 920167782, %v2847
        %v2860 = vor.u32 %v2858, %v2859
        %v2861 = vshll.u32 920167782, %v2846
        %v2862 = vshrl.u32 1326507024, %v2847
        %v2863 = vor.u32 %v2861, %v2862
        %vm2864 = vcmp.lt.s32.totalorder %v2845, 1
        %vm2865 = vcmp.lt.s32.totalorder %v2845, 2
        %vm2866 = vcmp.lt.s32.totalorder %v2845, 3
        %vm2867 = vcmp.lt.s32.totalorder %v2845, 4
        %v2868 = vsel %vm2864, %v2848, %v2851
        %v2869 = vsel %vm2867, %v2857, 2102212464
        %v2870 = vsel %vm2866, %v2854, %v2869
        %v2871 = vsel %vm2865, %v2868, %v2870
        %v2872 = vsel %vm2864, %v2851, %v2854
        %v2873 = vsel %vm2867, %v2860, 920167782
        %v2874 = vsel %vm2866, %v2857, %v2873
        %v2875 = vsel %vm2865, %v2872, %v2874
        %v2876 = vsel %vm2864, %v2854, %v2857
        %v2877 = vsel %vm2867, %v2863, 1326507024
        %v2878 = vsel %vm2866, %v2860, %v2877
        %v2879 = vsel %vm2865, %v2876, %v2878
        %v2880 = vshll.u32 %v2840, 8
        %v2881 = vmul.u32.u64.compose %v2880, %v2879
        %v2882 = vextract.low.u32 %v2881
        %v2883 = vextract.high.u32 %v2881
        %v2884 = vmul.u32.u64.compose %v2880, %v2875
        %v2885 = vextract.low.u32 %v2884
        %v2886 = vextract.high.u32 %v2884
        %v2887 = vmul.u32 %v2880, %v2871
        %v2888 = vadd.s32 %v2883, %v2885
        %vm2889 = vc.u32 %v2883, %v2885
        %v2890 = vadd.s32 %v2886, 1
        %v2891 = vsel %vm2889, %v2890, %v2886
        %v2892 = vadd.s32 %v2887, %v2891
        %v2893 = vadd.s32 %v2892, 536870912
        %v2894 = vshrl.u32 %v2893, 30
        %v2895 = vshll.u32 %v2894, 30
        %v2896 = vsub.s32 %v2892, %v2895
        %vm2897 = vcmp.lt.s32.totalorder %v2896, 0
        %v2898 = vsub.s32 0, %v2896
        %v2899 = vsel %vm2897, %v2898, %v2896
        %v2900 = vclz %v2899
        %v2901 = vsub.s32 %v2900, 2
        %vm2902 = vcmp.gt.s32.totalorder 0, %v2901
        %v2903 = vsel %vm2902, 0, %v2901
        %v2904 = vsub.s32 32, %v2903
        %v2905 = vshll.u32 %v2896, %v2903
        %v2906 = vshrl.u32 %v2888, %v2904
        %v2907 = vor.u32 %v2905, %v2906
        %v2908 = vsub.s32 4294967266, %v2903
        %v2909 = vadd.s32 %v2908, 127
        %v2910 = vshll.u32 %v2909, 23
        %v2911 = vor.u32 4788187, %v2910
        %v2912 = vand.u32 2147483647, %v2911
        %v2914 = vcvt.s32.f32 %v2907
        %v2915 = vmul.f32 %v2914, %v2912
        %v2916 = vxor.u32 %v2915, 2147483648
        %v2917 = vsel %vm2834, %v2916, %v2915
        %v2918 = vsub.s32 4, %v2894
        %v2919 = vsel %vm2834, %v2918, %v2894
        %v2920 = vsel %vm2833, %v1286, %v2917
        %v2921 = vsel %vm2833, 0, %v2919
        %v2922 = vcosq.f32.pop %v2920
        %v2923 = vsinq.f32.pop %v2920
        %vm2924 = vweird.f32 %v1286
        %v2925 = vand.u32 %v2921, 3
        %vm2926 = vcmp.lt.s32.totalorder %v2925, 2
        %vm2927 = vcmp.eq.s32.totalorder %v2925, 0
        %v2928 = vxor.u32 %v2923, 2147483648
        %v2929 = vsel %vm2927, %v2922, %v2928
        %vm2930 = vcmp.eq.s32.totalorder %v2925, 2
        %v2931 = vxor.u32 %v2922, 2147483648
        %v2932 = vsel %vm2930, %v2931, %v2923
        %v2933 = vsel %vm2926, %v2929, %v2932
        %v2934 = vsel %vm2924, nan, %v2933
        %v2935 = vadd.f32 %v1389, 1.0
        %v2936 = vadd.f32 %v1492, 1.0
        %v2937 = vadd.f32 %v1595, 1.0
        %v2938 = vadd.f32 %v1698, 1.0
        %v2939 = vadd.f32 %v1801, 1.0
        %v2940 = vadd.f32 %v1904, 1.0
        %v2941 = vadd.f32 %v2007, 1.0
        %v2942 = vadd.f32 %v2110, 1.0
        %v2943 = vadd.f32 %v2213, 1.0
        %v2944 = vadd.f32 %v2316, 1.0
        %v2945 = vadd.f32 %v2419, 1.0
        %v2946 = vadd.f32 %v2522, 1.0
        %v2947 = vadd.f32 %v2625, 1.0
        %v2948 = vadd.f32 %v2728, 1.0
        %v2949 = vadd.f32 %v2831, 1.0
        %v2950 = vadd.f32 %v2934, 1.0
        %v2951 = vmul.f32 %v2935, 0.5
        %v2952 = vmul.f32 %v2936, 0.5
        %v2953 = vmul.f32 %v2937, 0.5
        %v2954 = vmul.f32 %v2938, 0.5
        %v2955 = vmul.f32 %v2939, 0.5
        %v2956 = vmul.f32 %v2940, 0.5
        %v2957 = vmul.f32 %v2941, 0.5
        %v2958 = vmul.f32 %v2942, 0.5
        %v2959 = vmul.f32 %v2943, 0.5
        %v2960 = vmul.f32 %v2944, 0.5
        %v2961 = vmul.f32 %v2945, 0.5
        %v2962 = vmul.f32 %v2946, 0.5
        %v2963 = vmul.f32 %v2947, 0.5
        %v2964 = vmul.f32 %v2948, 0.5
        %v2965 = vmul.f32 %v2949, 0.5
        %v2966 = vmul.f32 %v2950, 0.5
        %v2967 = vpack.c.bf16 %v1242, %v1240
        %v2968 = vpack.c.bf16 %v1246, %v1244
        %v2969 = vpack.c.bf16 %v1250, %v1248
        %v2970 = vpack.c.bf16 %v1254, %v1252
        %v2971 = vpack.c.bf16 %v1258, %v1256
        %v2972 = vpack.c.bf16 %v1262, %v1260
        %v2973 = vpack.c.bf16 %v1266, %v1264
        %v2974 = vpack.c.bf16 %v1270, %v1268
        %v2975 = vld [vmem:[%s926] sm:$0xf]
        %v2976 = vld [vmem:[%s926 + $0x4] sm:$0xf]
        %v2977 = vld [vmem:[%s926 + $0x8] sm:$0xf]
        %v2978 = vld [vmem:[%s926 + $0xc] sm:$0xf]
        %v2979 = vld [vmem:[%s926 + $0x10] sm:$0xf]
        %v2980 = vld [vmem:[%s926 + $0x14] sm:$0xf]
        %v2981 = vld [vmem:[%s926 + $0x18] sm:$0xf]
        %v2982 = vld [vmem:[%s926 + $0x1c] sm:$0xf]
        %v2983 = vld [vmem:[%s926 + $0x20] sm:$0xf]
        %v2984 = vld [vmem:[%s926 + $0x24] sm:$0xf]
        %v2985 = vld [vmem:[%s926 + $0x28] sm:$0xf]
        %v2986 = vld [vmem:[%s926 + $0x2c] sm:$0xf]
        %v2987 = vld [vmem:[%s926 + $0x30] sm:$0xf]
        %v2988 = vld [vmem:[%s926 + $0x34] sm:$0xf]
        %v2989 = vld [vmem:[%s926 + $0x38] sm:$0xf]
        %v2990 = vld [vmem:[%s926 + $0x3c] sm:$0xf]
        %v2991 = vld [vmem:[%s929] sm:$0x1]
        %v2993 = vlaneseq
        %v2994 = vshrl.u32 %v2993, 7
        %v2995 = vsub.s32 0, %v2994
        %v2996 = vrot.slane %v2991, %v2995
        %v3014 = vunpack.c.l.b16 %v2975
        %v3015 = vunpack.c.l.b16 %v2976
        %v3016 = vunpack.c.l.b16 %v2977
        %v3017 = vunpack.c.l.b16 %v2978
        %v3018 = vunpack.c.l.b16 %v2979
        %v3019 = vunpack.c.l.b16 %v2980
        %v3020 = vunpack.c.l.b16 %v2981
        %v3021 = vunpack.c.l.b16 %v2982
        %v3022 = vunpack.c.l.b16 %v2983
        %v3023 = vunpack.c.l.b16 %v2984
        %v3024 = vunpack.c.l.b16 %v2985
        %v3025 = vunpack.c.l.b16 %v2986
        %v3026 = vunpack.c.l.b16 %v2987
        %v3027 = vunpack.c.l.b16 %v2988
        %v3028 = vunpack.c.l.b16 %v2989
        %v3029 = vunpack.c.l.b16 %v2990
        %v3030 = vpack.c.b16 %v3015, %v3014
        %v3031 = vpack.c.b16 %v3017, %v3016
        %v3032 = vpack.c.b16 %v3019, %v3018
        %v3033 = vpack.c.b16 %v3021, %v3020
        %v3034 = vpack.c.b16 %v3023, %v3022
        %v3035 = vpack.c.b16 %v3025, %v3024
        %v3036 = vpack.c.b16 %v3027, %v3026
        %v3037 = vpack.c.b16 %v3029, %v3028
        %3046 = vmatprep.subr.bf16.mxu0 0
        %3047 = vmatpush1.bf16.msra.mxu0 %v3030
        %3048 = vmatprep.subr.bf16.mxu0 0
        %3049 = vmatpush1.bf16.msra.mxu0 %v3031
        %3050 = vmatprep.subr.bf16.mxu0 0
        %3051 = vmatpush1.bf16.msra.mxu0 %v3032
        %3052 = vmatprep.subr.bf16.mxu0 0
        %3053 = vmatpush1.bf16.msra.mxu0 %v3033
        %3054 = vmatprep.subr.bf16.mxu0 0
        %3055 = vmatpush1.bf16.msra.mxu0 %v3034
        %3056 = vmatprep.subr.bf16.mxu0 0
        %3057 = vmatpush1.bf16.msra.mxu0 %v3035
        %3058 = vmatprep.subr.bf16.mxu0 0
        %3059 = vmatpush1.bf16.msra.mxu0 %v3036
        %3060 = vmatprep.subr.bf16.mxu0 0
        %3061 = vmatpush1.bf16.msra.mxu0 %v3037
        %3062 = vmatprep.subr.bf16.mxu0 0
        %3063 = vmatpush1.bf16.msra.mxu0 0
        %3064 = vmatprep.subr.bf16.mxu0 0
        %3065 = vmatpush1.bf16.msra.mxu0 0
        %3066 = vmatprep.subr.bf16.mxu0 0
        %3067 = vmatpush1.bf16.msra.mxu0 0
        %3068 = vmatprep.subr.bf16.mxu0 0
        %3069 = vmatpush1.bf16.msra.mxu0 0
        %3070 = vmatprep.subr.bf16.mxu0 0
        %3071 = vmatpush1.bf16.msra.mxu0 0
        %3072 = vmatprep.subr.bf16.mxu0 0
        %3073 = vmatpush1.bf16.msra.mxu0 0
        %3074 = vmatprep.subr.bf16.mxu0 0
        %3075 = vmatpush1.bf16.msra.mxu0 0
        %3076 = vmatprep.subr.bf16.mxu0 0
        %3077 = vmatpush1.bf16.msra.mxu0 0
        %3078 = vmatprep.mubr.bf16.mxu0 0
        %3079 = vmatmul.mubr.bf16.gmra.mrb[0].mxu0 %v2967
        %v3080 = vpop.f32.mrb[0].mxu0
        %v3081 = vadd.f32 %v2996, %v3080
        %v3082 = vpop.f32.mrb[0].mxu0
        %v3083 = vpop.f32.mrb[0].mxu0
        %v3084 = vadd.f32 %v2996, %v3083
        %v3085 = vpop.f32.mrb[0].mxu0
        %3086 = vmatprep.mubr.bf16.mxu0 0
        %3087 = vmatmul.mubr.bf16.gmra.mrb[0].mxu0 %v2968
        %v3088 = vpop.f32.mrb[0].mxu0
        %v3089 = vadd.f32 %v2996, %v3088
        %v3090 = vpop.f32.mrb[0].mxu0
        %v3091 = vpop.f32.mrb[0].mxu0
        %v3092 = vadd.f32 %v2996, %v3091
        %v3093 = vpop.f32.mrb[0].mxu0
        %3094 = vmatprep.mubr.bf16.mxu0 0
        %3095 = vmatmul.mubr.bf16.gmra.mrb[0].mxu0 %v2969
        %v3096 = vpop.f32.mrb[0].mxu0
        %v3097 = vadd.f32 %v2996, %v3096
        %v3098 = vpop.f32.mrb[0].mxu0
        %v3099 = vpop.f32.mrb[0].mxu0
        %v3100 = vadd.f32 %v2996, %v3099
        %v3101 = vpop.f32.mrb[0].mxu0
        %3102 = vmatprep.mubr.bf16.mxu0 0
        %3103 = vmatmul.mubr.bf16.gmra.mrb[0].mxu0 %v2970
        %v3104 = vpop.f32.mrb[0].mxu0
        %v3105 = vadd.f32 %v2996, %v3104
        %v3106 = vpop.f32.mrb[0].mxu0
        %v3107 = vpop.f32.mrb[0].mxu0
        %v3108 = vadd.f32 %v2996, %v3107
        %v3109 = vpop.f32.mrb[0].mxu0
        %3110 = vmatprep.mubr.bf16.mxu0 0
        %3111 = vmatmul.mubr.bf16.gmra.mrb[0].mxu0 %v2971
        %v3112 = vpop.f32.mrb[0].mxu0
        %v3113 = vadd.f32 %v2996, %v3112
        %v3114 = vpop.f32.mrb[0].mxu0
        %v3115 = vpop.f32.mrb[0].mxu0
        %v3116 = vadd.f32 %v2996, %v3115
        %v3117 = vpop.f32.mrb[0].mxu0
        %3118 = vmatprep.mubr.bf16.mxu0 0
        %3119 = vmatmul.mubr.bf16.gmra.mrb[0].mxu0 %v2972
        %v3120 = vpop.f32.mrb[0].mxu0
        %v3121 = vadd.f32 %v2996, %v3120
        %v3122 = vpop.f32.mrb[0].mxu0
        %v3123 = vpop.f32.mrb[0].mxu0
        %v3124 = vadd.f32 %v2996, %v3123
        %v3125 = vpop.f32.mrb[0].mxu0
        %3126 = vmatprep.mubr.bf16.mxu0 0
        %3127 = vmatmul.mubr.bf16.gmra.mrb[0].mxu0 %v2973
        %v3128 = vpop.f32.mrb[0].mxu0
        %v3129 = vadd.f32 %v2996, %v3128
        %v3130 = vpop.f32.mrb[0].mxu0
        %v3131 = vpop.f32.mrb[0].mxu0
        %v3132 = vadd.f32 %v2996, %v3131
        %v3133 = vpop.f32.mrb[0].mxu0
        %3134 = vmatprep.mubr.bf16.mxu0 0
        %3135 = vmatmul.mubr.bf16.gmra.mrb[0].mxu0 %v2974
        %v3136 = vpop.f32.mrb[0].mxu0
        %v3137 = vadd.f32 %v2996, %v3136
        %v3138 = vpop.f32.mrb[0].mxu0
        %v3139 = vpop.f32.mrb[0].mxu0
        %v3140 = vadd.f32 %v2996, %v3139
        %v3141 = vpop.f32.mrb[0].mxu0
        %3142 = vdwg.mxu0
        %v3143 = vmax.f32 %v3081, 0.0
        %v3144 = vmax.f32 %v3084, 0.0
        %v3145 = vmax.f32 %v3089, 0.0
        %v3146 = vmax.f32 %v3092, 0.0
        %v3147 = vmax.f32 %v3097, 0.0
        %v3148 = vmax.f32 %v3100, 0.0
        %v3149 = vmax.f32 %v3105, 0.0
        %v3150 = vmax.f32 %v3108, 0.0
        %v3151 = vmax.f32 %v3113, 0.0
        %v3152 = vmax.f32 %v3116, 0.0
        %v3153 = vmax.f32 %v3121, 0.0
        %v3154 = vmax.f32 %v3124, 0.0
        %v3155 = vmax.f32 %v3129, 0.0
        %v3156 = vmax.f32 %v3132, 0.0
        %v3157 = vmax.f32 %v3137, 0.0
        %v3158 = vmax.f32 %v3140, 0.0
        %v3159 = vand.u32 2147483647, %v3081
        %v3160 = vand.u32 2147483647, %v3084
        %v3161 = vand.u32 2147483647, %v3089
        %v3162 = vand.u32 2147483647, %v3092
        %v3163 = vand.u32 2147483647, %v3097
        %v3164 = vand.u32 2147483647, %v3100
        %v3165 = vand.u32 2147483647, %v3105
        %v3166 = vand.u32 2147483647, %v3108
        %v3167 = vand.u32 2147483647, %v3113
        %v3168 = vand.u32 2147483647, %v3116
        %v3169 = vand.u32 2147483647, %v3121
        %v3170 = vand.u32 2147483647, %v3124
        %v3171 = vand.u32 2147483647, %v3129
        %v3172 = vand.u32 2147483647, %v3132
        %v3173 = vand.u32 2147483647, %v3137
        %v3174 = vand.u32 2147483647, %v3140
        %v3175 = vsub.f32 0.0, %v3159
        %v3176 = vsub.f32 0.0, %v3160
        %v3177 = vsub.f32 0.0, %v3161
        %v3178 = vsub.f32 0.0, %v3162
        %v3179 = vsub.f32 0.0, %v3163
        %v3180 = vsub.f32 0.0, %v3164
        %v3181 = vsub.f32 0.0, %v3165
        %v3182 = vsub.f32 0.0, %v3166
        %v3183 = vsub.f32 0.0, %v3167
        %v3184 = vsub.f32 0.0, %v3168
        %v3185 = vsub.f32 0.0, %v3169
        %v3186 = vsub.f32 0.0, %v3170
        %v3187 = vsub.f32 0.0, %v3171
        %v3188 = vsub.f32 0.0, %v3172
        %v3189 = vsub.f32 0.0, %v3173
        %v3190 = vsub.f32 0.0, %v3174
        %v3191 = vmul.f32 %v3175, 1.442695
        %v3192 = vpow.pop %v3191
        %v3193 = vmul.f32 %v3176, 1.442695
        %v3194 = vpow.pop %v3193
        %v3195 = vmul.f32 %v3177, 1.442695
        %v3196 = vpow.pop %v3195
        %v3197 = vmul.f32 %v3178, 1.442695
        %v3198 = vpow.pop %v3197
        %v3199 = vmul.f32 %v3179, 1.442695
        %v3200 = vpow.pop %v3199
        %v3201 = vmul.f32 %v3180, 1.442695
        %v3202 = vpow.pop %v3201
        %v3203 = vmul.f32 %v3181, 1.442695
        %v3204 = vpow.pop %v3203
        %v3205 = vmul.f32 %v3182, 1.442695
        %v3206 = vpow.pop %v3205
        %v3207 = vmul.f32 %v3183, 1.442695
        %v3208 = vpow.pop %v3207
        %v3209 = vmul.f32 %v3184, 1.442695
        %v3210 = vpow.pop %v3209
        %v3211 = vmul.f32 %v3185, 1.442695
        %v3212 = vpow.pop %v3211
        %v3213 = vmul.f32 %v3186, 1.442695
        %v3214 = vpow.pop %v3213
        %v3215 = vmul.f32 %v3187, 1.442695
        %v3216 = vpow.pop %v3215
        %v3217 = vmul.f32 %v3188, 1.442695
        %v3218 = vpow.pop %v3217
        %v3219 = vmul.f32 %v3189, 1.442695
        %v3220 = vpow.pop %v3219
        %v3221 = vmul.f32 %v3190, 1.442695
        %v3222 = vpow.pop %v3221
        %v3223 = vadd.f32 %v3192, 1.0
        %v3224 = vlog2.pop %v3223
        %v3225 = vmul.f32 %v3224, 0.6931472
        %v3226 = vmul.f32 -0.5, %v3192
        %v3227 = vadd.f32 %v3226, 1.0
        %v3228 = vmul.f32 %v3227, %v3192
        %v3229 = vand.u32 2147483647, %v3192
        %vm3230 = vcmp.lt.f32.partialorder %v3229, 0.0004427343
        %v3231 = vsel %vm3230, %v3228, %v3225
        %v3232 = vadd.f32 %v3194, 1.0
        %v3233 = vlog2.pop %v3232
        %v3234 = vmul.f32 %v3233, 0.6931472
        %v3235 = vmul.f32 -0.5, %v3194
        %v3236 = vadd.f32 %v3235, 1.0
        %v3237 = vmul.f32 %v3236, %v3194
        %v3238 = vand.u32 2147483647, %v3194
        %vm3239 = vcmp.lt.f32.partialorder %v3238, 0.0004427343
        %v3240 = vsel %vm3239, %v3237, %v3234
        %v3241 = vadd.f32 %v3196, 1.0
        %v3242 = vlog2.pop %v3241
        %v3243 = vmul.f32 %v3242, 0.6931472
        %v3244 = vmul.f32 -0.5, %v3196
        %v3245 = vadd.f32 %v3244, 1.0
        %v3246 = vmul.f32 %v3245, %v3196
        %v3247 = vand.u32 2147483647, %v3196
        %vm3248 = vcmp.lt.f32.partialorder %v3247, 0.0004427343
        %v3249 = vsel %vm3248, %v3246, %v3243
        %v3250 = vadd.f32 %v3198, 1.0
        %v3251 = vlog2.pop %v3250
        %v3252 = vmul.f32 %v3251, 0.6931472
        %v3253 = vmul.f32 -0.5, %v3198
        %v3254 = vadd.f32 %v3253, 1.0
        %v3255 = vmul.f32 %v3254, %v3198
        %v3256 = vand.u32 2147483647, %v3198
        %vm3257 = vcmp.lt.f32.partialorder %v3256, 0.0004427343
        %v3258 = vsel %vm3257, %v3255, %v3252
        %v3259 = vadd.f32 %v3200, 1.0
        %v3260 = vlog2.pop %v3259
        %v3261 = vmul.f32 %v3260, 0.6931472
        %v3262 = vmul.f32 -0.5, %v3200
        %v3263 = vadd.f32 %v3262, 1.0
        %v3264 = vmul.f32 %v3263, %v3200
        %v3265 = vand.u32 2147483647, %v3200
        %vm3266 = vcmp.lt.f32.partialorder %v3265, 0.0004427343
        %v3267 = vsel %vm3266, %v3264, %v3261
        %v3268 = vadd.f32 %v3202, 1.0
        %v3269 = vlog2.pop %v3268
        %v3270 = vmul.f32 %v3269, 0.6931472
        %v3271 = vmul.f32 -0.5, %v3202
        %v3272 = vadd.f32 %v3271, 1.0
        %v3273 = vmul.f32 %v3272, %v3202
        %v3274 = vand.u32 2147483647, %v3202
        %vm3275 = vcmp.lt.f32.partialorder %v3274, 0.0004427343
        %v3276 = vsel %vm3275, %v3273, %v3270
        %v3277 = vadd.f32 %v3204, 1.0
        %v3278 = vlog2.pop %v3277
        %v3279 = vmul.f32 %v3278, 0.6931472
        %v3280 = vmul.f32 -0.5, %v3204
        %v3281 = vadd.f32 %v3280, 1.0
        %v3282 = vmul.f32 %v3281, %v3204
        %v3283 = vand.u32 2147483647, %v3204
        %vm3284 = vcmp.lt.f32.partialorder %v3283, 0.0004427343
        %v3285 = vsel %vm3284, %v3282, %v3279
        %v3286 = vadd.f32 %v3206, 1.0
        %v3287 = vlog2.pop %v3286
        %v3288 = vmul.f32 %v3287, 0.6931472
        %v3289 = vmul.f32 -0.5, %v3206
        %v3290 = vadd.f32 %v3289, 1.0
        %v3291 = vmul.f32 %v3290, %v3206
        %v3292 = vand.u32 2147483647, %v3206
        %vm3293 = vcmp.lt.f32.partialorder %v3292, 0.0004427343
        %v3294 = vsel %vm3293, %v3291, %v3288
        %v3295 = vadd.f32 %v3208, 1.0
        %v3296 = vlog2.pop %v3295
        %v3297 = vmul.f32 %v3296, 0.6931472
        %v3298 = vmul.f32 -0.5, %v3208
        %v3299 = vadd.f32 %v3298, 1.0
        %v3300 = vmul.f32 %v3299, %v3208
        %v3301 = vand.u32 2147483647, %v3208
        %vm3302 = vcmp.lt.f32.partialorder %v3301, 0.0004427343
        %v3303 = vsel %vm3302, %v3300, %v3297
        %v3304 = vadd.f32 %v3210, 1.0
        %v3305 = vlog2.pop %v3304
        %v3306 = vmul.f32 %v3305, 0.6931472
        %v3307 = vmul.f32 -0.5, %v3210
        %v3308 = vadd.f32 %v3307, 1.0
        %v3309 = vmul.f32 %v3308, %v3210
        %v3310 = vand.u32 2147483647, %v3210
        %vm3311 = vcmp.lt.f32.partialorder %v3310, 0.0004427343
        %v3312 = vsel %vm3311, %v3309, %v3306
        %v3313 = vadd.f32 %v3212, 1.0
        %v3314 = vlog2.pop %v3313
        %v3315 = vmul.f32 %v3314, 0.6931472
        %v3316 = vmul.f32 -0.5, %v3212
        %v3317 = vadd.f32 %v3316, 1.0
        %v3318 = vmul.f32 %v3317, %v3212
        %v3319 = vand.u32 2147483647, %v3212
        %vm3320 = vcmp.lt.f32.partialorder %v3319, 0.0004427343
        %v3321 = vsel %vm3320, %v3318, %v3315
        %v3322 = vadd.f32 %v3214, 1.0
        %v3323 = vlog2.pop %v3322
        %v3324 = vmul.f32 %v3323, 0.6931472
        %v3325 = vmul.f32 -0.5, %v3214
        %v3326 = vadd.f32 %v3325, 1.0
        %v3327 = vmul.f32 %v3326, %v3214
        %v3328 = vand.u32 2147483647, %v3214
        %vm3329 = vcmp.lt.f32.partialorder %v3328, 0.0004427343
        %v3330 = vsel %vm3329, %v3327, %v3324
        %v3331 = vadd.f32 %v3216, 1.0
        %v3332 = vlog2.pop %v3331
        %v3333 = vmul.f32 %v3332, 0.6931472
        %v3334 = vmul.f32 -0.5, %v3216
        %v3335 = vadd.f32 %v3334, 1.0
        %v3336 = vmul.f32 %v3335, %v3216
        %v3337 = vand.u32 2147483647, %v3216
        %vm3338 = vcmp.lt.f32.partialorder %v3337, 0.0004427343
        %v3339 = vsel %vm3338, %v3336, %v3333
        %v3340 = vadd.f32 %v3218, 1.0
        %v3341 = vlog2.pop %v3340
        %v3342 = vmul.f32 %v3341, 0.6931472
        %v3343 = vmul.f32 -0.5, %v3218
        %v3344 = vadd.f32 %v3343, 1.0
        %v3345 = vmul.f32 %v3344, %v3218
        %v3346 = vand.u32 2147483647, %v3218
        %vm3347 = vcmp.lt.f32.partialorder %v3346, 0.0004427343
        %v3348 = vsel %vm3347, %v3345, %v3342
        %v3349 = vadd.f32 %v3220, 1.0
        %v3350 = vlog2.pop %v3349
        %v3351 = vmul.f32 %v3350, 0.6931472
        %v3352 = vmul.f32 -0.5, %v3220
        %v3353 = vadd.f32 %v3352, 1.0
        %v3354 = vmul.f32 %v3353, %v3220
        %v3355 = vand.u32 2147483647, %v3220
        %vm3356 = vcmp.lt.f32.partialorder %v3355, 0.0004427343
        %v3357 = vsel %vm3356, %v3354, %v3351
        %v3358 = vadd.f32 %v3222, 1.0
        %v3359 = vlog2.pop %v3358
        %v3360 = vmul.f32 %v3359, 0.6931472
        %v3361 = vmul.f32 -0.5, %v3222
        %v3362 = vadd.f32 %v3361, 1.0
        %v3363 = vmul.f32 %v3362, %v3222
        %v3364 = vand.u32 2147483647, %v3222
        %vm3365 = vcmp.lt.f32.partialorder %v3364, 0.0004427343
        %v3366 = vsel %vm3365, %v3363, %v3360
        %v3367 = vadd.f32 %v3143, %v3231
        %v3368 = vadd.f32 %v3144, %v3240
        %v3369 = vadd.f32 %v3145, %v3249
        %v3370 = vadd.f32 %v3146, %v3258
        %v3371 = vadd.f32 %v3147, %v3267
        %v3372 = vadd.f32 %v3148, %v3276
        %v3373 = vadd.f32 %v3149, %v3285
        %v3374 = vadd.f32 %v3150, %v3294
        %v3375 = vadd.f32 %v3151, %v3303
        %v3376 = vadd.f32 %v3152, %v3312
        %v3377 = vadd.f32 %v3153, %v3321
        %v3378 = vadd.f32 %v3154, %v3330
        %v3379 = vadd.f32 %v3155, %v3339
        %v3380 = vadd.f32 %v3156, %v3348
        %v3381 = vadd.f32 %v3157, %v3357
        %v3382 = vadd.f32 %v3158, %v3366
        %v3383 = vsub.f32 %v3367, 0.6931472
        %v3384 = vsub.f32 %v3368, 0.6931472
        %v3385 = vsub.f32 %v3369, 0.6931472
        %v3386 = vsub.f32 %v3370, 0.6931472
        %v3387 = vsub.f32 %v3371, 0.6931472
        %v3388 = vsub.f32 %v3372, 0.6931472
        %v3389 = vsub.f32 %v3373, 0.6931472
        %v3390 = vsub.f32 %v3374, 0.6931472
        %v3391 = vsub.f32 %v3375, 0.6931472
        %v3392 = vsub.f32 %v3376, 0.6931472
        %v3393 = vsub.f32 %v3377, 0.6931472
        %v3394 = vsub.f32 %v3378, 0.6931472
        %v3395 = vsub.f32 %v3379, 0.6931472
        %v3396 = vsub.f32 %v3380, 0.6931472
        %v3397 = vsub.f32 %v3381, 0.6931472
        %v3398 = vsub.f32 %v3382, 0.6931472
        %v3399 = vpack.c.bf16 %v3384, %v3383
        %v3400 = vpack.c.bf16 %v3386, %v3385
        %v3401 = vpack.c.bf16 %v3388, %v3387
        %v3402 = vpack.c.bf16 %v3390, %v3389
        %v3403 = vpack.c.bf16 %v3392, %v3391
        %v3404 = vpack.c.bf16 %v3394, %v3393
        %v3405 = vpack.c.bf16 %v3396, %v3395
        %v3406 = vpack.c.bf16 %v3398, %v3397
        %v3407 = vld [vmem:[%s777] sm:$0xf]
        %v3408 = vld [vmem:[%s777 + $0x4] sm:$0xf]
        %v3409 = vld [vmem:[%s777 + $0x8] sm:$0xf]
        %v3410 = vld [vmem:[%s777 + $0xc] sm:$0xf]
        %v3411 = vld [vmem:[%s777 + $0x10] sm:$0xf]
        %v3412 = vld [vmem:[%s777 + $0x14] sm:$0xf]
        %v3413 = vld [vmem:[%s777 + $0x18] sm:$0xf]
        %v3414 = vld [vmem:[%s777 + $0x1c] sm:$0xf]
        %v3415 = vld [vmem:[%s777 + $0x20] sm:$0xf]
        %v3416 = vld [vmem:[%s777 + $0x24] sm:$0xf]
        %v3417 = vld [vmem:[%s777 + $0x28] sm:$0xf]
        %v3418 = vld [vmem:[%s777 + $0x2c] sm:$0xf]
        %v3419 = vld [vmem:[%s777 + $0x30] sm:$0xf]
        %v3420 = vld [vmem:[%s777 + $0x34] sm:$0xf]
        %v3421 = vld [vmem:[%s777 + $0x38] sm:$0xf]
        %v3422 = vld [vmem:[%s777 + $0x3c] sm:$0xf]
        %v3423 = vld [vmem:[%s932] sm:$0x1]
        %v3425 = vlaneseq
        %v3426 = vshrl.u32 %v3425, 7
        %v3427 = vsub.s32 0, %v3426
        %v3428 = vrot.slane %v3423, %v3427
        %v3446 = vunpack.c.l.b16 %v3407
        %v3447 = vunpack.c.l.b16 %v3408
        %v3448 = vunpack.c.l.b16 %v3409
        %v3449 = vunpack.c.l.b16 %v3410
        %v3450 = vunpack.c.l.b16 %v3411
        %v3451 = vunpack.c.l.b16 %v3412
        %v3452 = vunpack.c.l.b16 %v3413
        %v3453 = vunpack.c.l.b16 %v3414
        %v3454 = vunpack.c.l.b16 %v3415
        %v3455 = vunpack.c.l.b16 %v3416
        %v3456 = vunpack.c.l.b16 %v3417
        %v3457 = vunpack.c.l.b16 %v3418
        %v3458 = vunpack.c.l.b16 %v3419
        %v3459 = vunpack.c.l.b16 %v3420
        %v3460 = vunpack.c.l.b16 %v3421
        %v3461 = vunpack.c.l.b16 %v3422
        %v3462 = vpack.c.b16 %v3447, %v3446
        %v3463 = vpack.c.b16 %v3449, %v3448
        %v3464 = vpack.c.b16 %v3451, %v3450
        %v3465 = vpack.c.b16 %v3453, %v3452
        %v3466 = vpack.c.b16 %v3455, %v3454
        %v3467 = vpack.c.b16 %v3457, %v3456
        %v3468 = vpack.c.b16 %v3459, %v3458
        %v3469 = vpack.c.b16 %v3461, %v3460
        %3478 = vmatprep.subr.bf16.mxu0 0
        %3479 = vmatpush1.bf16.msra.mxu0 %v3462
        %3480 = vmatprep.subr.bf16.mxu0 0
        %3481 = vmatpush1.bf16.msra.mxu0 %v3463
        %3482 = vmatprep.subr.bf16.mxu0 0
        %3483 = vmatpush1.bf16.msra.mxu0 %v3464
        %3484 = vmatprep.subr.bf16.mxu0 0
        %3485 = vmatpush1.bf16.msra.mxu0 %v3465
        %3486 = vmatprep.subr.bf16.mxu0 0
        %3487 = vmatpush1.bf16.msra.mxu0 %v3466
        %3488 = vmatprep.subr.bf16.mxu0 0
        %3489 = vmatpush1.bf16.msra.mxu0 %v3467
        %3490 = vmatprep.subr.bf16.mxu0 0
        %3491 = vmatpush1.bf16.msra.mxu0 %v3468
        %3492 = vmatprep.subr.bf16.mxu0 0
        %3493 = vmatpush1.bf16.msra.mxu0 %v3469
        %3494 = vmatprep.subr.bf16.mxu0 0
        %3495 = vmatpush1.bf16.msra.mxu0 0
        %3496 = vmatprep.subr.bf16.mxu0 0
        %3497 = vmatpush1.bf16.msra.mxu0 0
        %3498 = vmatprep.subr.bf16.mxu0 0
        %3499 = vmatpush1.bf16.msra.mxu0 0
        %3500 = vmatprep.subr.bf16.mxu0 0
        %3501 = vmatpush1.bf16.msra.mxu0 0
        %3502 = vmatprep.subr.bf16.mxu0 0
        %3503 = vmatpush1.bf16.msra.mxu0 0
        %3504 = vmatprep.subr.bf16.mxu0 0
        %3505 = vmatpush1.bf16.msra.mxu0 0
        %3506 = vmatprep.subr.bf16.mxu0 0
        %3507 = vmatpush1.bf16.msra.mxu0 0
        %3508 = vmatprep.subr.bf16.mxu0 0
        %3509 = vmatpush1.bf16.msra.mxu0 0
        %3510 = vmatprep.mubr.bf16.mxu0 0
        %3511 = vmatmul.mubr.bf16.gmra.mrb[0].mxu0 %v3399
        %v3512 = vpop.f32.mrb[0].mxu0
        %v3513 = vadd.f32 %v3428, %v3512
        %v3514 = vpop.f32.mrb[0].mxu0
        %v3515 = vpop.f32.mrb[0].mxu0
        %v3516 = vadd.f32 %v3428, %v3515
        %v3517 = vpop.f32.mrb[0].mxu0
        %3518 = vmatprep.mubr.bf16.mxu0 0
        %3519 = vmatmul.mubr.bf16.gmra.mrb[0].mxu0 %v3400
        %v3520 = vpop.f32.mrb[0].mxu0
        %v3521 = vadd.f32 %v3428, %v3520
        %v3522 = vpop.f32.mrb[0].mxu0
        %v3523 = vpop.f32.mrb[0].mxu0
        %v3524 = vadd.f32 %v3428, %v3523
        %v3525 = vpop.f32.mrb[0].mxu0
        %3526 = vmatprep.mubr.bf16.mxu0 0
        %3527 = vmatmul.mubr.bf16.gmra.mrb[0].mxu0 %v3401
        %v3528 = vpop.f32.mrb[0].mxu0
        %v3529 = vadd.f32 %v3428, %v3528
        %v3530 = vpop.f32.mrb[0].mxu0
        %v3531 = vpop.f32.mrb[0].mxu0
        %v3532 = vadd.f32 %v3428, %v3531
        %v3533 = vpop.f32.mrb[0].mxu0
        %3534 = vmatprep.mubr.bf16.mxu0 0
        %3535 = vmatmul.mubr.bf16.gmra.mrb[0].mxu0 %v3402
        %v3536 = vpop.f32.mrb[0].mxu0
        %v3537 = vadd.f32 %v3428, %v3536
        %v3538 = vpop.f32.mrb[0].mxu0
        %v3539 = vpop.f32.mrb[0].mxu0
        %v3540 = vadd.f32 %v3428, %v3539
        %v3541 = vpop.f32.mrb[0].mxu0
        %3542 = vmatprep.mubr.bf16.mxu0 0
        %3543 = vmatmul.mubr.bf16.gmra.mrb[0].mxu0 %v3403
        %v3544 = vpop.f32.mrb[0].mxu0
        %v3545 = vadd.f32 %v3428, %v3544
        %v3546 = vpop.f32.mrb[0].mxu0
        %v3547 = vpop.f32.mrb[0].mxu0
        %v3548 = vadd.f32 %v3428, %v3547
        %v3549 = vpop.f32.mrb[0].mxu0
        %3550 = vmatprep.mubr.bf16.mxu0 0
        %3551 = vmatmul.mubr.bf16.gmra.mrb[0].mxu0 %v3404
        %v3552 = vpop.f32.mrb[0].mxu0
        %v3553 = vadd.f32 %v3428, %v3552
        %v3554 = vpop.f32.mrb[0].mxu0
        %v3555 = vpop.f32.mrb[0].mxu0
        %v3556 = vadd.f32 %v3428, %v3555
        %v3557 = vpop.f32.mrb[0].mxu0
        %3558 = vmatprep.mubr.bf16.mxu0 0
        %3559 = vmatmul.mubr.bf16.gmra.mrb[0].mxu0 %v3405
        %v3560 = vpop.f32.mrb[0].mxu0
        %v3561 = vadd.f32 %v3428, %v3560
        %v3562 = vpop.f32.mrb[0].mxu0
        %v3563 = vpop.f32.mrb[0].mxu0
        %v3564 = vadd.f32 %v3428, %v3563
        %v3565 = vpop.f32.mrb[0].mxu0
        %3566 = vmatprep.mubr.bf16.mxu0 0
        %3567 = vmatmul.mubr.bf16.gmra.mrb[0].mxu0 %v3406
        %v3568 = vpop.f32.mrb[0].mxu0
        %v3569 = vadd.f32 %v3428, %v3568
        %v3570 = vpop.f32.mrb[0].mxu0
        %v3571 = vpop.f32.mrb[0].mxu0
        %v3572 = vadd.f32 %v3428, %v3571
        %v3573 = vpop.f32.mrb[0].mxu0
        %3574 = vdwg.mxu0
        %3576 = vset.pattern.permute.xlu0 0
        %3577 = vperm.xlu0 %3576, %v2951
        %v3578 = vpop.permute.xlu0 %3577
        %3581 = vset.pattern.permute.xlu0 0
        %3582 = vperm.xlu0 %3581, %v2952
        %v3583 = vpop.permute.xlu0 %3582
        %3586 = vset.pattern.permute.xlu0 0
        %3587 = vperm.xlu0 %3586, %v2953
        %v3588 = vpop.permute.xlu0 %3587
        %3591 = vset.pattern.permute.xlu0 0
        %3592 = vperm.xlu0 %3591, %v2954
        %v3593 = vpop.permute.xlu0 %3592
        %3596 = vset.pattern.permute.xlu0 0
        %3597 = vperm.xlu0 %3596, %v2955
        %v3598 = vpop.permute.xlu0 %3597
        %3601 = vset.pattern.permute.xlu0 0
        %3602 = vperm.xlu0 %3601, %v2956
        %v3603 = vpop.permute.xlu0 %3602
        %3606 = vset.pattern.permute.xlu0 0
        %3607 = vperm.xlu0 %3606, %v2957
        %v3608 = vpop.permute.xlu0 %3607
        %3611 = vset.pattern.permute.xlu0 0
        %3612 = vperm.xlu0 %3611, %v2958
        %v3613 = vpop.permute.xlu0 %3612
        %3616 = vset.pattern.permute.xlu0 0
        %3617 = vperm.xlu0 %3616, %v2959
        %v3618 = vpop.permute.xlu0 %3617
        %3621 = vset.pattern.permute.xlu0 0
        %3622 = vperm.xlu0 %3621, %v2960
        %v3623 = vpop.permute.xlu0 %3622
        %3626 = vset.pattern.permute.xlu0 0
        %3627 = vperm.xlu0 %3626, %v2961
        %v3628 = vpop.permute.xlu0 %3627
        %3631 = vset.pattern.permute.xlu0 0
        %3632 = vperm.xlu0 %3631, %v2962
        %v3633 = vpop.permute.xlu0 %3632
        %3636 = vset.pattern.permute.xlu0 0
        %3637 = vperm.xlu0 %3636, %v2963
        %v3638 = vpop.permute.xlu0 %3637
        %3641 = vset.pattern.permute.xlu0 0
        %3642 = vperm.xlu0 %3641, %v2964
        %v3643 = vpop.permute.xlu0 %3642
        %3646 = vset.pattern.permute.xlu0 0
        %3647 = vperm.xlu0 %3646, %v2965
        %v3648 = vpop.permute.xlu0 %3647
        %3651 = vset.pattern.permute.xlu0 0
        %3652 = vperm.xlu0 %3651, %v2966
        %v3653 = vpop.permute.xlu0 %3652
        %v3655 = vmul.f32 %v3513, %v3578
        %v3656 = vmul.f32 %v3516, %v3583
        %v3657 = vmul.f32 %v3521, %v3588
        %v3658 = vmul.f32 %v3524, %v3593
        %v3659 = vmul.f32 %v3529, %v3598
        %v3660 = vmul.f32 %v3532, %v3603
        %v3661 = vmul.f32 %v3537, %v3608
        %v3662 = vmul.f32 %v3540, %v3613
        %v3663 = vmul.f32 %v3545, %v3618
        %v3664 = vmul.f32 %v3548, %v3623
        %v3665 = vmul.f32 %v3553, %v3628
        %v3666 = vmul.f32 %v3556, %v3633
        %v3667 = vmul.f32 %v3561, %v3638
        %v3668 = vmul.f32 %v3564, %v3643
        %v3669 = vmul.f32 %v3569, %v3648
        %v3670 = vmul.f32 %v3572, %v3653
        %v3671 = vld [vmem:[%s915] sm:$0xf]
        %v3672 = vld [vmem:[%s915 + $0x4] sm:$0xf]
        %v3673 = vld [vmem:[%s915 + $0x8] sm:$0xf]
        %v3674 = vld [vmem:[%s915 + $0xc] sm:$0xf]
        %v3675 = vld [vmem:[%s915 + $0x10] sm:$0xf]
        %v3676 = vld [vmem:[%s915 + $0x14] sm:$0xf]
        %v3677 = vld [vmem:[%s915 + $0x18] sm:$0xf]
        %v3678 = vld [vmem:[%s915 + $0x1c] sm:$0xf]
        %v3679 = vld [vmem:[%s915 + $0x20] sm:$0xf]
        %v3680 = vld [vmem:[%s915 + $0x24] sm:$0xf]
        %v3681 = vld [vmem:[%s915 + $0x28] sm:$0xf]
        %v3682 = vld [vmem:[%s915 + $0x2c] sm:$0xf]
        %v3683 = vld [vmem:[%s915 + $0x30] sm:$0xf]
        %v3684 = vld [vmem:[%s915 + $0x34] sm:$0xf]
        %v3685 = vld [vmem:[%s915 + $0x38] sm:$0xf]
        %v3686 = vld [vmem:[%s915 + $0x3c] sm:$0xf]
        %v3687 = vld [vmem:[#allocation3] sm:$0xf]
        %v3688 = vld [vmem:[#allocation3 + $0x4] sm:$0xf]
        %v3689 = vld [vmem:[#allocation3 + $0x8] sm:$0xf]
        %v3706 = vunpack.c.l.b16 %v3671
        %v3707 = vunpack.c.l.b16 %v3672
        %v3708 = vunpack.c.l.b16 %v3673
        %v3709 = vunpack.c.l.b16 %v3674
        %v3710 = vunpack.c.l.b16 %v3675
        %v3711 = vunpack.c.l.b16 %v3676
        %v3712 = vunpack.c.l.b16 %v3677
        %v3713 = vunpack.c.l.b16 %v3678
        %v3714 = vunpack.c.l.b16 %v3679
        %v3715 = vunpack.c.l.b16 %v3680
        %v3716 = vunpack.c.l.b16 %v3681
        %v3717 = vunpack.c.l.b16 %v3682
        %v3718 = vunpack.c.l.b16 %v3683
        %v3719 = vunpack.c.l.b16 %v3684
        %v3720 = vunpack.c.l.b16 %v3685
        %v3721 = vunpack.c.l.b16 %v3686
        %v3722 = vpack.c.b16 %v3707, %v3706
        %v3723 = vpack.c.b16 %v3709, %v3708
        %v3724 = vpack.c.b16 %v3711, %v3710
        %v3725 = vpack.c.b16 %v3713, %v3712
        %v3726 = vpack.c.b16 %v3715, %v3714
        %v3727 = vpack.c.b16 %v3717, %v3716
        %v3728 = vpack.c.b16 %v3719, %v3718
        %v3729 = vpack.c.b16 %v3721, %v3720
        %v3733 = vunpack.c.l.b16 %v3687
        %v3734 = vunpack.c.l.b16 %v3688
        %v3735 = vunpack.c.l.b16 %v3689
        %v3736 = vpack.c.b16 %v3734, %v3733
        %v3737 = vpack.c.b16 %v3735, %v3735
        %vm3739 = vcmask 195584
        %v3741 = vsel %vm3739, %v3722, 0
        %v3744 = vsel %vm3739, %v3723, 0
        %v3747 = vsel %vm3739, %v3724, 0
        %v3750 = vsel %vm3739, %v3725, 0
        %v3753 = vsel %vm3739, %v3726, 0
        %v3756 = vsel %vm3739, %v3727, 0
        %v3759 = vsel %vm3739, %v3728, 0
        %v3762 = vsel %vm3739, %v3729, 0
        %vm3764 = vcmask 1043456
        %v3766 = vsel %vm3764, %v3737, 0
        %3768 = vmatprep.subr.bf16.mxu0 0
        %3769 = vmatpush1.bf16.msra.mxu0 %v3736
        %3770 = vmatprep.subr.bf16.mxu0 0
        %3771 = vmatpush1.bf16.msra.mxu0 %v3766
        %3772 = vmatprep.subr.bf16.mxu0 0
        %3773 = vmatpush1.bf16.msra.mxu0 0
        %3774 = vmatprep.subr.bf16.mxu0 0
        %3775 = vmatpush1.bf16.msra.mxu0 0
        %3776 = vmatprep.subr.bf16.mxu0 0
        %3777 = vmatpush1.bf16.msra.mxu0 0
        %3778 = vmatprep.subr.bf16.mxu0 0
        %3779 = vmatpush1.bf16.msra.mxu0 0
        %3780 = vmatprep.subr.bf16.mxu0 0
        %3781 = vmatpush1.bf16.msra.mxu0 0
        %3782 = vmatprep.subr.bf16.mxu0 0
        %3783 = vmatpush1.bf16.msra.mxu0 0
        %3784 = vmatprep.subr.bf16.mxu0 0
        %3785 = vmatpush1.bf16.msra.mxu0 0
        %3786 = vmatprep.subr.bf16.mxu0 0
        %3787 = vmatpush1.bf16.msra.mxu0 0
        %3788 = vmatprep.subr.bf16.mxu0 0
        %3789 = vmatpush1.bf16.msra.mxu0 0
        %3790 = vmatprep.subr.bf16.mxu0 0
        %3791 = vmatpush1.bf16.msra.mxu0 0
        %3792 = vmatprep.subr.bf16.mxu0 0
        %3793 = vmatpush1.bf16.msra.mxu0 0
        %3794 = vmatprep.subr.bf16.mxu0 0
        %3795 = vmatpush1.bf16.msra.mxu0 0
        %3796 = vmatprep.subr.bf16.mxu0 0
        %3797 = vmatpush1.bf16.msra.mxu0 0
        %3798 = vmatprep.subr.bf16.mxu0 0
        %3799 = vmatpush1.bf16.msra.mxu0 0
        %3800 = vmatprep.mubr.bf16.mxu0 0
        %3801 = vmatmul.mubr.bf16.gmra.mrb[0].mxu0 %v3741
        %v3802 = vpop.f32.mrb[0].mxu0
        %v3803 = vadd.f32 0.0, %v3802
        %v3804 = vpop.f32.mrb[0].mxu0
        %v3805 = vpop.f32.mrb[0].mxu0
        %v3806 = vadd.f32 0.0, %v3805
        %v3807 = vpop.f32.mrb[0].mxu0
        %3808 = vmatprep.mubr.bf16.mxu0 0
        %3809 = vmatmul.mubr.bf16.gmra.mrb[0].mxu0 %v3744
        %v3810 = vpop.f32.mrb[0].mxu0
        %v3811 = vadd.f32 0.0, %v3810
        %v3812 = vpop.f32.mrb[0].mxu0
        %v3813 = vpop.f32.mrb[0].mxu0
        %v3814 = vadd.f32 0.0, %v3813
        %v3815 = vpop.f32.mrb[0].mxu0
        %3816 = vmatprep.mubr.bf16.mxu0 0
        %3817 = vmatmul.mubr.bf16.gmra.mrb[0].mxu0 %v3747
        %v3818 = vpop.f32.mrb[0].mxu0
        %v3819 = vadd.f32 0.0, %v3818
        %v3820 = vpop.f32.mrb[0].mxu0
        %v3821 = vpop.f32.mrb[0].mxu0
        %v3822 = vadd.f32 0.0, %v3821
        %v3823 = vpop.f32.mrb[0].mxu0
        %3824 = vmatprep.mubr.bf16.mxu0 0
        %3825 = vmatmul.mubr.bf16.gmra.mrb[0].mxu0 %v3750
        %v3826 = vpop.f32.mrb[0].mxu0
        %v3827 = vadd.f32 0.0, %v3826
        %v3828 = vpop.f32.mrb[0].mxu0
        %v3829 = vpop.f32.mrb[0].mxu0
        %v3830 = vadd.f32 0.0, %v3829
        %v3831 = vpop.f32.mrb[0].mxu0
        %3832 = vmatprep.mubr.bf16.mxu0 0
        %3833 = vmatmul.mubr.bf16.gmra.mrb[0].mxu0 %v3753
        %v3834 = vpop.f32.mrb[0].mxu0
        %v3835 = vadd.f32 0.0, %v3834
        %v3836 = vpop.f32.mrb[0].mxu0
        %v3837 = vpop.f32.mrb[0].mxu0
        %v3838 = vadd.f32 0.0, %v3837
        %v3839 = vpop.f32.mrb[0].mxu0
        %3840 = vmatprep.mubr.bf16.mxu0 0
        %3841 = vmatmul.mubr.bf16.gmra.mrb[0].mxu0 %v3756
        %v3842 = vpop.f32.mrb[0].mxu0
        %v3843 = vadd.f32 0.0, %v3842
        %v3844 = vpop.f32.mrb[0].mxu0
        %v3845 = vpop.f32.mrb[0].mxu0
        %v3846 = vadd.f32 0.0, %v3845
        %v3847 = vpop.f32.mrb[0].mxu0
        %3848 = vmatprep.mubr.bf16.mxu0 0
        %3849 = vmatmul.mubr.bf16.gmra.mrb[0].mxu0 %v3759
        %v3850 = vpop.f32.mrb[0].mxu0
        %v3851 = vadd.f32 0.0, %v3850
        %v3852 = vpop.f32.mrb[0].mxu0
        %v3853 = vpop.f32.mrb[0].mxu0
        %v3854 = vadd.f32 0.0, %v3853
        %v3855 = vpop.f32.mrb[0].mxu0
        %3856 = vmatprep.mubr.bf16.mxu0 0
        %3857 = vmatmul.mubr.bf16.gmra.mrb[0].mxu0 %v3762
        %v3858 = vpop.f32.mrb[0].mxu0
        %v3859 = vadd.f32 0.0, %v3858
        %v3860 = vpop.f32.mrb[0].mxu0
        %v3861 = vpop.f32.mrb[0].mxu0
        %v3862 = vadd.f32 0.0, %v3861
        %v3863 = vpop.f32.mrb[0].mxu0
        %3864 = vdwg.mxu0
        %v3865 = vmul.f32 %v3803, %v3655
        %v3866 = vmul.f32 %v3806, %v3656
        %v3867 = vmul.f32 %v3811, %v3657
        %v3868 = vmul.f32 %v3814, %v3658
        %v3869 = vmul.f32 %v3819, %v3659
        %v3870 = vmul.f32 %v3822, %v3660
        %v3871 = vmul.f32 %v3827, %v3661
        %v3872 = vmul.f32 %v3830, %v3662
        %v3873 = vmul.f32 %v3835, %v3663
        %v3874 = vmul.f32 %v3838, %v3664
        %v3875 = vmul.f32 %v3843, %v3665
        %v3876 = vmul.f32 %v3846, %v3666
        %v3877 = vmul.f32 %v3851, %v3667
        %v3878 = vmul.f32 %v3854, %v3668
        %v3879 = vmul.f32 %v3859, %v3669
        %v3880 = vmul.f32 %v3862, %v3670
        %v3881 = vpack.c.bf16 %v3866, %v3865
        %v3882 = vpack.c.bf16 %v3868, %v3867
        %v3883 = vpack.c.bf16 %v3870, %v3869
        %v3884 = vpack.c.bf16 %v3872, %v3871
        %v3885 = vpack.c.bf16 %v3874, %v3873
        %v3886 = vpack.c.bf16 %v3876, %v3875
        %v3887 = vpack.c.bf16 %v3878, %v3877
        %v3888 = vpack.c.bf16 %v3880, %v3879
        %v3889 = vld [vmem:[#allocation4] sm:$0xff]
        %v3890 = vld [vmem:[#allocation4 + $0x8] sm:$0xff]
        %v3891 = vld [vmem:[#allocation4 + $0x10] sm:$0xff]
        %v3892 = vld [vmem:[%s760] sm:$0xf]
        %v3893 = vld [vmem:[%s760 + $0x4] sm:$0xf]
        %v3894 = vld [vmem:[%s760 + $0x8] sm:$0xf]
        %v3898 = vunpack.c.l.b16 %v3892
        %v3899 = vunpack.c.l.b16 %v3893
        %v3900 = vunpack.c.l.b16 %v3894
        %v3901 = vpack.c.b16 %v3899, %v3898
        %v3902 = vpack.c.b16 %v3900, %v3900
        %3905 = vmatprep.subr.bf16.mxu0 0
        %3906 = vmatpush1.bf16.msra.mxu0 %v3881
        %3907 = vmatprep.subr.bf16.mxu0 0
        %3908 = vmatpush1.bf16.msra.mxu0 %v3882
        %3909 = vmatprep.subr.bf16.mxu0 0
        %3910 = vmatpush1.bf16.msra.mxu0 %v3883
        %3911 = vmatprep.subr.bf16.mxu0 0
        %3912 = vmatpush1.bf16.msra.mxu0 %v3884
        %3913 = vmatprep.subr.bf16.mxu0 0
        %3914 = vmatpush1.bf16.msra.mxu0 %v3885
        %3915 = vmatprep.subr.bf16.mxu0 0
        %3916 = vmatpush1.bf16.msra.mxu0 %v3886
        %3917 = vmatprep.subr.bf16.mxu0 0
        %3918 = vmatpush1.bf16.msra.mxu0 %v3887
        %3919 = vmatprep.subr.bf16.mxu0 0
        %3920 = vmatpush1.bf16.msra.mxu0 %v3888
        %3921 = vmatprep.subr.bf16.mxu0 0
        %3922 = vmatpush1.bf16.msra.mxu0 0
        %3923 = vmatprep.subr.bf16.mxu0 0
        %3924 = vmatpush1.bf16.msra.mxu0 0
        %3925 = vmatprep.subr.bf16.mxu0 0
        %3926 = vmatpush1.bf16.msra.mxu0 0
        %3927 = vmatprep.subr.bf16.mxu0 0
        %3928 = vmatpush1.bf16.msra.mxu0 0
        %3929 = vmatprep.subr.bf16.mxu0 0
        %3930 = vmatpush1.bf16.msra.mxu0 0
        %3931 = vmatprep.subr.bf16.mxu0 0
        %3932 = vmatpush1.bf16.msra.mxu0 0
        %3933 = vmatprep.subr.bf16.mxu0 0
        %3934 = vmatpush1.bf16.msra.mxu0 0
        %3935 = vmatprep.subr.bf16.mxu0 0
        %3936 = vmatpush1.bf16.msra.mxu0 0
        %3937 = vmatprep.mubr.bf16.mxu0 0
        %3938 = vmatmul.mubr.bf16.gmra.mrb[0].mxu0 %v3901
        %v3939 = vpop.f32.mrb[0].mxu0
        %v3940 = vadd.f32 0.0, %v3939
        %v3941 = vpop.f32.mrb[0].mxu0
        %v3942 = vpop.f32.mrb[0].mxu0
        %v3943 = vadd.f32 0.0, %v3942
        %v3944 = vpop.f32.mrb[0].mxu0
        %3945 = vmatprep.mubr.bf16.mxu0 0
        %3946 = vmatmul.mubr.bf16.gmra.mrb[0].mxu0 %v3902
        %v3947 = vpop.f32.mrb[0].mxu0
        %v3948 = vadd.f32 0.0, %v3947
        %v3949 = vpop.f32.mrb[0].mxu0
        %v3950 = vpop.f32.mrb[0].mxu0
        %v3951 = vpop.f32.mrb[0].mxu0
        %3952 = vdwg.mxu0
        %v3953 = vadd.f32 %v3889, %v3940
        %v3954 = vadd.f32 %v3890, %v3943
        %v3955 = vadd.f32 %v3891, %v3948
        %3956 = vst [vmem:[#allocation4] sm:$0xff] %v3953
        %3957 = vst [vmem:[#allocation4 + $0x8] sm:$0xff] %v3954
        %3958 = vst [vmem:[#allocation4 + $0x10] sm:$0xff] %v3955
        %p3959 = scmp.eq.s32.totalorder %s47, 1
        // Predicated region
        $region137: #{tpu_custom_call.1} parent=95 // pred_check
          %p3960 = pneg %p3959
        $region138: #{tpu_custom_call.1} parent=95 // pred_check_branch
          %3962 = sbr.rel (%p3960) target = $region140
        $region139: #{tpu_custom_call.1} parent=95 // pred_region
          %v3963 = vld [vmem:[#allocation4] sm:$0xff]
          %v3964 = vld [vmem:[#allocation4 + $0x8] sm:$0xff]
          %v3965 = vld [vmem:[#allocation4 + $0x10] sm:$0xff]
          %v3966 = vpack.c.bf16 %v3964, %v3963
          %v3967 = vpack.c.bf16 %v3965, %v3965
          %v3968 = vld [vmem:[%s786] sm:$0xf]
          %v3969 = vld [vmem:[%s786 + $0x4] sm:$0xf]
          %v3970 = vld [vmem:[%s786 + $0x8] sm:$0xf]
          %v3971 = vld [vmem:[%s786 + $0xc] sm:$0xf]
          %v3972 = vld [vmem:[%s786 + $0x10] sm:$0xf]
          %v3973 = vld [vmem:[%s786 + $0x14] sm:$0xf]
          %v3974 = vld [vmem:[%s786 + $0x18] sm:$0xf]
          %v3975 = vld [vmem:[%s786 + $0x1c] sm:$0xf]
          %v3976 = vld [vmem:[%s786 + $0x20] sm:$0xf]
          %v3977 = vld [vmem:[%s786 + $0x24] sm:$0xf]
          %v3978 = vld [vmem:[%s786 + $0x28] sm:$0xf]
          %v3979 = vld [vmem:[%s786 + $0x2c] sm:$0xf]
          %v3980 = vld [vmem:[%s786 + $0x30] sm:$0xf]
          %v3981 = vld [vmem:[%s786 + $0x34] sm:$0xf]
          %v3982 = vld [vmem:[%s786 + $0x38] sm:$0xf]
          %v3983 = vld [vmem:[%s786 + $0x3c] sm:$0xf]
          %v3984 = vld [vmem:[%s794] sm:$0x1]
          %v3986 = vlaneseq
          %v3987 = vshrl.u32 %v3986, 7
          %v3988 = vsub.s32 0, %v3987
          %v3989 = vrot.slane %v3984, %v3988
          %v4007 = vunpack.c.l.b16 %v3968
          %v4008 = vunpack.c.l.b16 %v3969
          %v4009 = vunpack.c.l.b16 %v3970
          %v4010 = vunpack.c.l.b16 %v3971
          %v4011 = vunpack.c.l.b16 %v3972
          %v4012 = vunpack.c.l.b16 %v3973
          %v4013 = vunpack.c.l.b16 %v3974
          %v4014 = vunpack.c.l.b16 %v3975
          %v4015 = vunpack.c.l.b16 %v3976
          %v4016 = vunpack.c.l.b16 %v3977
          %v4017 = vunpack.c.l.b16 %v3978
          %v4018 = vunpack.c.l.b16 %v3979
          %v4019 = vunpack.c.l.b16 %v3980
          %v4020 = vunpack.c.l.b16 %v3981
          %v4021 = vunpack.c.l.b16 %v3982
          %v4022 = vunpack.c.l.b16 %v3983
          %v4023 = vpack.c.b16 %v4008, %v4007
          %v4024 = vpack.c.b16 %v4010, %v4009
          %v4025 = vpack.c.b16 %v4012, %v4011
          %v4026 = vpack.c.b16 %v4014, %v4013
          %v4027 = vpack.c.b16 %v4016, %v4015
          %v4028 = vpack.c.b16 %v4018, %v4017
          %v4029 = vpack.c.b16 %v4020, %v4019
          %v4030 = vpack.c.b16 %v4022, %v4021
          %4039 = vmatprep.subr.bf16.mxu0 0
          %4040 = vmatpush1.bf16.msra.mxu0 %v4023
          %4041 = vmatprep.subr.bf16.mxu0 0
          %4042 = vmatpush1.bf16.msra.mxu0 %v4024
          %4043 = vmatprep.subr.bf16.mxu0 0
          %4044 = vmatpush1.bf16.msra.mxu0 %v4025
          %4045 = vmatprep.subr.bf16.mxu0 0
          %4046 = vmatpush1.bf16.msra.mxu0 %v4026
          %4047 = vmatprep.subr.bf16.mxu0 0
          %4048 = vmatpush1.bf16.msra.mxu0 %v4027
          %4049 = vmatprep.subr.bf16.mxu0 0
          %4050 = vmatpush1.bf16.msra.mxu0 %v4028
          %4051 = vmatprep.subr.bf16.mxu0 0
          %4052 = vmatpush1.bf16.msra.mxu0 %v4029
          %4053 = vmatprep.subr.bf16.mxu0 0
          %4054 = vmatpush1.bf16.msra.mxu0 %v4030
          %4055 = vmatprep.subr.bf16.mxu0 0
          %4056 = vmatpush1.bf16.msra.mxu0 0
          %4057 = vmatprep.subr.bf16.mxu0 0
          %4058 = vmatpush1.bf16.msra.mxu0 0
          %4059 = vmatprep.subr.bf16.mxu0 0
          %4060 = vmatpush1.bf16.msra.mxu0 0
          %4061 = vmatprep.subr.bf16.mxu0 0
          %4062 = vmatpush1.bf16.msra.mxu0 0
          %4063 = vmatprep.subr.bf16.mxu0 0
          %4064 = vmatpush1.bf16.msra.mxu0 0
          %4065 = vmatprep.subr.bf16.mxu0 0
          %4066 = vmatpush1.bf16.msra.mxu0 0
          %4067 = vmatprep.subr.bf16.mxu0 0
          %4068 = vmatpush1.bf16.msra.mxu0 0
          %4069 = vmatprep.subr.bf16.mxu0 0
          %4070 = vmatpush1.bf16.msra.mxu0 0
          %4071 = vmatprep.mubr.bf16.mxu0 0
          %4072 = vmatmul.mubr.bf16.gmra.mrb[0].mxu0 %v3966
          %v4073 = vpop.f32.mrb[0].mxu0
          %v4074 = vadd.f32 %v3989, %v4073
          %v4075 = vpop.f32.mrb[0].mxu0
          %v4076 = vpop.f32.mrb[0].mxu0
          %v4077 = vadd.f32 %v3989, %v4076
          %v4078 = vpop.f32.mrb[0].mxu0
          %4079 = vmatprep.mubr.bf16.mxu0 0
          %4080 = vmatmul.mubr.bf16.gmra.mrb[0].mxu0 %v3967
          %v4081 = vpop.f32.mrb[0].mxu0
          %v4082 = vadd.f32 %v3989, %v4081
          %v4083 = vpop.f32.mrb[0].mxu0
          %v4084 = vpop.f32.mrb[0].mxu0
          %v4085 = vpop.f32.mrb[0].mxu0
          %4086 = vdwg.mxu0
          %v4087 = vmax.f32 %v4074, 0.0
          %v4088 = vmax.f32 %v4077, 0.0
          %v4089 = vmax.f32 %v4082, 0.0
          %v4090 = vand.u32 2147483647, %v4074
          %v4091 = vand.u32 2147483647, %v4077
          %v4092 = vand.u32 2147483647, %v4082
          %v4093 = vsub.f32 0.0, %v4090
          %v4094 = vsub.f32 0.0, %v4091
          %v4095 = vsub.f32 0.0, %v4092
          %v4096 = vmul.f32 %v4093, 1.442695
          %v4097 = vpow.pop %v4096
          %v4098 = vmul.f32 %v4094, 1.442695
          %v4099 = vpow.pop %v4098
          %v4100 = vmul.f32 %v4095, 1.442695
          %v4101 = vpow.pop %v4100
          %v4102 = vadd.f32 %v4097, 1.0
          %v4103 = vlog2.pop %v4102
          %v4104 = vmul.f32 %v4103, 0.6931472
          %v4105 = vmul.f32 -0.5, %v4097
          %v4106 = vadd.f32 %v4105, 1.0
          %v4107 = vmul.f32 %v4106, %v4097
          %v4108 = vand.u32 2147483647, %v4097
          %vm4109 = vcmp.lt.f32.partialorder %v4108, 0.0004427343
          %v4110 = vsel %vm4109, %v4107, %v4104
          %v4111 = vadd.f32 %v4099, 1.0
          %v4112 = vlog2.pop %v4111
          %v4113 = vmul.f32 %v4112, 0.6931472
          %v4114 = vmul.f32 -0.5, %v4099
          %v4115 = vadd.f32 %v4114, 1.0
          %v4116 = vmul.f32 %v4115, %v4099
          %v4117 = vand.u32 2147483647, %v4099
          %vm4118 = vcmp.lt.f32.partialorder %v4117, 0.0004427343
          %v4119 = vsel %vm4118, %v4116, %v4113
          %v4120 = vadd.f32 %v4101, 1.0
          %v4121 = vlog2.pop %v4120
          %v4122 = vmul.f32 %v4121, 0.6931472
          %v4123 = vmul.f32 -0.5, %v4101
          %v4124 = vadd.f32 %v4123, 1.0
          %v4125 = vmul.f32 %v4124, %v4101
          %v4126 = vand.u32 2147483647, %v4101
          %vm4127 = vcmp.lt.f32.partialorder %v4126, 0.0004427343
          %v4128 = vsel %vm4127, %v4125, %v4122
          %v4129 = vadd.f32 %v4087, %v4110
          %v4130 = vadd.f32 %v4088, %v4119
          %v4131 = vadd.f32 %v4089, %v4128
          %v4132 = vsub.f32 %v4129, 0.6931472
          %v4133 = vsub.f32 %v4130, 0.6931472
          %v4134 = vsub.f32 %v4131, 0.6931472
          %v4135 = vpack.c.bf16 %v4133, %v4132
          %v4136 = vpack.c.bf16 %v4134, %v4134
          %v4137 = vld [vmem:[%s803] sm:$0xf]
          %v4138 = vld [vmem:[%s803 + $0x4] sm:$0xf]
          %v4139 = vld [vmem:[%s803 + $0x8] sm:$0xf]
          %v4140 = vld [vmem:[%s803 + $0xc] sm:$0xf]
          %v4141 = vld [vmem:[%s803 + $0x10] sm:$0xf]
          %v4142 = vld [vmem:[%s803 + $0x14] sm:$0xf]
          %v4143 = vld [vmem:[%s803 + $0x18] sm:$0xf]
          %v4144 = vld [vmem:[%s803 + $0x1c] sm:$0xf]
          %v4145 = vld [vmem:[%s803 + $0x20] sm:$0xf]
          %v4146 = vld [vmem:[%s803 + $0x24] sm:$0xf]
          %v4147 = vld [vmem:[%s803 + $0x28] sm:$0xf]
          %v4148 = vld [vmem:[%s803 + $0x2c] sm:$0xf]
          %v4149 = vld [vmem:[%s803 + $0x30] sm:$0xf]
          %v4150 = vld [vmem:[%s803 + $0x34] sm:$0xf]
          %v4151 = vld [vmem:[%s803 + $0x38] sm:$0xf]
          %v4152 = vld [vmem:[%s803 + $0x3c] sm:$0xf]
          %v4153 = vld [vmem:[%s935] sm:$0x1]
          %v4155 = vlaneseq
          %v4156 = vshrl.u32 %v4155, 7
          %v4157 = vsub.s32 0, %v4156
          %v4158 = vrot.slane %v4153, %v4157
          %v4176 = vunpack.c.l.b16 %v4137
          %v4177 = vunpack.c.l.b16 %v4138
          %v4178 = vunpack.c.l.b16 %v4139
          %v4179 = vunpack.c.l.b16 %v4140
          %v4180 = vunpack.c.l.b16 %v4141
          %v4181 = vunpack.c.l.b16 %v4142
          %v4182 = vunpack.c.l.b16 %v4143
          %v4183 = vunpack.c.l.b16 %v4144
          %v4184 = vunpack.c.l.b16 %v4145
          %v4185 = vunpack.c.l.b16 %v4146
          %v4186 = vunpack.c.l.b16 %v4147
          %v4187 = vunpack.c.l.b16 %v4148
          %v4188 = vunpack.c.l.b16 %v4149
          %v4189 = vunpack.c.l.b16 %v4150
          %v4190 = vunpack.c.l.b16 %v4151
          %v4191 = vunpack.c.l.b16 %v4152
          %v4192 = vpack.c.b16 %v4177, %v4176
          %v4193 = vpack.c.b16 %v4179, %v4178
          %v4194 = vpack.c.b16 %v4181, %v4180
          %v4195 = vpack.c.b16 %v4183, %v4182
          %v4196 = vpack.c.b16 %v4185, %v4184
          %v4197 = vpack.c.b16 %v4187, %v4186
          %v4198 = vpack.c.b16 %v4189, %v4188
          %v4199 = vpack.c.b16 %v4191, %v4190
          %4208 = vmatprep.subr.bf16.mxu0 0
          %4209 = vmatpush1.bf16.msra.mxu0 %v4192
          %4210 = vmatprep.subr.bf16.mxu0 0
          %4211 = vmatpush1.bf16.msra.mxu0 %v4193
          %4212 = vmatprep.subr.bf16.mxu0 0
          %4213 = vmatpush1.bf16.msra.mxu0 %v4194
          %4214 = vmatprep.subr.bf16.mxu0 0
          %4215 = vmatpush1.bf16.msra.mxu0 %v4195
          %4216 = vmatprep.subr.bf16.mxu0 0
          %4217 = vmatpush1.bf16.msra.mxu0 %v4196
          %4218 = vmatprep.subr.bf16.mxu0 0
          %4219 = vmatpush1.bf16.msra.mxu0 %v4197
          %4220 = vmatprep.subr.bf16.mxu0 0
          %4221 = vmatpush1.bf16.msra.mxu0 %v4198
          %4222 = vmatprep.subr.bf16.mxu0 0
          %4223 = vmatpush1.bf16.msra.mxu0 %v4199
          %4224 = vmatprep.subr.bf16.mxu0 0
          %4225 = vmatpush1.bf16.msra.mxu0 0
          %4226 = vmatprep.subr.bf16.mxu0 0
          %4227 = vmatpush1.bf16.msra.mxu0 0
          %4228 = vmatprep.subr.bf16.mxu0 0
          %4229 = vmatpush1.bf16.msra.mxu0 0
          %4230 = vmatprep.subr.bf16.mxu0 0
          %4231 = vmatpush1.bf16.msra.mxu0 0
          %4232 = vmatprep.subr.bf16.mxu0 0
          %4233 = vmatpush1.bf16.msra.mxu0 0
          %4234 = vmatprep.subr.bf16.mxu0 0
          %4235 = vmatpush1.bf16.msra.mxu0 0
          %4236 = vmatprep.subr.bf16.mxu0 0
          %4237 = vmatpush1.bf16.msra.mxu0 0
          %4238 = vmatprep.subr.bf16.mxu0 0
          %4239 = vmatpush1.bf16.msra.mxu0 0
          %4240 = vmatprep.mubr.bf16.mxu0 0
          %4241 = vmatmul.mubr.bf16.gmra.mrb[0].mxu0 %v4135
          %v4242 = vpop.f32.mrb[0].mxu0
          %v4243 = vadd.f32 %v4158, %v4242
          %v4244 = vpop.f32.mrb[0].mxu0
          %v4245 = vpop.f32.mrb[0].mxu0
          %v4246 = vadd.f32 %v4158, %v4245
          %v4247 = vpop.f32.mrb[0].mxu0
          %4248 = vmatprep.mubr.bf16.mxu0 0
          %4249 = vmatmul.mubr.bf16.gmra.mrb[0].mxu0 %v4136
          %v4250 = vpop.f32.mrb[0].mxu0
          %v4251 = vadd.f32 %v4158, %v4250
          %v4252 = vpop.f32.mrb[0].mxu0
          %v4253 = vpop.f32.mrb[0].mxu0
          %v4254 = vpop.f32.mrb[0].mxu0
          %4255 = vdwg.mxu0
          %v4256 = vld [vmem:[#allocation2] sm:$0xff]
          %v4257 = vld [vmem:[#allocation2 + $0x8] sm:$0xff]
          %v4258 = vld [vmem:[#allocation2 + $0x10] sm:$0xff]
          %v4259 = vadd.f32 %v4256, %v4243
          %v4260 = vadd.f32 %v4257, %v4246
          %v4261 = vadd.f32 %v4258, %v4251
          %4262 = vst [vmem:[#allocation2] sm:$0xff] %v4259
          %4263 = vst [vmem:[#allocation2 + $0x8] sm:$0xff] %v4260
          %4264 = vst [vmem:[#allocation2 + $0x10] sm:$0xff] %v4261
        $region140: #{tpu_custom_call.1} parent=95 // pred_fallthru
          _
        %p4265 = scmp.eq.s32.totalorder %s46, 2
        %p4266 = pnand %p4265, %p3959
        %p4267 = pneg %p4266
        // Predicated region
        $region141: #{tpu_custom_call.1} parent=95 // pred_check
          _
        $region142: #{tpu_custom_call.1} parent=95 // pred_check_branch
          %4269 = sbr.rel (%p4266) target = $region144
        $region143: #{tpu_custom_call.1} parent=95 // pred_region
          %v4270 = vld [vmem:[#allocation2] sm:$0xff]
          %v4271 = vld [vmem:[#allocation2 + $0x8] sm:$0xff]
          %v4272 = vld [vmem:[#allocation2 + $0x10] sm:$0xff]
          %v4273 = vpack.c.bf16 %v4271, %v4270
          %v4274 = vpack.c.bf16 %v4272, %v4272
          %v4275 = vld [vmem:[%s15] sm:$0xf]
          %v4276 = vld [vmem:[%s15 + $0x4] sm:$0xf]
          %v4277 = vld [vmem:[%s15 + $0x8] sm:$0xf]
          %v4278 = vld [vmem:[%s15 + $0xc] sm:$0xf]
          %v4279 = vld [vmem:[%s15 + $0x10] sm:$0xf]
          %v4280 = vld [vmem:[%s15 + $0x14] sm:$0xf]
          %v4281 = vld [vmem:[%s15 + $0x18] sm:$0xf]
          %v4282 = vld [vmem:[%s15 + $0x1c] sm:$0xf]
          %v4283 = vld [vmem:[%s15 + $0x20] sm:$0xf]
          %v4284 = vld [vmem:[%s15 + $0x24] sm:$0xf]
          %v4285 = vld [vmem:[%s15 + $0x28] sm:$0xf]
          %v4286 = vld [vmem:[%s15 + $0x2c] sm:$0xf]
          %v4287 = vld [vmem:[%s15 + $0x30] sm:$0xf]
          %v4288 = vld [vmem:[%s15 + $0x34] sm:$0xf]
          %v4289 = vld [vmem:[%s15 + $0x38] sm:$0xf]
          %v4290 = vld [vmem:[%s15 + $0x3c] sm:$0xf]
          %v4291 = vld [vmem:[%s16] sm:$0x1]
          %v4293 = vlaneseq
          %v4294 = vshrl.u32 %v4293, 7
          %v4295 = vsub.s32 0, %v4294
          %v4296 = vrot.slane %v4291, %v4295
          %v4314 = vunpack.c.l.b16 %v4275
          %v4315 = vunpack.c.l.b16 %v4276
          %v4316 = vunpack.c.l.b16 %v4277
          %v4317 = vunpack.c.l.b16 %v4278
          %v4318 = vunpack.c.l.b16 %v4279
          %v4319 = vunpack.c.l.b16 %v4280
          %v4320 = vunpack.c.l.b16 %v4281
          %v4321 = vunpack.c.l.b16 %v4282
          %v4322 = vunpack.c.l.b16 %v4283
          %v4323 = vunpack.c.l.b16 %v4284
          %v4324 = vunpack.c.l.b16 %v4285
          %v4325 = vunpack.c.l.b16 %v4286
          %v4326 = vunpack.c.l.b16 %v4287
          %v4327 = vunpack.c.l.b16 %v4288
          %v4328 = vunpack.c.l.b16 %v4289
          %v4329 = vunpack.c.l.b16 %v4290
          %v4330 = vpack.c.b16 %v4315, %v4314
          %v4331 = vpack.c.b16 %v4317, %v4316
          %v4332 = vpack.c.b16 %v4319, %v4318
          %v4333 = vpack.c.b16 %v4321, %v4320
          %v4334 = vpack.c.b16 %v4323, %v4322
          %v4335 = vpack.c.b16 %v4325, %v4324
          %v4336 = vpack.c.b16 %v4327, %v4326
          %v4337 = vpack.c.b16 %v4329, %v4328
          %4346 = vmatprep.subr.bf16.mxu0 0
          %4347 = vmatpush1.bf16.msra.mxu0 %v4330
          %4348 = vmatprep.subr.bf16.mxu0 0
          %4349 = vmatpush1.bf16.msra.mxu0 %v4331
          %4350 = vmatprep.subr.bf16.mxu0 0
          %4351 = vmatpush1.bf16.msra.mxu0 %v4332
          %4352 = vmatprep.subr.bf16.mxu0 0
          %4353 = vmatpush1.bf16.msra.mxu0 %v4333
          %4354 = vmatprep.subr.bf16.mxu0 0
          %4355 = vmatpush1.bf16.msra.mxu0 %v4334
          %4356 = vmatprep.subr.bf16.mxu0 0
          %4357 = vmatpush1.bf16.msra.mxu0 %v4335
          %4358 = vmatprep.subr.bf16.mxu0 0
          %4359 = vmatpush1.bf16.msra.mxu0 %v4336
          %4360 = vmatprep.subr.bf16.mxu0 0
          %4361 = vmatpush1.bf16.msra.mxu0 %v4337
          %4362 = vmatprep.subr.bf16.mxu0 0
          %4363 = vmatpush1.bf16.msra.mxu0 0
          %4364 = vmatprep.subr.bf16.mxu0 0
          %4365 = vmatpush1.bf16.msra.mxu0 0
          %4366 = vmatprep.subr.bf16.mxu0 0
          %4367 = vmatpush1.bf16.msra.mxu0 0
          %4368 = vmatprep.subr.bf16.mxu0 0
          %4369 = vmatpush1.bf16.msra.mxu0 0
          %4370 = vmatprep.subr.bf16.mxu0 0
          %4371 = vmatpush1.bf16.msra.mxu0 0
          %4372 = vmatprep.subr.bf16.mxu0 0
          %4373 = vmatpush1.bf16.msra.mxu0 0
          %4374 = vmatprep.subr.bf16.mxu0 0
          %4375 = vmatpush1.bf16.msra.mxu0 0
          %4376 = vmatprep.subr.bf16.mxu0 0
          %4377 = vmatpush1.bf16.msra.mxu0 0
          %4378 = vmatprep.mubr.bf16.mxu0 0
          %4379 = vmatmul.mubr.bf16.gmra.mrb[0].mxu0 %v4273
          %v4380 = vpop.f32.mrb[0].mxu0
          %v4381 = vadd.f32 %v4296, %v4380
          %v4382 = vpop.f32.mrb[0].mxu0
          %v4383 = vpop.f32.mrb[0].mxu0
          %v4384 = vadd.f32 %v4296, %v4383
          %v4385 = vpop.f32.mrb[0].mxu0
          %4386 = vmatprep.mubr.bf16.mxu0 0
          %4387 = vmatmul.mubr.bf16.gmra.mrb[0].mxu0 %v4274
          %v4388 = vpop.f32.mrb[0].mxu0
          %v4389 = vadd.f32 %v4296, %v4388
          %v4390 = vpop.f32.mrb[0].mxu0
          %v4391 = vpop.f32.mrb[0].mxu0
          %v4392 = vpop.f32.mrb[0].mxu0
          %4393 = vdwg.mxu0
          %v4394 = vmax.f32 %v4381, 0.0
          %v4395 = vmax.f32 %v4384, 0.0
          %v4396 = vmax.f32 %v4389, 0.0
          %v4397 = vand.u32 2147483647, %v4381
          %v4398 = vand.u32 2147483647, %v4384
          %v4399 = vand.u32 2147483647, %v4389
          %v4400 = vsub.f32 0.0, %v4397
          %v4401 = vsub.f32 0.0, %v4398
          %v4402 = vsub.f32 0.0, %v4399
          %v4403 = vmul.f32 %v4400, 1.442695
          %v4404 = vpow.pop %v4403
          %v4405 = vmul.f32 %v4401, 1.442695
          %v4406 = vpow.pop %v4405
          %v4407 = vmul.f32 %v4402, 1.442695
          %v4408 = vpow.pop %v4407
          %v4409 = vadd.f32 %v4404, 1.0
          %v4410 = vlog2.pop %v4409
          %v4411 = vmul.f32 %v4410, 0.6931472
          %v4412 = vmul.f32 -0.5, %v4404
          %v4413 = vadd.f32 %v4412, 1.0
          %v4414 = vmul.f32 %v4413, %v4404
          %v4415 = vand.u32 2147483647, %v4404
          %vm4416 = vcmp.lt.f32.partialorder %v4415, 0.0004427343
          %v4417 = vsel %vm4416, %v4414, %v4411
          %v4418 = vadd.f32 %v4406, 1.0
          %v4419 = vlog2.pop %v4418
          %v4420 = vmul.f32 %v4419, 0.6931472
          %v4421 = vmul.f32 -0.5, %v4406
          %v4422 = vadd.f32 %v4421, 1.0
          %v4423 = vmul.f32 %v4422, %v4406
          %v4424 = vand.u32 2147483647, %v4406
          %vm4425 = vcmp.lt.f32.partialorder %v4424, 0.0004427343
          %v4426 = vsel %vm4425, %v4423, %v4420
          %v4427 = vadd.f32 %v4408, 1.0
          %v4428 = vlog2.pop %v4427
          %v4429 = vmul.f32 %v4428, 0.6931472
          %v4430 = vmul.f32 -0.5, %v4408
          %v4431 = vadd.f32 %v4430, 1.0
          %v4432 = vmul.f32 %v4431, %v4408
          %v4433 = vand.u32 2147483647, %v4408
          %vm4434 = vcmp.lt.f32.partialorder %v4433, 0.0004427343
          %v4435 = vsel %vm4434, %v4432, %v4429
          %v4436 = vadd.f32 %v4394, %v4417
          %v4437 = vadd.f32 %v4395, %v4426
          %v4438 = vadd.f32 %v4396, %v4435
          %v4439 = vsub.f32 %v4436, 0.6931472
          %v4440 = vsub.f32 %v4437, 0.6931472
          %v4441 = vsub.f32 %v4438, 0.6931472
          %v4442 = vpack.c.bf16 %v4440, %v4439
          %v4443 = vpack.c.bf16 %v4441, %v4441
          %v4444 = vld [vmem:[#allocation17] sm:$0xf]
          %v4445 = vld [vmem:[#allocation17 + $0x4] sm:$0xf]
          %v4446 = vld [vmem:[#allocation17 + $0x8] sm:$0xf]
          %v4447 = vld [vmem:[#allocation17 + $0xc] sm:$0xf]
          %v4448 = vld [vmem:[#allocation17 + $0x10] sm:$0xf]
          %v4449 = vld [vmem:[#allocation17 + $0x14] sm:$0xf]
          %v4450 = vld [vmem:[#allocation17 + $0x18] sm:$0xf]
          %v4451 = vld [vmem:[#allocation17 + $0x1c] sm:$0xf]
          %v4452 = vld [vmem:[#allocation17 + $0x20] sm:$0xf]
          %v4453 = vld [vmem:[#allocation17 + $0x24] sm:$0xf]
          %v4454 = vld [vmem:[#allocation17 + $0x28] sm:$0xf]
          %v4455 = vld [vmem:[#allocation17 + $0x2c] sm:$0xf]
          %v4456 = vld [vmem:[#allocation17 + $0x30] sm:$0xf]
          %v4457 = vld [vmem:[#allocation17 + $0x34] sm:$0xf]
          %v4458 = vld [vmem:[#allocation17 + $0x38] sm:$0xf]
          %v4459 = vld [vmem:[#allocation17 + $0x3c] sm:$0xf]
          %v4460 = vld [vmem:[%s18] sm:$0x1]
          %v4462 = vlaneseq
          %v4463 = vshrl.u32 %v4462, 7
          %v4464 = vsub.s32 0, %v4463
          %v4465 = vrot.slane %v4460, %v4464
          %v4483 = vunpack.c.l.b16 %v4444
          %v4484 = vunpack.c.l.b16 %v4445
          %v4485 = vunpack.c.l.b16 %v4446
          %v4486 = vunpack.c.l.b16 %v4447
          %v4487 = vunpack.c.l.b16 %v4448
          %v4488 = vunpack.c.l.b16 %v4449
          %v4489 = vunpack.c.l.b16 %v4450
          %v4490 = vunpack.c.l.b16 %v4451
          %v4491 = vunpack.c.l.b16 %v4452
          %v4492 = vunpack.c.l.b16 %v4453
          %v4493 = vunpack.c.l.b16 %v4454
          %v4494 = vunpack.c.l.b16 %v4455
          %v4495 = vunpack.c.l.b16 %v4456
          %v4496 = vunpack.c.l.b16 %v4457
          %v4497 = vunpack.c.l.b16 %v4458
          %v4498 = vunpack.c.l.b16 %v4459
          %v4499 = vpack.c.b16 %v4484, %v4483
          %v4500 = vpack.c.b16 %v4486, %v4485
          %v4501 = vpack.c.b16 %v4488, %v4487
          %v4502 = vpack.c.b16 %v4490, %v4489
          %v4503 = vpack.c.b16 %v4492, %v4491
          %v4504 = vpack.c.b16 %v4494, %v4493
          %v4505 = vpack.c.b16 %v4496, %v4495
          %v4506 = vpack.c.b16 %v4498, %v4497
          %4515 = vmatprep.subr.bf16.mxu0 0
          %4516 = vmatpush1.bf16.msra.mxu0 %v4499
          %4517 = vmatprep.subr.bf16.mxu0 0
          %4518 = vmatpush1.bf16.msra.mxu0 %v4500
          %4519 = vmatprep.subr.bf16.mxu0 0
          %4520 = vmatpush1.bf16.msra.mxu0 %v4501
          %4521 = vmatprep.subr.bf16.mxu0 0
          %4522 = vmatpush1.bf16.msra.mxu0 %v4502
          %4523 = vmatprep.subr.bf16.mxu0 0
          %4524 = vmatpush1.bf16.msra.mxu0 %v4503
          %4525 = vmatprep.subr.bf16.mxu0 0
          %4526 = vmatpush1.bf16.msra.mxu0 %v4504
          %4527 = vmatprep.subr.bf16.mxu0 0
          %4528 = vmatpush1.bf16.msra.mxu0 %v4505
          %4529 = vmatprep.subr.bf16.mxu0 0
          %4530 = vmatpush1.bf16.msra.mxu0 %v4506
          %4531 = vmatprep.subr.bf16.mxu0 0
          %4532 = vmatpush1.bf16.msra.mxu0 0
          %4533 = vmatprep.subr.bf16.mxu0 0
          %4534 = vmatpush1.bf16.msra.mxu0 0
          %4535 = vmatprep.subr.bf16.mxu0 0
          %4536 = vmatpush1.bf16.msra.mxu0 0
          %4537 = vmatprep.subr.bf16.mxu0 0
          %4538 = vmatpush1.bf16.msra.mxu0 0
          %4539 = vmatprep.subr.bf16.mxu0 0
          %4540 = vmatpush1.bf16.msra.mxu0 0
          %4541 = vmatprep.subr.bf16.mxu0 0
          %4542 = vmatpush1.bf16.msra.mxu0 0
          %4543 = vmatprep.subr.bf16.mxu0 0
          %4544 = vmatpush1.bf16.msra.mxu0 0
          %4545 = vmatprep.subr.bf16.mxu0 0
          %4546 = vmatpush1.bf16.msra.mxu0 0
          %4547 = vmatprep.mubr.bf16.mxu0 0
          %4548 = vmatmul.mubr.bf16.gmra.mrb[0].mxu0 %v4442
          %v4549 = vpop.f32.mrb[0].mxu0
          %v4550 = vadd.f32 %v4465, %v4549
          %v4551 = vpop.f32.mrb[0].mxu0
          %v4552 = vpop.f32.mrb[0].mxu0
          %v4553 = vadd.f32 %v4465, %v4552
          %v4554 = vpop.f32.mrb[0].mxu0
          %4555 = vmatprep.mubr.bf16.mxu0 0
          %4556 = vmatmul.mubr.bf16.gmra.mrb[0].mxu0 %v4443
          %v4557 = vpop.f32.mrb[0].mxu0
          %v4558 = vadd.f32 %v4465, %v4557
          %v4559 = vpop.f32.mrb[0].mxu0
          %v4560 = vpop.f32.mrb[0].mxu0
          %v4561 = vpop.f32.mrb[0].mxu0
          %4562 = vdwg.mxu0
          %v4563 = vld [vmem:[#allocation8] sm:$0xff]
          %v4565 = vsel %vm3739, %v4563, 0
          %4567 = vmatprep.subr.mxu0 0.0
          %4568 = vmatpush1.msra.mxu0 %v4550
          %4569 = vmatprep.subr.mxu0 0.0
          %4570 = vmatpush1.msra.mxu0 %v4553
          %4571 = vmatprep.subr.mxu0 0.0
          %4572 = vmatpush1.msra.mxu0 %v4558
          %4573 = vmatprep.subr.mxu0 0.0
          %4574 = vmatpush1.msra.mxu0 0.0
          %4575 = vmatprep.subr.mxu0 0.0
          %4576 = vmatpush1.msra.mxu0 0.0
          %4577 = vmatprep.subr.mxu0 0.0
          %4578 = vmatpush1.msra.mxu0 0.0
          %4579 = vmatprep.subr.mxu0 0.0
          %4580 = vmatpush1.msra.mxu0 0.0
          %4581 = vmatprep.subr.mxu0 0.0
          %4582 = vmatpush1.msra.mxu0 0.0
          %4583 = vmatprep.subr.mxu0 0.0
          %4584 = vmatpush1.msra.mxu0 0.0
          %4585 = vmatprep.subr.mxu0 0.0
          %4586 = vmatpush1.msra.mxu0 0.0
          %4587 = vmatprep.subr.mxu0 0.0
          %4588 = vmatpush1.msra.mxu0 0.0
          %4589 = vmatprep.subr.mxu0 0.0
          %4590 = vmatpush1.msra.mxu0 0.0
          %4591 = vmatprep.subr.mxu0 0.0
          %4592 = vmatpush1.msra.mxu0 0.0
          %4593 = vmatprep.subr.mxu0 0.0
          %4594 = vmatpush1.msra.mxu0 0.0
          %4595 = vmatprep.subr.mxu0 0.0
          %4596 = vmatpush1.msra.mxu0 0.0
          %4597 = vmatprep.subr.mxu0 0.0
          %4598 = vmatpush1.msra.mxu0 0.0
          %4599 = vmatprep.subr.mxu0 0.0
          %4600 = vmatpush1.msra.mxu0 0.0
          %4601 = vmatprep.subr.mxu0 0.0
          %4602 = vmatpush1.msra.mxu0 0.0
          %4603 = vmatprep.subr.mxu0 0.0
          %4604 = vmatpush1.msra.mxu0 0.0
          %4605 = vmatprep.subr.mxu0 0.0
          %4606 = vmatpush1.msra.mxu0 0.0
          %4607 = vmatprep.subr.mxu0 0.0
          %4608 = vmatpush1.msra.mxu0 0.0
          %4609 = vmatprep.subr.mxu0 0.0
          %4610 = vmatpush1.msra.mxu0 0.0
          %4611 = vmatprep.subr.mxu0 0.0
          %4612 = vmatpush1.msra.mxu0 0.0
          %4613 = vmatprep.subr.mxu0 0.0
          %4614 = vmatpush1.msra.mxu0 0.0
          %4615 = vmatprep.subr.mxu0 0.0
          %4616 = vmatpush1.msra.mxu0 0.0
          %4617 = vmatprep.subr.mxu0 0.0
          %4618 = vmatpush1.msra.mxu0 0.0
          %4619 = vmatprep.subr.mxu0 0.0
          %4620 = vmatpush1.msra.mxu0 0.0
          %4621 = vmatprep.subr.mxu0 0.0
          %4622 = vmatpush1.msra.mxu0 0.0
          %4623 = vmatprep.subr.mxu0 0.0
          %4624 = vmatpush1.msra.mxu0 0.0
          %4625 = vmatprep.subr.mxu0 0.0
          %4626 = vmatpush1.msra.mxu0 0.0
          %4627 = vmatprep.subr.mxu0 0.0
          %4628 = vmatpush1.msra.mxu0 0.0
          %4629 = vmatprep.subr.mxu0 0.0
          %4630 = vmatpush1.msra.mxu0 0.0
          %4631 = vmatprep.mubr.f32.mxu0 0.0
          %4632 = vmatmul.mubr.f32.gmra.mrb[0].mxu0 %v4565
          %v4633 = vpop.f32.mrb[0].mxu0
          %v4634 = vadd.f32 0.0, %v4633
          %v4635 = vpop.f32.mrb[0].mxu0
          %4636 = vdwg.mxu0
          %4637 = vst [vmem:[#allocation19] sm:$0xff] %v4634
        $region144: #{tpu_custom_call.1} parent=95 // pred_fallthru
          _
        // Predicated region
        $region145: #{tpu_custom_call.1} parent=95 // pred_check
          %p4638 = pneg %p526
        $region146: #{tpu_custom_call.1} parent=95 // pred_check_branch
          %4640 = sbr.rel (%p4638) target = $region148
        $region147: #{tpu_custom_call.1} parent=95 // pred_region
          %s4642 = ssub.s32 128, 128
          %4643 = vsyncadd [#allocation7], %s4642
          %s4645 = sshll.u32 [#allocation19], 4
          %s4646 = int_to_ptr.vmem [resolvable:$true] %s4645
          %4648 = dma.vmem_to_hbm [thread:$0]  %s4646, 128, %s19, [#allocation7]
        $region148: #{tpu_custom_call.1} parent=95 // pred_fallthru
          _
        // Predicated region
        $region149: #{tpu_custom_call.1} parent=95 // pred_check
          %p4649 = pneg %p526
        $region150: #{tpu_custom_call.1} parent=95 // pred_check_branch
          %4651 = sbr.rel (%p4649) target = $region152
        $region151: #{tpu_custom_call.1} parent=95 // pred_region
          %4652 = dma.done [#allocation7], 128
        $region152: #{tpu_custom_call.1} parent=95 // pred_fallthru
          _
      $region96: #{tpu_custom_call.1} parent=5 // pred_fallthru
        _
      %p4653 = scmp.le.s32.totalorder 2, %s37
      // Predicated region
      $region153: #{tpu_custom_call.1} parent=5 // pred_check
        %p4654 = pneg %p4653
      $region154: #{tpu_custom_call.1} parent=5 // pred_check_branch
        %4656 = sbr.rel (%p4654) target = $region156
      $region155: #{tpu_custom_call.1} parent=5 // pred_region
        %s4657 = ssub.s32 %s37, 2
      $region156: #{tpu_custom_call.1} parent=5 // pred_fallthru
        _
    $region6: #{tpu_custom_call.1} parent=1 // loop_footer
      %s41 = sadd.s32 1, %s37
    $region7: #{tpu_custom_call.1} parent=1 // loop_footer_branch
      %36 = sbr.rel target = $region3
    $region8: #{tpu_custom_call.1} parent=1 // loop_exit
      _
    %4658 = vsyncpa [#allocation6], 1
    %s4659 = scalar_lea.sflag [#allocation6], 1
    %4660 = vsyncpa %s4659, 1
    %4661 = vsyncpa [#allocation9], 1
    %4662 = vsyncpa [#allocation12], 1
    %s4663 = scalar_lea.sflag [#allocation12], 1
    %4664 = vsyncpa %s4663, 1
    %4665 = vsyncpa [#allocation15], 1
    %s4666 = scalar_lea.sflag [#allocation15], 1
    %4667 = vsyncpa %s4666, 1
    %4668 = vsyncpa [#allocation18], 1
    %4669 = vsyncpa [#allocation7], 1
    %s4670 = scalar_lea.sflag [#allocation7], 1
    %4671 = vsyncpa %s4670, 1

</llo_original>
